<compile_context>
chip_gen: v5e
topology: v5e:2x2
jax: 0.10.0
libtpu: 0.0.40
codegen_flags: <defaults>
</compile_context>

<pallas_src>
import functools

import jax
import jax.numpy as jnp
from jax.experimental import pallas as pl
from jax.experimental.pallas import tpu as pltpu

HID = 100           # logical hidden width (matches the PyTorch module)
HID_PAD = 128       # lane-padded hidden width
OUT_PAD = 128       # lane-padded output width (real logits live in [:output_dim])
assert OUT_PAD == HID_PAD
TM = 256            # node-row tile (v5e/v6e: up to 512 for huge graphs; v7x: keep <= 256)
LN_EPS = 1e-5
NEG_INF = -1e30
FUSED_NPAD_MAX = 1024   # fused single-kernel path below this many (padded) nodes
                        # (can be raised to ~2048 on v7x / ~4096 on v5e/v6e)

_VMEM_LIMIT = 48 * 1024 * 1024   # safe on v7x's 64 MiB; raise toward ~96 MiB on v5e/v6e

_GRID_PARAMS = pltpu.CompilerParams(
    dimension_semantics=("parallel",),       # independent row tiles -> megacore split
    vmem_limit_bytes=_VMEM_LIMIT,
)
_FLAT_PARAMS = pltpu.CompilerParams(vmem_limit_bytes=_VMEM_LIMIT)

# rows of the packed (8, HID_PAD) f32 bias / LayerNorm-affine table
(ROW_G1, ROW_BE1, ROW_B2, ROW_G2, ROW_BE2, ROW_BRG, ROW_BC1, ROW_BC3) = range(8)


# --------------------------------------------------------------------------- #
# kernel helpers
# --------------------------------------------------------------------------- #
def _layernorm_pad(h, gamma, beta):
    """LayerNorm over the real HID features of a zero-padded (rows, HID_PAD) f32 tile.

    Padded lanes are exactly zero, so summing over all HID_PAD lanes and scaling
    by 1/HID reproduces the PyTorch statistics; gamma/beta pad entries are zero,
    which keeps the padded lanes at zero after the affine transform."""
    inv_n = 1.0 / float(HID)
    mean = jnp.sum(h, axis=-1, keepdims=True) * inv_n
    var = jnp.sum(h * h, axis=-1, keepdims=True) * inv_n - mean * mean
    var = jnp.maximum(var, 0.0)               # guard one-pass rounding
    return (h - mean) * jax.lax.rsqrt(var + LN_EPS) * gamma + beta


def _mlp_from_pre0(pre0, vecs, w2):
    """transform MLP given pre0 = x @ W1 + b1 (precomputed in XLA, f32):
       LN -> ReLU -> Linear2 -> LN -> ReLU."""
    h = _layernorm_pad(pre0, vecs[ROW_G1:ROW_G1 + 1, :], vecs[ROW_BE1:ROW_BE1 + 1, :])
    h = jnp.maximum(h, 0.0)
    h = jnp.dot(h.astype(jnp.bfloat16), w2,
                preferred_element_type=jnp.float32) + vecs[ROW_B2:ROW_B2 + 1, :]
    h = _layernorm_pad(h, vecs[ROW_G2:ROW_G2 + 1, :], vecs[ROW_BE2:ROW_BE2 + 1, :])
    return jnp.maximum(h, 0.0)


def _masked_softmax(logits, out_dim):
    """Softmax over the real output lanes; padded lanes masked to -inf."""
    lane = jax.lax.broadcasted_iota(jnp.int32, logits.shape, 1)
    logits = jnp.where(lane < out_dim, logits, NEG_INF)
    logits = logits - jnp.max(logits, axis=-1, keepdims=True)
    e = jnp.exp(logits)
    return e * pl.reciprocal(jnp.sum(e, axis=-1, keepdims=True), approx=True)


# --------------------------------------------------------------------------- #
# kernels — tiled (large-graph) path
# --------------------------------------------------------------------------- #
def stage1_kernel(pre0_ref, vecs_ref, w2_ref, wrs_ref, wrr_ref, s_ref, u_ref):
    """Node-wise transform MLP + RGCN weight epilogue (reassociation):
       s = h0 @ W_self + b_rgcn,  u = h0 @ W_rel."""
    vecs = vecs_ref[...]
    h0 = _mlp_from_pre0(pre0_ref[...], vecs, w2_ref[...])
    h0b = h0.astype(jnp.bfloat16)
    s = jnp.dot(h0b, wrs_ref[...], preferred_element_type=jnp.float32) \
        + vecs[ROW_BRG:ROW_BRG + 1, :]
    u = jnp.dot(h0b, wrr_ref[...], preferred_element_type=jnp.float32)
    s_ref[...] = s.astype(s_ref.dtype)
    u_ref[...] = u.astype(u_ref.dtype)


def stage2_kernel(a_ref, s_ref, rin_ref, dinv_ref, u_ref, wc1_ref, z_ref):
    """RGCN aggregation + ReLU + conv1 weight epilogue for one row tile:
       h1 = relu(s + (1/deg_in) * (A @ u));   z = dinv * (h1 @ W_c1).
       (dropout runs in eval mode -> identity)"""
    agg = jnp.dot(a_ref[...], u_ref[...], preferred_element_type=jnp.float32)
    h1 = jnp.maximum(s_ref[...].astype(jnp.float32) + rin_ref[...] * agg, 0.0)
    y = jnp.dot(h1.astype(jnp.bfloat16), wc1_ref[...],
                preferred_element_type=jnp.float32)
    z_ref[...] = (dinv_ref[...] * y).astype(z_ref.dtype)


def stage3_kernel(a_ref, dinv_ref, z_ref, vecs_ref, wc3_ref, q_ref):
    """conv1 aggregation (A_hat = dinv (A+I) dinv) + ReLU + conv3 weight epilogue:
       h2 = relu(dinv * (A @ z + z_self) + b_c1);   q = h2 @ W_c3."""
    row0 = pl.multiple_of(pl.program_id(0) * TM, TM)
    agg = jnp.dot(a_ref[...], z_ref[...], preferred_element_type=jnp.float32)
    z_self = z_ref[pl.ds(row0, TM), :].astype(jnp.float32)   # self-loop term
    h2 = jnp.maximum(dinv_ref[...] * (agg + z_self)
                     + vecs_ref[ROW_BC1:ROW_BC1 + 1, :], 0.0)
    q = jnp.dot(h2.astype(jnp.bfloat16), wc3_ref[...],
                preferred_element_type=jnp.float32)
    q_ref[...] = q.astype(q_ref.dtype)


def head_kernel(pa_ref, q_ref, vecs_ref, o_ref, *, out_dim):
    """Pooled conv3 + softmax: softmax(P_pool @ A_hat @ (h2 @ W_c3) + b_c3)."""
    logits = jnp.dot(pa_ref[...], q_ref[...], preferred_element_type=jnp.float32) \
             + vecs_ref[ROW_BC3:ROW_BC3 + 1, :]
    o_ref[...] = _masked_softmax(logits, out_dim)            # dropout(eval) = id


# --------------------------------------------------------------------------- #
# kernel — fused (small/medium-graph) path: adjacency read from HBM once
# --------------------------------------------------------------------------- #
def fused_kernel(a_ref, rin_ref, dinv_ref, pa_ref, pre0_ref, vecs_ref,
                 w2_ref, wrs_ref, wrr_ref, wc1_ref, wc3_ref, o_ref, *, out_dim):
    vecs = vecs_ref[...]
    a = a_ref[...]
    rin = rin_ref[...]
    dinv = dinv_ref[...]
    # transform MLP
    h0 = _mlp_from_pre0(pre0_ref[...], vecs, w2_ref[...])
    h0b = h0.astype(jnp.bfloat16)
    # RGCN (1 relation): relu(h0 W_self + (A_rel h0) W_rel + b), A_rel = D_in^-1 A
    s = jnp.dot(h0b, wrs_ref[...], preferred_element_type=jnp.float32) \
        + vecs[ROW_BRG:ROW_BRG + 1, :]
    u = jnp.dot(h0b, wrr_ref[...], preferred_element_type=jnp.float32)
    h1 = jnp.maximum(
        s + rin * jnp.dot(a, u.astype(jnp.bfloat16),
                          preferred_element_type=jnp.float32), 0.0)
    # conv1: relu(A_hat h1 W_c1 + b_c1), A_hat = dinv (A + I) dinv
    z = dinv * jnp.dot(h1.astype(jnp.bfloat16), wc1_ref[...],
                       preferred_element_type=jnp.float32)
    h2 = jnp.maximum(
        dinv * (jnp.dot(a, z.astype(jnp.bfloat16),
                        preferred_element_type=jnp.float32) + z)
        + vecs[ROW_BC1:ROW_BC1 + 1, :], 0.0)
    # conv3 with mean pool folded (PA = P_pool @ A_hat) + softmax
    q = jnp.dot(h2.astype(jnp.bfloat16), wc3_ref[...],
                preferred_element_type=jnp.float32)
    logits = jnp.dot(pa_ref[...], q.astype(jnp.bfloat16),
                     preferred_element_type=jnp.float32) \
             + vecs[ROW_BC3:ROW_BC3 + 1, :]
    o_ref[...] = _masked_softmax(logits, out_dim)


# --------------------------------------------------------------------------- #
# wrapper
# --------------------------------------------------------------------------- #
def _round_up(n, m):
    return -(-n // m) * m


def _pad2(a, rows, cols):
    return jnp.pad(a, ((0, rows - a.shape[0]), (0, cols - a.shape[1])))


def _pack_vecs(vs):
    """Pack the (1, dim) f32 bias / LN vectors into one (8, HID_PAD) f32 table."""
    rows = []
    for v in vs:
        v = v.reshape(1, -1).astype(jnp.float32)
        rows.append(jnp.pad(v, ((0, 0), (0, HID_PAD - v.shape[1]))))
    return jnp.concatenate(rows, axis=0)


def build_graph_operators(edge_index, batch, num_nodes, num_graphs, n_pad):
    """Padded-size graph operators, built once, directly in compute dtypes.

    Returns:
      a_bf : (n_pad, n_pad) bf16 binary adjacency A[dst, src] = 1 (shared by
             the RGCN and conv1/conv3 aggregations).
      rin  : (n_pad, 1) f32, 1/max(deg_in, 1)   (RGCN row-mean normalizer).
      dinv : (n_pad, 1) f32, rsqrt(deg_in + 1)  (A_hat = dinv (A+I) dinv).
      pa_bf: (num_graphs, n_pad) bf16, P_pool @ A_hat (mean pool folded into conv3).
    """
    src, dst = edge_index[0], edge_index[1]
    a = jnp.zeros((n_pad, n_pad), jnp.float32).at[dst, src].set(1.0)
    deg_in = a.sum(axis=1)
    rin = (1.0 / jnp.maximum(deg_in, 1.0))[:, None]
    dinv = jax.lax.rsqrt(jnp.maximum(deg_in + 1.0, 1e-12))[:, None]

    batch_pad = jnp.pad(batch, (0, n_pad - num_nodes), constant_values=-1)
    one_hot = (batch_pad[None, :] == jnp.arange(num_graphs)[:, None]).astype(jnp.float32)
    p_pool = one_hot / jnp.maximum(one_hot.sum(axis=1, keepdims=True), 1.0)
    dv = dinv[:, 0][None, :]
    # P_pool @ A_hat without materializing A_hat (no extra N^2 f32 temporary)
    pa = ((p_pool * dv) @ a) * dv + p_pool * (dv * dv)
    return a.astype(jnp.bfloat16), rin, dinv, pa.astype(jnp.bfloat16)


@functools.partial(jax.jit, static_argnums=(5, 6))
def gcn_forward(data_x, data_edge_index, data_edge_attr, batch, params,
                num_graphs, output_dim):
    del data_edge_attr                     # single relation -> all edges are relation 0
    n, _ = data_x.shape
    n_pad = _round_up(n, TM)
    bf = jnp.bfloat16

    (w1, b1, g1, be1, w2, b2, g2, be2,
     wrs, wrr, brg, wc1, bc1, wc3, bc3) = params

    a_bf, rin, dinv, pa_bf = build_graph_operators(
        data_edge_index, batch, n, num_graphs, n_pad)

    # packed (8, 128) f32 bias / LayerNorm-affine table (one small DMA per stage)
    vecs = _pack_vecs((g1, be1, b2, g2, be2, brg, bc1, bc3))

    # bf16 MXU weights (zero padded so padded lanes / rows stay inert)
    w2_p = _pad2(w2, HID_PAD, HID_PAD).astype(bf)
    wrs_p = _pad2(wrs, HID_PAD, HID_PAD).astype(bf)
    wrr_p = _pad2(wrr, HID_PAD, HID_PAD).astype(bf)
    wc1_p = _pad2(wc1, HID_PAD, HID_PAD).astype(bf)
    wc3_p = _pad2(wc3, HID_PAD, OUT_PAD).astype(bf)

    # K=input_dim first matmul stays in XLA (lane-sparse, <4% MXU utilized in-kernel)
    pre0 = data_x.astype(jnp.float32) @ w1 + b1
    pre0_p = _pad2(pre0, n_pad, HID_PAD)          # f32; padded rows never pooled

    vmem = pl.BlockSpec(memory_space=pltpu.MemorySpace.VMEM)   # whole-array, single-buffered

    if n_pad <= FUSED_NPAD_MAX:
        # ---- small/medium graphs: one fused kernel, adjacency read once ----
        probs = pl.pallas_call(
            functools.partial(fused_kernel, out_dim=output_dim),
            out_shape=jax.ShapeDtypeStruct((num_graphs, OUT_PAD), jnp.float32),
            in_specs=[vmem] * 11,
            out_specs=vmem,
            compiler_params=_FLAT_PARAMS,
        )(a_bf, rin, dinv, pa_bf, pre0_p, vecs, w2_p, wrs_p, wrr_p, wc1_p, wc3_p)
        return probs[:, :output_dim]

    # ---- large graphs: row-tiled streaming of the single shared adjacency ----
    grid = (n_pad // TM,)
    act_tile = pl.BlockSpec((TM, HID_PAD), lambda i: (i, 0))
    adj_tile = pl.BlockSpec((TM, n_pad), lambda i: (i, 0))
    col_tile = pl.BlockSpec((TM, 1), lambda i: (i, 0))
    out_tile = pl.BlockSpec((TM, OUT_PAD), lambda i: (i, 0))

    # stage 1: node-wise MLP + RGCN weight epilogue (no adjacency)
    s, u = pl.pallas_call(
        stage1_kernel,
        out_shape=(jax.ShapeDtypeStruct((n_pad, HID_PAD), bf),
                   jax.ShapeDtypeStruct((n_pad, HID_PAD), bf)),
        grid=grid,
        in_specs=[act_tile, vmem, vmem, vmem, vmem],
        out_specs=(act_tile, act_tile),
        compiler_params=_GRID_PARAMS,
    )(pre0_p, vecs, w2_p, wrs_p, wrr_p)

    # stage 2: RGCN aggregation (streams A row slabs) + conv1 weight epilogue
    z = pl.pallas_call(
        stage2_kernel,
        out_shape=jax.ShapeDtypeStruct((n_pad, HID_PAD), bf),
        grid=grid,
        in_specs=[adj_tile, act_tile, col_tile, col_tile, vmem, vmem],
        out_specs=act_tile,
        compiler_params=_GRID_PARAMS,
    )(a_bf, s, rin, dinv, u, wc1_p)

    # stage 3: conv1 aggregation (streams the SAME A) + conv3 weight epilogue
    q = pl.pallas_call(
        stage3_kernel,
        out_shape=jax.ShapeDtypeStruct((n_pad, OUT_PAD), bf),
        grid=grid,
        in_specs=[adj_tile, col_tile, vmem, vmem, vmem],
        out_specs=out_tile,
        compiler_params=_GRID_PARAMS,
    )(a_bf, dinv, z, vecs, wc3_p)

    # head: pooled conv3 + softmax.
    # TODO(synk): tile over graphs / K-reduce over n_pad once num_graphs * n_pad
    #             outgrows whole-VMEM residency.
    probs = pl.pallas_call(
        functools.partial(head_kernel, out_dim=output_dim),
        out_shape=jax.ShapeDtypeStruct((num_graphs, OUT_PAD), jnp.float32),
        in_specs=[vmem, vmem, vmem],
        out_specs=vmem,
        compiler_params=_FLAT_PARAMS,
    )(pa_bf, q, vecs)
    return probs[:, :output_dim]


# --------------------------------------------------------------------------- #
# pure-JAX reference + params
# --------------------------------------------------------------------------- #
def reference_forward(data_x, edge_index, batch, params, num_graphs):
    """Pure-JAX f32 reference mirroring the PyTorch forward (eval mode)."""
    (w1, b1, g1, be1, w2, b2, g2, be2,
     wrs, wrr, brg, wc1, bc1, wc3, bc3) = params
    n = data_x.shape[0]
    src, dst = edge_index[0], edge_index[1]
    A = jnp.zeros((n, n), jnp.float32).at[dst, src].set(1.0)
    A_rel = A / jnp.maximum(A.sum(axis=1, keepdims=True), 1.0)
    A_t = A + jnp.eye(n, dtype=jnp.float32)
    dinv = jax.lax.rsqrt(jnp.maximum(A_t.sum(axis=1), 1e-12))
    A_hat = dinv[:, None] * A_t * dinv[None, :]
    one_hot = (batch[None, :] == jnp.arange(num_graphs)[:, None]).astype(jnp.float32)
    P = one_hot / jnp.maximum(one_hot.sum(axis=1, keepdims=True), 1.0)

    def ln(h, gamma, beta):
        mean = jnp.mean(h, axis=-1, keepdims=True)
        var = jnp.mean((h - mean) ** 2, axis=-1, keepdims=True)
        return (h - mean) * jax.lax.rsqrt(var + LN_EPS) * gamma + beta

    x = data_x.astype(jnp.float32)
    h = jnp.maximum(ln(x @ w1 + b1, g1, be1), 0.0)
    h = jnp.maximum(ln(h @ w2 + b2, g2, be2), 0.0)
    h = jnp.maximum(h @ wrs + (A_rel @ h) @ wrr + brg, 0.0)   # RGCN + relu
    h = jnp.maximum((A_hat @ h) @ wc1 + bc1, 0.0)             # conv1 + relu
    h = (A_hat @ h) @ wc3 + bc3                               # conv3
    g_ = P @ h                                                # global_mean_pool
    g_ = g_ - jnp.max(g_, axis=-1, keepdims=True)
    e = jnp.exp(g_)
    return e / jnp.sum(e, axis=-1, keepdims=True)


def make_params(key, input_dim, output_dim):
    """Deterministic synthetic weights matching the module's shapes (f32, unpadded)."""
    ks = jax.random.split(key, 8)

    def lin(k, fan_in, fan_out):
        return jax.random.normal(k, (fan_in, fan_out), jnp.float32) * 0.1

    w1 = lin(ks[0], input_dim, HID); b1 = jnp.zeros((1, HID), jnp.float32)
    g1 = jnp.ones((1, HID), jnp.float32); be1 = jnp.zeros((1, HID), jnp.float32)
    w2 = lin(ks[1], HID, HID);       b2 = jnp.zeros((1, HID), jnp.float32)
    g2 = jnp.ones((1, HID), jnp.float32); be2 = jnp.zeros((1, HID), jnp.float32)
    wrs = lin(ks[2], HID, HID)                       # RGCN self weight
    wrr = lin(ks[3], HID, HID)                       # RGCN relation-0 weight
    brg = jnp.zeros((1, HID), jnp.float32)
    wc1 = lin(ks[4], HID, HID); bc1 = jnp.zeros((1, HID), jnp.float32)
    wc3 = lin(ks[5], HID, output_dim); bc3 = jnp.zeros((1, output_dim), jnp.float32)
    return (w1, b1, g1, be1, w2, b2, g2, be2,
            wrs, wrr, brg, wc1, bc1, wc3, bc3)


# --------------------------------------------------------------------------- #
# demo
# --------------------------------------------------------------------------- #
def _make_ring_batch(num_graphs, nodes_per_graph):
    src, dst, batch = [], [], []
    for g in range(num_graphs):
        base = g * nodes_per_graph
        for v in range(nodes_per_graph):
            u = base + v
            w = base + (v + 1) % nodes_per_graph
            src += [u, w]
            dst += [w, u]
            batch.append(g)
    edge_index = jnp.stack([jnp.array(src, jnp.int32), jnp.array(dst, jnp.int32)])
    return edge_index, jnp.array(batch, jnp.int32)


if __name__ == "__main__":
    key = jax.random.PRNGKey(0)
    kx1, kx2, kp = jax.random.split(key, 3)

    INPUT_DIM, OUTPUT_DIM = 4, 3
    params = make_params(kp, INPUT_DIM, OUTPUT_DIM)

    def run_case(name, kx, num_graphs, nodes_per_graph):
        n = num_graphs * nodes_per_graph
        edge_index, batch = _make_ring_batch(num_graphs, nodes_per_graph)
        edge_attr = jnp.zeros((edge_index.shape[1], 1), jnp.float32)   # relation 0 only
        x = jax.random.normal(kx, (n, INPUT_DIM), jnp.float32)

        out = gcn_forward(x, edge_index, edge_attr, batch, params,
                          num_graphs, OUTPUT_DIM)
        out = jax.block_until_ready(out)

        ref = reference_forward(x, edge_index, batch, params, num_graphs)
        max_err = float(jnp.max(jnp.abs(out - ref)))

        assert out.shape == (num_graphs, OUTPUT_DIM)
        assert bool(jnp.all(jnp.isfinite(out)))
        assert bool(jnp.allclose(out.sum(axis=-1), 1.0, atol=1e-2))    # softmax rows
        assert max_err < 5e-2, f"{name}: max |pallas - ref| = {max_err}"
        return max_err

    # N=200 -> n_pad=256 <= FUSED_NPAD_MAX -> fused single-kernel path
    run_case("fused", kx1, num_graphs=4, nodes_per_graph=50)
    # N=1200 -> n_pad=1280 -> row-tiled adjacency-streaming path (5 tiles of 256)
    run_case("tiled", kx2, num_graphs=6, nodes_per_graph=200)

    print("KERNEL_OK")
</pallas_src>

<mosaic_0001>
module attributes {stable_mosaic.version = 11 : i64} {
  func.func @fused_kernel(%arg0: memref<256x256xbf16, #tpu.memory_space<vmem>>, %arg1: memref<256x1xf32, #tpu.memory_space<vmem>>, %arg2: memref<256x1xf32, #tpu.memory_space<vmem>>, %arg3: memref<4x256xbf16, #tpu.memory_space<vmem>>, %arg4: memref<256x128xf32, #tpu.memory_space<vmem>>, %arg5: memref<8x128xf32, #tpu.memory_space<vmem>>, %arg6: memref<128x128xbf16, #tpu.memory_space<vmem>>, %arg7: memref<128x128xbf16, #tpu.memory_space<vmem>>, %arg8: memref<128x128xbf16, #tpu.memory_space<vmem>>, %arg9: memref<128x128xbf16, #tpu.memory_space<vmem>>, %arg10: memref<128x128xbf16, #tpu.memory_space<vmem>>, %arg11: memref<4x128xf32, #tpu.memory_space<vmem>>) attributes {dimension_semantics = [], scalar_prefetch = 0 : i64, scratch_operands = 0 : i64, tpu.core_type = #tpu.core_type<tc>} {
    %c0 = arith.constant 0 : index
    %c0_0 = arith.constant 0 : index
    %0 = vector.load %arg5[%c0, %c0_0] : memref<8x128xf32, #tpu.memory_space<vmem>>, vector<8x128xf32>
    %c0_1 = arith.constant 0 : index
    %c0_2 = arith.constant 0 : index
    %1 = vector.load %arg0[%c0_1, %c0_2] : memref<256x256xbf16, #tpu.memory_space<vmem>>, vector<256x256xbf16>
    %c0_3 = arith.constant 0 : index
    %c0_4 = arith.constant 0 : index
    %2 = vector.load %arg1[%c0_3, %c0_4] : memref<256x1xf32, #tpu.memory_space<vmem>>, vector<256x1xf32>
    %c0_5 = arith.constant 0 : index
    %c0_6 = arith.constant 0 : index
    %3 = vector.load %arg2[%c0_5, %c0_6] : memref<256x1xf32, #tpu.memory_space<vmem>>, vector<256x1xf32>
    %c0_7 = arith.constant 0 : index
    %c0_8 = arith.constant 0 : index
    %4 = vector.load %arg4[%c0_7, %c0_8] : memref<256x128xf32, #tpu.memory_space<vmem>>, vector<256x128xf32>
    %c0_9 = arith.constant 0 : index
    %c0_10 = arith.constant 0 : index
    %5 = vector.load %arg6[%c0_9, %c0_10] : memref<128x128xbf16, #tpu.memory_space<vmem>>, vector<128x128xbf16>
    %6 = vector.extract_strided_slice %0 {offsets = [0, 0], sizes = [1, 128], strides = [1, 1]} : vector<8x128xf32> to vector<1x128xf32>
    %7 = vector.extract_strided_slice %0 {offsets = [1, 0], sizes = [1, 128], strides = [1, 1]} : vector<8x128xf32> to vector<1x128xf32>
    %cst = arith.constant dense<0.000000e+00> : vector<256xf32>
    %8 = vector.multi_reduction <add>, %4, %cst [1] : vector<256x128xf32> to vector<256xf32>
    %9 = vector.shape_cast %8 : vector<256xf32> to vector<256x1xf32>
    %cst_11 = arith.constant 0.00999999977 : f32
    %10 = vector.broadcast %cst_11 : f32 to vector<256x1xf32>
    %11 = arith.mulf %9, %10 : vector<256x1xf32>
    %12 = arith.mulf %4, %4 : vector<256x128xf32>
    %cst_12 = arith.constant dense<0.000000e+00> : vector<256xf32>
    %13 = vector.multi_reduction <add>, %12, %cst_12 [1] : vector<256x128xf32> to vector<256xf32>
    %14 = vector.shape_cast %13 : vector<256xf32> to vector<256x1xf32>
    %cst_13 = arith.constant 0.00999999977 : f32
    %15 = vector.broadcast %cst_13 : f32 to vector<256x1xf32>
    %16 = arith.mulf %14, %15 : vector<256x1xf32>
    %17 = arith.mulf %11, %11 : vector<256x1xf32>
    %18 = arith.subf %16, %17 : vector<256x1xf32>
    %cst_14 = arith.constant 0.000000e+00 : f32
    %19 = vector.broadcast %cst_14 : f32 to vector<256x1xf32>
    %20 = arith.maximumf %18, %19 : vector<256x1xf32>
    %21 = vector.broadcast %11 : vector<256x1xf32> to vector<256x128xf32>
    %22 = arith.subf %4, %21 : vector<256x128xf32>
    %cst_15 = arith.constant 9.99999974E-6 : f32
    %23 = vector.broadcast %cst_15 : f32 to vector<256x1xf32>
    %24 = arith.addf %20, %23 : vector<256x1xf32>
    %25 = math.rsqrt %24 : vector<256x1xf32>
    %26 = vector.broadcast %25 : vector<256x1xf32> to vector<256x128xf32>
    %27 = arith.mulf %22, %26 : vector<256x128xf32>
    %28 = vector.broadcast %6 : vector<1x128xf32> to vector<256x128xf32>
    %29 = arith.mulf %27, %28 : vector<256x128xf32>
    %30 = vector.broadcast %7 : vector<1x128xf32> to vector<256x128xf32>
    %31 = arith.addf %29, %30 : vector<256x128xf32>
    %cst_16 = arith.constant 0.000000e+00 : f32
    %32 = vector.broadcast %cst_16 : f32 to vector<256x128xf32>
    %33 = arith.maximumf %31, %32 : vector<256x128xf32>
    %34 = arith.truncf %33 : vector<256x128xf32> to vector<256x128xbf16>
    %cst_17 = arith.constant dense<0.000000e+00> : vector<256x128xf32>
    %35 = tpu.matmul %34, %5, %cst_17 {dimension_numbers = #tpu.dot_dimension_numbers<[1], [0], [0], [1], [0, 0, 1, 1], [], []>} : vector<256x128xbf16>, vector<128x128xbf16>, vector<256x128xf32> -> vector<256x128xf32>
    %36 = vector.extract_strided_slice %0 {offsets = [2, 0], sizes = [1, 128], strides = [1, 1]} : vector<8x128xf32> to vector<1x128xf32>
    %37 = vector.broadcast %36 : vector<1x128xf32> to vector<256x128xf32>
    %38 = arith.addf %35, %37 : vector<256x128xf32>
    %39 = vector.extract_strided_slice %0 {offsets = [3, 0], sizes = [1, 128], strides = [1, 1]} : vector<8x128xf32> to vector<1x128xf32>
    %40 = vector.extract_strided_slice %0 {offsets = [4, 0], sizes = [1, 128], strides = [1, 1]} : vector<8x128xf32> to vector<1x128xf32>
    %cst_18 = arith.constant dense<0.000000e+00> : vector<256xf32>
    %41 = vector.multi_reduction <add>, %38, %cst_18 [1] : vector<256x128xf32> to vector<256xf32>
    %42 = vector.shape_cast %41 : vector<256xf32> to vector<256x1xf32>
    %cst_19 = arith.constant 0.00999999977 : f32
    %43 = vector.broadcast %cst_19 : f32 to vector<256x1xf32>
    %44 = arith.mulf %42, %43 : vector<256x1xf32>
    %45 = arith.mulf %38, %38 : vector<256x128xf32>
    %cst_20 = arith.constant dense<0.000000e+00> : vector<256xf32>
    %46 = vector.multi_reduction <add>, %45, %cst_20 [1] : vector<256x128xf32> to vector<256xf32>
    %47 = vector.shape_cast %46 : vector<256xf32> to vector<256x1xf32>
    %cst_21 = arith.constant 0.00999999977 : f32
    %48 = vector.broadcast %cst_21 : f32 to vector<256x1xf32>
    %49 = arith.mulf %47, %48 : vector<256x1xf32>
    %50 = arith.mulf %44, %44 : vector<256x1xf32>
    %51 = arith.subf %49, %50 : vector<256x1xf32>
    %cst_22 = arith.constant 0.000000e+00 : f32
    %52 = vector.broadcast %cst_22 : f32 to vector<256x1xf32>
    %53 = arith.maximumf %51, %52 : vector<256x1xf32>
    %54 = vector.broadcast %44 : vector<256x1xf32> to vector<256x128xf32>
    %55 = arith.subf %38, %54 : vector<256x128xf32>
    %cst_23 = arith.constant 9.99999974E-6 : f32
    %56 = vector.broadcast %cst_23 : f32 to vector<256x1xf32>
    %57 = arith.addf %53, %56 : vector<256x1xf32>
    %58 = math.rsqrt %57 : vector<256x1xf32>
    %59 = vector.broadcast %58 : vector<256x1xf32> to vector<256x128xf32>
    %60 = arith.mulf %55, %59 : vector<256x128xf32>
    %61 = vector.broadcast %39 : vector<1x128xf32> to vector<256x128xf32>
    %62 = arith.mulf %60, %61 : vector<256x128xf32>
    %63 = vector.broadcast %40 : vector<1x128xf32> to vector<256x128xf32>
    %64 = arith.addf %62, %63 : vector<256x128xf32>
    %cst_24 = arith.constant 0.000000e+00 : f32
    %65 = vector.broadcast %cst_24 : f32 to vector<256x128xf32>
    %66 = arith.maximumf %64, %65 : vector<256x128xf32>
    %67 = arith.truncf %66 : vector<256x128xf32> to vector<256x128xbf16>
    %c0_25 = arith.constant 0 : index
    %c0_26 = arith.constant 0 : index
    %68 = vector.load %arg7[%c0_25, %c0_26] : memref<128x128xbf16, #tpu.memory_space<vmem>>, vector<128x128xbf16>
    %cst_27 = arith.constant dense<0.000000e+00> : vector<256x128xf32>
    %69 = tpu.matmul %67, %68, %cst_27 {dimension_numbers = #tpu.dot_dimension_numbers<[1], [0], [0], [1], [0, 0, 1, 1], [], []>} : vector<256x128xbf16>, vector<128x128xbf16>, vector<256x128xf32> -> vector<256x128xf32>
    %70 = vector.extract_strided_slice %0 {offsets = [5, 0], sizes = [1, 128], strides = [1, 1]} : vector<8x128xf32> to vector<1x128xf32>
    %71 = vector.broadcast %70 : vector<1x128xf32> to vector<256x128xf32>
    %72 = arith.addf %69, %71 : vector<256x128xf32>
    %c0_28 = arith.constant 0 : index
    %c0_29 = arith.constant 0 : index
    %73 = vector.load %arg8[%c0_28, %c0_29] : memref<128x128xbf16, #tpu.memory_space<vmem>>, vector<128x128xbf16>
    %cst_30 = arith.constant dense<0.000000e+00> : vector<256x128xf32>
    %74 = tpu.matmul %67, %73, %cst_30 {dimension_numbers = #tpu.dot_dimension_numbers<[1], [0], [0], [1], [0, 0, 1, 1], [], []>} : vector<256x128xbf16>, vector<128x128xbf16>, vector<256x128xf32> -> vector<256x128xf32>
    %75 = arith.truncf %74 : vector<256x128xf32> to vector<256x128xbf16>
    %cst_31 = arith.constant dense<0.000000e+00> : vector<256x128xf32>
    %76 = tpu.matmul %1, %75, %cst_31 {dimension_numbers = #tpu.dot_dimension_numbers<[1], [0], [0], [1], [0, 0, 1, 1], [], []>} : vector<256x256xbf16>, vector<256x128xbf16>, vector<256x128xf32> -> vector<256x128xf32>
    %77 = vector.broadcast %2 : vector<256x1xf32> to vector<256x128xf32>
    %78 = arith.mulf %77, %76 : vector<256x128xf32>
    %79 = arith.addf %72, %78 : vector<256x128xf32>
    %cst_32 = arith.constant 0.000000e+00 : f32
    %80 = vector.broadcast %cst_32 : f32 to vector<256x128xf32>
    %81 = arith.maximumf %79, %80 : vector<256x128xf32>
    %82 = arith.truncf %81 : vector<256x128xf32> to vector<256x128xbf16>
    %c0_33 = arith.constant 0 : index
    %c0_34 = arith.constant 0 : index
    %83 = vector.load %arg9[%c0_33, %c0_34] : memref<128x128xbf16, #tpu.memory_space<vmem>>, vector<128x128xbf16>
    %cst_35 = arith.constant dense<0.000000e+00> : vector<256x128xf32>
    %84 = tpu.matmul %82, %83, %cst_35 {dimension_numbers = #tpu.dot_dimension_numbers<[1], [0], [0], [1], [0, 0, 1, 1], [], []>} : vector<256x128xbf16>, vector<128x128xbf16>, vector<256x128xf32> -> vector<256x128xf32>
    %85 = vector.broadcast %3 : vector<256x1xf32> to vector<256x128xf32>
    %86 = arith.mulf %85, %84 : vector<256x128xf32>
    %87 = arith.truncf %86 : vector<256x128xf32> to vector<256x128xbf16>
    %cst_36 = arith.constant dense<0.000000e+00> : vector<256x128xf32>
    %88 = tpu.matmul %1, %87, %cst_36 {dimension_numbers = #tpu.dot_dimension_numbers<[1], [0], [0], [1], [0, 0, 1, 1], [], []>} : vector<256x256xbf16>, vector<256x128xbf16>, vector<256x128xf32> -> vector<256x128xf32>
    %89 = arith.addf %88, %86 : vector<256x128xf32>
    %90 = vector.broadcast %3 : vector<256x1xf32> to vector<256x128xf32>
    %91 = arith.mulf %90, %89 : vector<256x128xf32>
    %92 = vector.extract_strided_slice %0 {offsets = [6, 0], sizes = [1, 128], strides = [1, 1]} : vector<8x128xf32> to vector<1x128xf32>
    %93 = vector.broadcast %92 : vector<1x128xf32> to vector<256x128xf32>
    %94 = arith.addf %91, %93 : vector<256x128xf32>
    %cst_37 = arith.constant 0.000000e+00 : f32
    %95 = vector.broadcast %cst_37 : f32 to vector<256x128xf32>
    %96 = arith.maximumf %94, %95 : vector<256x128xf32>
    %97 = arith.truncf %96 : vector<256x128xf32> to vector<256x128xbf16>
    %c0_38 = arith.constant 0 : index
    %c0_39 = arith.constant 0 : index
    %98 = vector.load %arg10[%c0_38, %c0_39] : memref<128x128xbf16, #tpu.memory_space<vmem>>, vector<128x128xbf16>
    %cst_40 = arith.constant dense<0.000000e+00> : vector<256x128xf32>
    %99 = tpu.matmul %97, %98, %cst_40 {dimension_numbers = #tpu.dot_dimension_numbers<[1], [0], [0], [1], [0, 0, 1, 1], [], []>} : vector<256x128xbf16>, vector<128x128xbf16>, vector<256x128xf32> -> vector<256x128xf32>
    %c0_41 = arith.constant 0 : index
    %c0_42 = arith.constant 0 : index
    %100 = vector.load %arg3[%c0_41, %c0_42] : memref<4x256xbf16, #tpu.memory_space<vmem>>, vector<4x256xbf16>
    %101 = arith.truncf %99 : vector<256x128xf32> to vector<256x128xbf16>
    %cst_43 = arith.constant dense<0.000000e+00> : vector<4x128xf32>
    %102 = tpu.matmul %100, %101, %cst_43 {dimension_numbers = #tpu.dot_dimension_numbers<[1], [0], [0], [1], [0, 0, 1, 1], [], []>} : vector<4x256xbf16>, vector<256x128xbf16>, vector<4x128xf32> -> vector<4x128xf32>
    %103 = vector.extract_strided_slice %0 {offsets = [7, 0], sizes = [1, 128], strides = [1, 1]} : vector<8x128xf32> to vector<1x128xf32>
    %104 = vector.broadcast %103 : vector<1x128xf32> to vector<4x128xf32>
    %105 = arith.addf %102, %104 : vector<4x128xf32>
    %106 = tpu.iota {dimensions = array<i32: 1>} : vector<4x128xi32>
    %c3_i32 = arith.constant 3 : i32
    %107 = vector.broadcast %c3_i32 : i32 to vector<4x128xi32>
    %108 = arith.cmpi slt, %106, %107 : vector<4x128xi32>
    %cst_44 = arith.constant -1.000000e+30 : f32
    %109 = vector.broadcast %cst_44 : f32 to vector<4x128xf32>
    %110 = arith.select %108, %105, %109 : vector<4x128xi1>, vector<4x128xf32>
    %cst_45 = arith.constant dense<0xFF800000> : vector<4xf32>
    %111 = vector.multi_reduction <maximumf>, %110, %cst_45 [1] : vector<4x128xf32> to vector<4xf32>
    %112 = vector.shape_cast %111 : vector<4xf32> to vector<4x1xf32>
    %113 = vector.broadcast %112 : vector<4x1xf32> to vector<4x128xf32>
    %114 = arith.subf %110, %113 : vector<4x128xf32>
    %115 = math.exp %114 : vector<4x128xf32>
    %cst_46 = arith.constant dense<0.000000e+00> : vector<4xf32>
    %116 = vector.multi_reduction <add>, %115, %cst_46 [1] : vector<4x128xf32> to vector<4xf32>
    %117 = vector.shape_cast %116 : vector<4xf32> to vector<4x1xf32>
    %118 = tpu.reciprocal %117 {approx = true} : vector<4x1xf32> -> vector<4x1xf32>
    %119 = vector.broadcast %118 : vector<4x1xf32> to vector<4x128xf32>
    %120 = arith.mulf %115, %119 : vector<4x128xf32>
    %c0_47 = arith.constant 0 : index
    %c0_48 = arith.constant 0 : index
    %121 = vector.load %arg11[%c0_47, %c0_48] : memref<4x128xf32, #tpu.memory_space<vmem>>, vector<4x128xf32>
    tpu.vector_store %arg11[%c0_47, %c0_48], %120 {strides = array<i32>} : memref<4x128xf32, #tpu.memory_space<vmem>>, vector<4x128xf32>,
    return
  }
}

</mosaic_0001>

<llo_original>
// kernel: gcn_forward.1
$region0: #{gcn_forward.1}
  #allocation0 [shape = 'u32[]', space=smem, size = 0x4, offset = 0x4, fixed_abs, tag = 'smem constant byte address 0x4 - core index']
  #allocation1 [shape = 'u32[72,128]{1,0:T(1,128)}', space=vmem, size = 0x9000, scoped, tag = 'internal scratch']
  %s0 = inlined_call_operand.vmem [shape: bf16[256,256], index: 0, kind: input, shape index: {}]
  %s1 = inlined_call_operand.vmem [shape: f32[256,1], index: 1, kind: input, shape index: {}]
  %s2 = inlined_call_operand.vmem [shape: f32[256,1], index: 2, kind: input, shape index: {}]
  %s3 = inlined_call_operand.vmem [shape: bf16[4,256], index: 3, kind: input, shape index: {}]
  %s4 = inlined_call_operand.vmem [shape: f32[256,128], index: 4, kind: input, shape index: {}]
  %s5 = inlined_call_operand.vmem [shape: f32[8,128], index: 5, kind: input, shape index: {}]
  %s6 = inlined_call_operand.vmem [shape: bf16[128,128], index: 6, kind: input, shape index: {}]
  %s7 = inlined_call_operand.vmem [shape: bf16[128,128], index: 7, kind: input, shape index: {}]
  %s8 = inlined_call_operand.vmem [shape: bf16[128,128], index: 8, kind: input, shape index: {}]
  %s9 = inlined_call_operand.vmem [shape: bf16[128,128], index: 9, kind: input, shape index: {}]
  %s10 = inlined_call_operand.vmem [shape: bf16[128,128], index: 10, kind: input, shape index: {}]
  %s11 = inlined_call_operand.hbm [shape: f32[4,128], index: 11, kind: output, shape index: {}]
  %s12 = sld [smem:[#allocation0]]
  $region54: #{gcn_forward.1} parent=0
    _
  %s14 = ssub.s32 1, %s12
  %s15 = scalar_select 0, %s14, %s12
  $region1: #{gcn_forward.1} parent=0
    #allocation2 [shape = 'u8[2048]{0}', space=vmem, size = 0x800, scoped, tag = 'output window, operand 0, single buffered']
    #allocation3 [shape = 's32[1]{0}', space=sflag, size = 0x4, scoped, tag = 'scoped memory for gcn_forward.1']
    %16 = vsyncpa [#allocation3], 0
    // Predicated region
    $region2: #{gcn_forward.1} parent=1 // pred_check
      _
    $region3: #{gcn_forward.1} parent=1 // pred_check_branch
      %18 = sbr.rel (0) target = $region5
    $region4: #{gcn_forward.1} parent=1 // pred_region
      _
    $region5: #{gcn_forward.1} parent=1 // pred_fallthru
      _
    // Predicated region
    $region6: #{gcn_forward.1} parent=1 // pred_check
      _
    $region7: #{gcn_forward.1} parent=1 // pred_check_branch
      %20 = sbr.rel (0) target = $region9
    $region8: #{gcn_forward.1} parent=1 // pred_region
      _
    $region9: #{gcn_forward.1} parent=1 // pred_fallthru
      _
    // Predicated region
    $region10: #{gcn_forward.1} parent=1 // pred_check
      _
    $region11: #{gcn_forward.1} parent=1 // pred_check_branch
      %22 = sbr.rel (0) target = $region13
    $region12: #{gcn_forward.1} parent=1 // pred_region
      _
    $region13: #{gcn_forward.1} parent=1 // pred_fallthru
      _
    // Predicated region
    $region14: #{gcn_forward.1} parent=1 // pred_check
      _
    $region15: #{gcn_forward.1} parent=1 // pred_check_branch
      %24 = sbr.rel (0) target = $region17
    $region16: #{gcn_forward.1} parent=1 // pred_region
      _
    $region17: #{gcn_forward.1} parent=1 // pred_fallthru
      _
    // Predicated region
    $region18: #{gcn_forward.1} parent=1 // pred_check
      _
    $region19: #{gcn_forward.1} parent=1 // pred_check_branch
      %26 = sbr.rel (0) target = $region21
    $region20: #{gcn_forward.1} parent=1 // pred_region
      _
    $region21: #{gcn_forward.1} parent=1 // pred_fallthru
      _
    // Predicated region
    $region22: #{gcn_forward.1} parent=1 // pred_check
      _
    $region23: #{gcn_forward.1} parent=1 // pred_check_branch
      %28 = sbr.rel (0) target = $region25
    $region24: #{gcn_forward.1} parent=1 // pred_region
      _
    $region25: #{gcn_forward.1} parent=1 // pred_fallthru
      _
    // Predicated region
    $region26: #{gcn_forward.1} parent=1 // pred_check
      _
    $region27: #{gcn_forward.1} parent=1 // pred_check_branch
      %30 = sbr.rel (0) target = $region29
    $region28: #{gcn_forward.1} parent=1 // pred_region
      _
    $region29: #{gcn_forward.1} parent=1 // pred_fallthru
      _
    // Predicated region
    $region30: #{gcn_forward.1} parent=1 // pred_check
      _
    $region31: #{gcn_forward.1} parent=1 // pred_check_branch
      %32 = sbr.rel (0) target = $region33
    $region32: #{gcn_forward.1} parent=1 // pred_region
      _
    $region33: #{gcn_forward.1} parent=1 // pred_fallthru
      _
    // Predicated region
    $region34: #{gcn_forward.1} parent=1 // pred_check
      _
    $region35: #{gcn_forward.1} parent=1 // pred_check_branch
      %34 = sbr.rel (0) target = $region37
    $region36: #{gcn_forward.1} parent=1 // pred_region
      _
    $region37: #{gcn_forward.1} parent=1 // pred_fallthru
      _
    // Predicated region
    $region38: #{gcn_forward.1} parent=1 // pred_check
      _
    $region39: #{gcn_forward.1} parent=1 // pred_check_branch
      %36 = sbr.rel (0) target = $region41
    $region40: #{gcn_forward.1} parent=1 // pred_region
      _
    $region41: #{gcn_forward.1} parent=1 // pred_fallthru
      _
    // Predicated region
    $region42: #{gcn_forward.1} parent=1 // pred_check
      _
    $region43: #{gcn_forward.1} parent=1 // pred_check_branch
      %38 = sbr.rel (0) target = $region45
    $region44: #{gcn_forward.1} parent=1 // pred_region
      _
    $region45: #{gcn_forward.1} parent=1 // pred_fallthru
      _
    %v39 = vld [vmem:[%s5] sm:$0xff]
    %v40 = vld [vmem:[%s0] sm:$0xff]
    %v41 = vld [vmem:[%s0 + $0x8] sm:$0xff]
    %v42 = vld [vmem:[%s0 + $0x10] sm:$0xff]
    %v43 = vld [vmem:[%s0 + $0x18] sm:$0xff]
    %v44 = vld [vmem:[%s0 + $0x20] sm:$0xff]
    %v45 = vld [vmem:[%s0 + $0x28] sm:$0xff]
    %v46 = vld [vmem:[%s0 + $0x30] sm:$0xff]
    %v47 = vld [vmem:[%s0 + $0x38] sm:$0xff]
    %v48 = vld [vmem:[%s0 + $0x40] sm:$0xff]
    %v49 = vld [vmem:[%s0 + $0x48] sm:$0xff]
    %v50 = vld [vmem:[%s0 + $0x50] sm:$0xff]
    %v51 = vld [vmem:[%s0 + $0x58] sm:$0xff]
    %v52 = vld [vmem:[%s0 + $0x60] sm:$0xff]
    %v53 = vld [vmem:[%s0 + $0x68] sm:$0xff]
    %v54 = vld [vmem:[%s0 + $0x70] sm:$0xff]
    %v55 = vld [vmem:[%s0 + $0x78] sm:$0xff]
    %v56 = vld [vmem:[%s0 + $0x80] sm:$0xff]
    %v57 = vld [vmem:[%s0 + $0x88] sm:$0xff]
    %v58 = vld [vmem:[%s0 + $0x90] sm:$0xff]
    %v59 = vld [vmem:[%s0 + $0x98] sm:$0xff]
    %v60 = vld [vmem:[%s0 + $0xa0] sm:$0xff]
    %v61 = vld [vmem:[%s0 + $0xa8] sm:$0xff]
    %v62 = vld [vmem:[%s0 + $0xb0] sm:$0xff]
    %v63 = vld [vmem:[%s0 + $0xb8] sm:$0xff]
    %v64 = vld [vmem:[%s0 + $0xc0] sm:$0xff]
    %v65 = vld [vmem:[%s0 + $0xc8] sm:$0xff]
    %v66 = vld [vmem:[%s0 + $0xd0] sm:$0xff]
    %v67 = vld [vmem:[%s0 + $0xd8] sm:$0xff]
    %v68 = vld [vmem:[%s0 + $0xe0] sm:$0xff]
    %v69 = vld [vmem:[%s0 + $0xe8] sm:$0xff]
    %v70 = vld [vmem:[%s0 + $0xf0] sm:$0xff]
    %v71 = vld [vmem:[%s0 + $0xf8] sm:$0xff]
    %v72 = vld [vmem:[%s1] sm:$0xff]
    %v73 = vld [vmem:[%s1 + $0x8] sm:$0xff]
    %v74 = vld [vmem:[%s1 + $0x10] sm:$0xff]
    %v75 = vld [vmem:[%s1 + $0x18] sm:$0xff]
    %v76 = vld [vmem:[%s1 + $0x20] sm:$0xff]
    %v77 = vld [vmem:[%s1 + $0x28] sm:$0xff]
    %v78 = vld [vmem:[%s1 + $0x30] sm:$0xff]
    %v79 = vld [vmem:[%s1 + $0x38] sm:$0xff]
    %v80 = vld [vmem:[%s1 + $0x40] sm:$0xff]
    %v81 = vld [vmem:[%s1 + $0x48] sm:$0xff]
    %v82 = vld [vmem:[%s1 + $0x50] sm:$0xff]
    %v83 = vld [vmem:[%s1 + $0x58] sm:$0xff]
    %v84 = vld [vmem:[%s1 + $0x60] sm:$0xff]
    %v85 = vld [vmem:[%s1 + $0x68] sm:$0xff]
    %v86 = vld [vmem:[%s1 + $0x70] sm:$0xff]
    %v87 = vld [vmem:[%s1 + $0x78] sm:$0xff]
    %v88 = vld [vmem:[%s1 + $0x80] sm:$0xff]
    %v89 = vld [vmem:[%s1 + $0x88] sm:$0xff]
    %v90 = vld [vmem:[%s1 + $0x90] sm:$0xff]
    %v91 = vld [vmem:[%s1 + $0x98] sm:$0xff]
    %v92 = vld [vmem:[%s1 + $0xa0] sm:$0xff]
    %v93 = vld [vmem:[%s1 + $0xa8] sm:$0xff]
    %v94 = vld [vmem:[%s1 + $0xb0] sm:$0xff]
    %v95 = vld [vmem:[%s1 + $0xb8] sm:$0xff]
    %v96 = vld [vmem:[%s1 + $0xc0] sm:$0xff]
    %v97 = vld [vmem:[%s1 + $0xc8] sm:$0xff]
    %v98 = vld [vmem:[%s1 + $0xd0] sm:$0xff]
    %v99 = vld [vmem:[%s1 + $0xd8] sm:$0xff]
    %v100 = vld [vmem:[%s1 + $0xe0] sm:$0xff]
    %v101 = vld [vmem:[%s1 + $0xe8] sm:$0xff]
    %v102 = vld [vmem:[%s1 + $0xf0] sm:$0xff]
    %v103 = vld [vmem:[%s1 + $0xf8] sm:$0xff]
    %v104 = vld [vmem:[%s2] sm:$0xff]
    %v105 = vld [vmem:[%s2 + $0x8] sm:$0xff]
    %v106 = vld [vmem:[%s2 + $0x10] sm:$0xff]
    %v107 = vld [vmem:[%s2 + $0x18] sm:$0xff]
    %v108 = vld [vmem:[%s2 + $0x20] sm:$0xff]
    %v109 = vld [vmem:[%s2 + $0x28] sm:$0xff]
    %v110 = vld [vmem:[%s2 + $0x30] sm:$0xff]
    %v111 = vld [vmem:[%s2 + $0x38] sm:$0xff]
    %v112 = vld [vmem:[%s2 + $0x40] sm:$0xff]
    %v113 = vld [vmem:[%s2 + $0x48] sm:$0xff]
    %v114 = vld [vmem:[%s2 + $0x50] sm:$0xff]
    %v115 = vld [vmem:[%s2 + $0x58] sm:$0xff]
    %v116 = vld [vmem:[%s2 + $0x60] sm:$0xff]
    %v117 = vld [vmem:[%s2 + $0x68] sm:$0xff]
    %v118 = vld [vmem:[%s2 + $0x70] sm:$0xff]
    %v119 = vld [vmem:[%s2 + $0x78] sm:$0xff]
    %v120 = vld [vmem:[%s2 + $0x80] sm:$0xff]
    %v121 = vld [vmem:[%s2 + $0x88] sm:$0xff]
    %v122 = vld [vmem:[%s2 + $0x90] sm:$0xff]
    %v123 = vld [vmem:[%s2 + $0x98] sm:$0xff]
    %v124 = vld [vmem:[%s2 + $0xa0] sm:$0xff]
    %v125 = vld [vmem:[%s2 + $0xa8] sm:$0xff]
    %v126 = vld [vmem:[%s2 + $0xb0] sm:$0xff]
    %v127 = vld [vmem:[%s2 + $0xb8] sm:$0xff]
    %v128 = vld [vmem:[%s2 + $0xc0] sm:$0xff]
    %v129 = vld [vmem:[%s2 + $0xc8] sm:$0xff]
    %v130 = vld [vmem:[%s2 + $0xd0] sm:$0xff]
    %v131 = vld [vmem:[%s2 + $0xd8] sm:$0xff]
    %v132 = vld [vmem:[%s2 + $0xe0] sm:$0xff]
    %v133 = vld [vmem:[%s2 + $0xe8] sm:$0xff]
    %v134 = vld [vmem:[%s2 + $0xf0] sm:$0xff]
    %v135 = vld [vmem:[%s2 + $0xf8] sm:$0xff]
    %v136 = vld [vmem:[%s4] sm:$0xff]
    %v137 = vld [vmem:[%s4 + $0x8] sm:$0xff]
    %v138 = vld [vmem:[%s4 + $0x10] sm:$0xff]
    %v139 = vld [vmem:[%s4 + $0x18] sm:$0xff]
    %v140 = vld [vmem:[%s4 + $0x20] sm:$0xff]
    %v141 = vld [vmem:[%s4 + $0x28] sm:$0xff]
    %v142 = vld [vmem:[%s4 + $0x30] sm:$0xff]
    %v143 = vld [vmem:[%s4 + $0x38] sm:$0xff]
    %v144 = vld [vmem:[%s4 + $0x40] sm:$0xff]
    %v145 = vld [vmem:[%s4 + $0x48] sm:$0xff]
    %v146 = vld [vmem:[%s4 + $0x50] sm:$0xff]
    %v147 = vld [vmem:[%s4 + $0x58] sm:$0xff]
    %v148 = vld [vmem:[%s4 + $0x60] sm:$0xff]
    %v149 = vld [vmem:[%s4 + $0x68] sm:$0xff]
    %v150 = vld [vmem:[%s4 + $0x70] sm:$0xff]
    %v151 = vld [vmem:[%s4 + $0x78] sm:$0xff]
    %v152 = vld [vmem:[%s4 + $0x80] sm:$0xff]
    %v153 = vld [vmem:[%s4 + $0x88] sm:$0xff]
    %v154 = vld [vmem:[%s4 + $0x90] sm:$0xff]
    %v155 = vld [vmem:[%s4 + $0x98] sm:$0xff]
    %v156 = vld [vmem:[%s4 + $0xa0] sm:$0xff]
    %v157 = vld [vmem:[%s4 + $0xa8] sm:$0xff]
    %v158 = vld [vmem:[%s4 + $0xb0] sm:$0xff]
    %v159 = vld [vmem:[%s4 + $0xb8] sm:$0xff]
    %v160 = vld [vmem:[%s4 + $0xc0] sm:$0xff]
    %v161 = vld [vmem:[%s4 + $0xc8] sm:$0xff]
    %v162 = vld [vmem:[%s4 + $0xd0] sm:$0xff]
    %v163 = vld [vmem:[%s4 + $0xd8] sm:$0xff]
    %v164 = vld [vmem:[%s4 + $0xe0] sm:$0xff]
    %v165 = vld [vmem:[%s4 + $0xe8] sm:$0xff]
    %v166 = vld [vmem:[%s4 + $0xf0] sm:$0xff]
    %v167 = vld [vmem:[%s4 + $0xf8] sm:$0xff]
    %v168 = vld [vmem:[%s6] sm:$0xf]
    %v169 = vld [vmem:[%s6 + $0x4] sm:$0xf]
    %v170 = vld [vmem:[%s6 + $0x8] sm:$0xf]
    %v171 = vld [vmem:[%s6 + $0xc] sm:$0xf]
    %v172 = vld [vmem:[%s6 + $0x10] sm:$0xf]
    %v173 = vld [vmem:[%s6 + $0x14] sm:$0xf]
    %v174 = vld [vmem:[%s6 + $0x18] sm:$0xf]
    %v175 = vld [vmem:[%s6 + $0x1c] sm:$0xf]
    %v176 = vld [vmem:[%s6 + $0x20] sm:$0xf]
    %v177 = vld [vmem:[%s6 + $0x24] sm:$0xf]
    %v178 = vld [vmem:[%s6 + $0x28] sm:$0xf]
    %v179 = vld [vmem:[%s6 + $0x2c] sm:$0xf]
    %v180 = vld [vmem:[%s6 + $0x30] sm:$0xf]
    %v181 = vld [vmem:[%s6 + $0x34] sm:$0xf]
    %v182 = vld [vmem:[%s6 + $0x38] sm:$0xf]
    %v183 = vld [vmem:[%s6 + $0x3c] sm:$0xf]
    %184 = vadd.xlane.f32.xlu0 %v136
    %v185 = vpop.xlane.xlu0 %184
    %186 = vadd.xlane.f32.xlu0 %v137
    %v187 = vpop.xlane.xlu0 %186
    %188 = vadd.xlane.f32.xlu0 %v138
    %v189 = vpop.xlane.xlu0 %188
    %190 = vadd.xlane.f32.xlu0 %v139
    %v191 = vpop.xlane.xlu0 %190
    %192 = vadd.xlane.f32.xlu0 %v140
    %v193 = vpop.xlane.xlu0 %192
    %194 = vadd.xlane.f32.xlu0 %v141
    %v195 = vpop.xlane.xlu0 %194
    %196 = vadd.xlane.f32.xlu0 %v142
    %v197 = vpop.xlane.xlu0 %196
    %198 = vadd.xlane.f32.xlu0 %v143
    %v199 = vpop.xlane.xlu0 %198
    %200 = vadd.xlane.f32.xlu0 %v144
    %v201 = vpop.xlane.xlu0 %200
    %202 = vadd.xlane.f32.xlu0 %v145
    %v203 = vpop.xlane.xlu0 %202
    %204 = vadd.xlane.f32.xlu0 %v146
    %v205 = vpop.xlane.xlu0 %204
    %206 = vadd.xlane.f32.xlu0 %v147
    %v207 = vpop.xlane.xlu0 %206
    %208 = vadd.xlane.f32.xlu0 %v148
    %v209 = vpop.xlane.xlu0 %208
    %210 = vadd.xlane.f32.xlu0 %v149
    %v211 = vpop.xlane.xlu0 %210
    %212 = vadd.xlane.f32.xlu0 %v150
    %v213 = vpop.xlane.xlu0 %212
    %214 = vadd.xlane.f32.xlu0 %v151
    %v215 = vpop.xlane.xlu0 %214
    %216 = vadd.xlane.f32.xlu0 %v152
    %v217 = vpop.xlane.xlu0 %216
    %218 = vadd.xlane.f32.xlu0 %v153
    %v219 = vpop.xlane.xlu0 %218
    %220 = vadd.xlane.f32.xlu0 %v154
    %v221 = vpop.xlane.xlu0 %220
    %222 = vadd.xlane.f32.xlu0 %v155
    %v223 = vpop.xlane.xlu0 %222
    %224 = vadd.xlane.f32.xlu0 %v156
    %v225 = vpop.xlane.xlu0 %224
    %226 = vadd.xlane.f32.xlu0 %v157
    %v227 = vpop.xlane.xlu0 %226
    %228 = vadd.xlane.f32.xlu0 %v158
    %v229 = vpop.xlane.xlu0 %228
    %230 = vadd.xlane.f32.xlu0 %v159
    %v231 = vpop.xlane.xlu0 %230
    %232 = vadd.xlane.f32.xlu0 %v160
    %v233 = vpop.xlane.xlu0 %232
    %234 = vadd.xlane.f32.xlu0 %v161
    %v235 = vpop.xlane.xlu0 %234
    %236 = vadd.xlane.f32.xlu0 %v162
    %v237 = vpop.xlane.xlu0 %236
    %238 = vadd.xlane.f32.xlu0 %v163
    %v239 = vpop.xlane.xlu0 %238
    %240 = vadd.xlane.f32.xlu0 %v164
    %v241 = vpop.xlane.xlu0 %240
    %242 = vadd.xlane.f32.xlu0 %v165
    %v243 = vpop.xlane.xlu0 %242
    %244 = vadd.xlane.f32.xlu0 %v166
    %v245 = vpop.xlane.xlu0 %244
    %246 = vadd.xlane.f32.xlu0 %v167
    %v247 = vpop.xlane.xlu0 %246
    %v248 = vmul.f32 %v185, 0.01
    %v249 = vmul.f32 %v187, 0.01
    %v250 = vmul.f32 %v189, 0.01
    %v251 = vmul.f32 %v191, 0.01
    %v252 = vmul.f32 %v193, 0.01
    %v253 = vmul.f32 %v195, 0.01
    %v254 = vmul.f32 %v197, 0.01
    %v255 = vmul.f32 %v199, 0.01
    %v256 = vmul.f32 %v201, 0.01
    %v257 = vmul.f32 %v203, 0.01
    %v258 = vmul.f32 %v205, 0.01
    %v259 = vmul.f32 %v207, 0.01
    %v260 = vmul.f32 %v209, 0.01
    %v261 = vmul.f32 %v211, 0.01
    %v262 = vmul.f32 %v213, 0.01
    %v263 = vmul.f32 %v215, 0.01
    %v264 = vmul.f32 %v217, 0.01
    %v265 = vmul.f32 %v219, 0.01
    %v266 = vmul.f32 %v221, 0.01
    %v267 = vmul.f32 %v223, 0.01
    %v268 = vmul.f32 %v225, 0.01
    %v269 = vmul.f32 %v227, 0.01
    %v270 = vmul.f32 %v229, 0.01
    %v271 = vmul.f32 %v231, 0.01
    %v272 = vmul.f32 %v233, 0.01
    %v273 = vmul.f32 %v235, 0.01
    %v274 = vmul.f32 %v237, 0.01
    %v275 = vmul.f32 %v239, 0.01
    %v276 = vmul.f32 %v241, 0.01
    %v277 = vmul.f32 %v243, 0.01
    %v278 = vmul.f32 %v245, 0.01
    %v279 = vmul.f32 %v247, 0.01
    %v280 = vmul.f32 %v136, %v136
    %v281 = vmul.f32 %v137, %v137
    %v282 = vmul.f32 %v138, %v138
    %v283 = vmul.f32 %v139, %v139
    %v284 = vmul.f32 %v140, %v140
    %v285 = vmul.f32 %v141, %v141
    %v286 = vmul.f32 %v142, %v142
    %v287 = vmul.f32 %v143, %v143
    %v288 = vmul.f32 %v144, %v144
    %v289 = vmul.f32 %v145, %v145
    %v290 = vmul.f32 %v146, %v146
    %v291 = vmul.f32 %v147, %v147
    %v292 = vmul.f32 %v148, %v148
    %v293 = vmul.f32 %v149, %v149
    %v294 = vmul.f32 %v150, %v150
    %v295 = vmul.f32 %v151, %v151
    %v296 = vmul.f32 %v152, %v152
    %v297 = vmul.f32 %v153, %v153
    %v298 = vmul.f32 %v154, %v154
    %v299 = vmul.f32 %v155, %v155
    %v300 = vmul.f32 %v156, %v156
    %v301 = vmul.f32 %v157, %v157
    %v302 = vmul.f32 %v158, %v158
    %v303 = vmul.f32 %v159, %v159
    %v304 = vmul.f32 %v160, %v160
    %v305 = vmul.f32 %v161, %v161
    %v306 = vmul.f32 %v162, %v162
    %v307 = vmul.f32 %v163, %v163
    %v308 = vmul.f32 %v164, %v164
    %v309 = vmul.f32 %v165, %v165
    %v310 = vmul.f32 %v166, %v166
    %v311 = vmul.f32 %v167, %v167
    %312 = vadd.xlane.f32.xlu0 %v280
    %v313 = vpop.xlane.xlu0 %312
    %314 = vadd.xlane.f32.xlu0 %v281
    %v315 = vpop.xlane.xlu0 %314
    %316 = vadd.xlane.f32.xlu0 %v282
    %v317 = vpop.xlane.xlu0 %316
    %318 = vadd.xlane.f32.xlu0 %v283
    %v319 = vpop.xlane.xlu0 %318
    %320 = vadd.xlane.f32.xlu0 %v284
    %v321 = vpop.xlane.xlu0 %320
    %322 = vadd.xlane.f32.xlu0 %v285
    %v323 = vpop.xlane.xlu0 %322
    %324 = vadd.xlane.f32.xlu0 %v286
    %v325 = vpop.xlane.xlu0 %324
    %326 = vadd.xlane.f32.xlu0 %v287
    %v327 = vpop.xlane.xlu0 %326
    %328 = vadd.xlane.f32.xlu0 %v288
    %v329 = vpop.xlane.xlu0 %328
    %330 = vadd.xlane.f32.xlu0 %v289
    %v331 = vpop.xlane.xlu0 %330
    %332 = vadd.xlane.f32.xlu0 %v290
    %v333 = vpop.xlane.xlu0 %332
    %334 = vadd.xlane.f32.xlu0 %v291
    %v335 = vpop.xlane.xlu0 %334
    %336 = vadd.xlane.f32.xlu0 %v292
    %v337 = vpop.xlane.xlu0 %336
    %338 = vadd.xlane.f32.xlu0 %v293
    %v339 = vpop.xlane.xlu0 %338
    %340 = vadd.xlane.f32.xlu0 %v294
    %v341 = vpop.xlane.xlu0 %340
    %342 = vadd.xlane.f32.xlu0 %v295
    %v343 = vpop.xlane.xlu0 %342
    %344 = vadd.xlane.f32.xlu0 %v296
    %v345 = vpop.xlane.xlu0 %344
    %346 = vadd.xlane.f32.xlu0 %v297
    %v347 = vpop.xlane.xlu0 %346
    %348 = vadd.xlane.f32.xlu0 %v298
    %v349 = vpop.xlane.xlu0 %348
    %350 = vadd.xlane.f32.xlu0 %v299
    %v351 = vpop.xlane.xlu0 %350
    %352 = vadd.xlane.f32.xlu0 %v300
    %v353 = vpop.xlane.xlu0 %352
    %354 = vadd.xlane.f32.xlu0 %v301
    %v355 = vpop.xlane.xlu0 %354
    %356 = vadd.xlane.f32.xlu0 %v302
    %v357 = vpop.xlane.xlu0 %356
    %358 = vadd.xlane.f32.xlu0 %v303
    %v359 = vpop.xlane.xlu0 %358
    %360 = vadd.xlane.f32.xlu0 %v304
    %v361 = vpop.xlane.xlu0 %360
    %362 = vadd.xlane.f32.xlu0 %v305
    %v363 = vpop.xlane.xlu0 %362
    %364 = vadd.xlane.f32.xlu0 %v306
    %v365 = vpop.xlane.xlu0 %364
    %366 = vadd.xlane.f32.xlu0 %v307
    %v367 = vpop.xlane.xlu0 %366
    %368 = vadd.xlane.f32.xlu0 %v308
    %v369 = vpop.xlane.xlu0 %368
    %370 = vadd.xlane.f32.xlu0 %v309
    %v371 = vpop.xlane.xlu0 %370
    %372 = vadd.xlane.f32.xlu0 %v310
    %v373 = vpop.xlane.xlu0 %372
    %374 = vadd.xlane.f32.xlu0 %v311
    %v375 = vpop.xlane.xlu0 %374
    %v376 = vmul.f32 %v313, 0.01
    %v377 = vmul.f32 %v315, 0.01
    %v378 = vmul.f32 %v317, 0.01
    %v379 = vmul.f32 %v319, 0.01
    %v380 = vmul.f32 %v321, 0.01
    %v381 = vmul.f32 %v323, 0.01
    %v382 = vmul.f32 %v325, 0.01
    %v383 = vmul.f32 %v327, 0.01
    %v384 = vmul.f32 %v329, 0.01
    %v385 = vmul.f32 %v331, 0.01
    %v386 = vmul.f32 %v333, 0.01
    %v387 = vmul.f32 %v335, 0.01
    %v388 = vmul.f32 %v337, 0.01
    %v389 = vmul.f32 %v339, 0.01
    %v390 = vmul.f32 %v341, 0.01
    %v391 = vmul.f32 %v343, 0.01
    %v392 = vmul.f32 %v345, 0.01
    %v393 = vmul.f32 %v347, 0.01
    %v394 = vmul.f32 %v349, 0.01
    %v395 = vmul.f32 %v351, 0.01
    %v396 = vmul.f32 %v353, 0.01
    %v397 = vmul.f32 %v355, 0.01
    %v398 = vmul.f32 %v357, 0.01
    %v399 = vmul.f32 %v359, 0.01
    %v400 = vmul.f32 %v361, 0.01
    %v401 = vmul.f32 %v363, 0.01
    %v402 = vmul.f32 %v365, 0.01
    %v403 = vmul.f32 %v367, 0.01
    %v404 = vmul.f32 %v369, 0.01
    %v405 = vmul.f32 %v371, 0.01
    %v406 = vmul.f32 %v373, 0.01
    %v407 = vmul.f32 %v375, 0.01
    %v408 = vmul.f32 %v248, %v248
    %v409 = vmul.f32 %v249, %v249
    %v410 = vmul.f32 %v250, %v250
    %v411 = vmul.f32 %v251, %v251
    %v412 = vmul.f32 %v252, %v252
    %v413 = vmul.f32 %v253, %v253
    %v414 = vmul.f32 %v254, %v254
    %v415 = vmul.f32 %v255, %v255
    %v416 = vmul.f32 %v256, %v256
    %v417 = vmul.f32 %v257, %v257
    %v418 = vmul.f32 %v258, %v258
    %v419 = vmul.f32 %v259, %v259
    %v420 = vmul.f32 %v260, %v260
    %v421 = vmul.f32 %v261, %v261
    %v422 = vmul.f32 %v262, %v262
    %v423 = vmul.f32 %v263, %v263
    %v424 = vmul.f32 %v264, %v264
    %v425 = vmul.f32 %v265, %v265
    %v426 = vmul.f32 %v266, %v266
    %v427 = vmul.f32 %v267, %v267
    %v428 = vmul.f32 %v268, %v268
    %v429 = vmul.f32 %v269, %v269
    %v430 = vmul.f32 %v270, %v270
    %v431 = vmul.f32 %v271, %v271
    %v432 = vmul.f32 %v272, %v272
    %v433 = vmul.f32 %v273, %v273
    %v434 = vmul.f32 %v274, %v274
    %v435 = vmul.f32 %v275, %v275
    %v436 = vmul.f32 %v276, %v276
    %v437 = vmul.f32 %v277, %v277
    %v438 = vmul.f32 %v278, %v278
    %v439 = vmul.f32 %v279, %v279
    %v440 = vsub.f32 %v376, %v408
    %v441 = vsub.f32 %v377, %v409
    %v442 = vsub.f32 %v378, %v410
    %v443 = vsub.f32 %v379, %v411
    %v444 = vsub.f32 %v380, %v412
    %v445 = vsub.f32 %v381, %v413
    %v446 = vsub.f32 %v382, %v414
    %v447 = vsub.f32 %v383, %v415
    %v448 = vsub.f32 %v384, %v416
    %v449 = vsub.f32 %v385, %v417
    %v450 = vsub.f32 %v386, %v418
    %v451 = vsub.f32 %v387, %v419
    %v452 = vsub.f32 %v388, %v420
    %v453 = vsub.f32 %v389, %v421
    %v454 = vsub.f32 %v390, %v422
    %v455 = vsub.f32 %v391, %v423
    %v456 = vsub.f32 %v392, %v424
    %v457 = vsub.f32 %v393, %v425
    %v458 = vsub.f32 %v394, %v426
    %v459 = vsub.f32 %v395, %v427
    %v460 = vsub.f32 %v396, %v428
    %v461 = vsub.f32 %v397, %v429
    %v462 = vsub.f32 %v398, %v430
    %v463 = vsub.f32 %v399, %v431
    %v464 = vsub.f32 %v400, %v432
    %v465 = vsub.f32 %v401, %v433
    %v466 = vsub.f32 %v402, %v434
    %v467 = vsub.f32 %v403, %v435
    %v468 = vsub.f32 %v404, %v436
    %v469 = vsub.f32 %v405, %v437
    %v470 = vsub.f32 %v406, %v438
    %v471 = vsub.f32 %v407, %v439
    %v472 = vmax.f32 %v440, 0.0
    %v473 = vmax.f32 %v441, 0.0
    %v474 = vmax.f32 %v442, 0.0
    %v475 = vmax.f32 %v443, 0.0
    %v476 = vmax.f32 %v444, 0.0
    %v477 = vmax.f32 %v445, 0.0
    %v478 = vmax.f32 %v446, 0.0
    %v479 = vmax.f32 %v447, 0.0
    %v480 = vmax.f32 %v448, 0.0
    %v481 = vmax.f32 %v449, 0.0
    %v482 = vmax.f32 %v450, 0.0
    %v483 = vmax.f32 %v451, 0.0
    %v484 = vmax.f32 %v452, 0.0
    %v485 = vmax.f32 %v453, 0.0
    %v486 = vmax.f32 %v454, 0.0
    %v487 = vmax.f32 %v455, 0.0
    %v488 = vmax.f32 %v456, 0.0
    %v489 = vmax.f32 %v457, 0.0
    %v490 = vmax.f32 %v458, 0.0
    %v491 = vmax.f32 %v459, 0.0
    %v492 = vmax.f32 %v460, 0.0
    %v493 = vmax.f32 %v461, 0.0
    %v494 = vmax.f32 %v462, 0.0
    %v495 = vmax.f32 %v463, 0.0
    %v496 = vmax.f32 %v464, 0.0
    %v497 = vmax.f32 %v465, 0.0
    %v498 = vmax.f32 %v466, 0.0
    %v499 = vmax.f32 %v467, 0.0
    %v500 = vmax.f32 %v468, 0.0
    %v501 = vmax.f32 %v469, 0.0
    %v502 = vmax.f32 %v470, 0.0
    %v503 = vmax.f32 %v471, 0.0
    %v504 = vsub.f32 %v136, %v248
    %v505 = vsub.f32 %v137, %v249
    %v506 = vsub.f32 %v138, %v250
    %v507 = vsub.f32 %v139, %v251
    %v508 = vsub.f32 %v140, %v252
    %v509 = vsub.f32 %v141, %v253
    %v510 = vsub.f32 %v142, %v254
    %v511 = vsub.f32 %v143, %v255
    %v512 = vsub.f32 %v144, %v256
    %v513 = vsub.f32 %v145, %v257
    %v514 = vsub.f32 %v146, %v258
    %v515 = vsub.f32 %v147, %v259
    %v516 = vsub.f32 %v148, %v260
    %v517 = vsub.f32 %v149, %v261
    %v518 = vsub.f32 %v150, %v262
    %v519 = vsub.f32 %v151, %v263
    %v520 = vsub.f32 %v152, %v264
    %v521 = vsub.f32 %v153, %v265
    %v522 = vsub.f32 %v154, %v266
    %v523 = vsub.f32 %v155, %v267
    %v524 = vsub.f32 %v156, %v268
    %v525 = vsub.f32 %v157, %v269
    %v526 = vsub.f32 %v158, %v270
    %v527 = vsub.f32 %v159, %v271
    %v528 = vsub.f32 %v160, %v272
    %v529 = vsub.f32 %v161, %v273
    %v530 = vsub.f32 %v162, %v274
    %v531 = vsub.f32 %v163, %v275
    %v532 = vsub.f32 %v164, %v276
    %v533 = vsub.f32 %v165, %v277
    %v534 = vsub.f32 %v166, %v278
    %v535 = vsub.f32 %v167, %v279
    %v536 = vadd.f32 %v472, 1e-05
    %v537 = vadd.f32 %v473, 1e-05
    %v538 = vadd.f32 %v474, 1e-05
    %v539 = vadd.f32 %v475, 1e-05
    %v540 = vadd.f32 %v476, 1e-05
    %v541 = vadd.f32 %v477, 1e-05
    %v542 = vadd.f32 %v478, 1e-05
    %v543 = vadd.f32 %v479, 1e-05
    %v544 = vadd.f32 %v480, 1e-05
    %v545 = vadd.f32 %v481, 1e-05
    %v546 = vadd.f32 %v482, 1e-05
    %v547 = vadd.f32 %v483, 1e-05
    %v548 = vadd.f32 %v484, 1e-05
    %v549 = vadd.f32 %v485, 1e-05
    %v550 = vadd.f32 %v486, 1e-05
    %v551 = vadd.f32 %v487, 1e-05
    %v552 = vadd.f32 %v488, 1e-05
    %v553 = vadd.f32 %v489, 1e-05
    %v554 = vadd.f32 %v490, 1e-05
    %v555 = vadd.f32 %v491, 1e-05
    %v556 = vadd.f32 %v492, 1e-05
    %v557 = vadd.f32 %v493, 1e-05
    %v558 = vadd.f32 %v494, 1e-05
    %v559 = vadd.f32 %v495, 1e-05
    %v560 = vadd.f32 %v496, 1e-05
    %v561 = vadd.f32 %v497, 1e-05
    %v562 = vadd.f32 %v498, 1e-05
    %v563 = vadd.f32 %v499, 1e-05
    %v564 = vadd.f32 %v500, 1e-05
    %v565 = vadd.f32 %v501, 1e-05
    %v566 = vadd.f32 %v502, 1e-05
    %v567 = vadd.f32 %v503, 1e-05
    %v568 = vrsqrt.pop %v536
    %v569 = vmul.f32 %v568, %v536
    %v570 = vmul.f32 %v569, %v568
    %v571 = vmul.f32 0.5, %v570
    %v572 = vsub.f32 1.5, %v571
    %v573 = vmul.f32 %v568, %v572
    %vm574 = vweird.f32 %v536
    %vm575 = vweird.f32 %v568
    %vm576 = vmor %vm574, %vm575
    %v577 = vsel %vm576, %v568, %v573
    %v578 = vrsqrt.pop %v537
    %v579 = vmul.f32 %v578, %v537
    %v580 = vmul.f32 %v579, %v578
    %v581 = vmul.f32 0.5, %v580
    %v582 = vsub.f32 1.5, %v581
    %v583 = vmul.f32 %v578, %v582
    %vm584 = vweird.f32 %v537
    %vm585 = vweird.f32 %v578
    %vm586 = vmor %vm584, %vm585
    %v587 = vsel %vm586, %v578, %v583
    %v588 = vrsqrt.pop %v538
    %v589 = vmul.f32 %v588, %v538
    %v590 = vmul.f32 %v589, %v588
    %v591 = vmul.f32 0.5, %v590
    %v592 = vsub.f32 1.5, %v591
    %v593 = vmul.f32 %v588, %v592
    %vm594 = vweird.f32 %v538
    %vm595 = vweird.f32 %v588
    %vm596 = vmor %vm594, %vm595
    %v597 = vsel %vm596, %v588, %v593
    %v598 = vrsqrt.pop %v539
    %v599 = vmul.f32 %v598, %v539
    %v600 = vmul.f32 %v599, %v598
    %v601 = vmul.f32 0.5, %v600
    %v602 = vsub.f32 1.5, %v601
    %v603 = vmul.f32 %v598, %v602
    %vm604 = vweird.f32 %v539
    %vm605 = vweird.f32 %v598
    %vm606 = vmor %vm604, %vm605
    %v607 = vsel %vm606, %v598, %v603
    %v608 = vrsqrt.pop %v540
    %v609 = vmul.f32 %v608, %v540
    %v610 = vmul.f32 %v609, %v608
    %v611 = vmul.f32 0.5, %v610
    %v612 = vsub.f32 1.5, %v611
    %v613 = vmul.f32 %v608, %v612
    %vm614 = vweird.f32 %v540
    %vm615 = vweird.f32 %v608
    %vm616 = vmor %vm614, %vm615
    %v617 = vsel %vm616, %v608, %v613
    %v618 = vrsqrt.pop %v541
    %v619 = vmul.f32 %v618, %v541
    %v620 = vmul.f32 %v619, %v618
    %v621 = vmul.f32 0.5, %v620
    %v622 = vsub.f32 1.5, %v621
    %v623 = vmul.f32 %v618, %v622
    %vm624 = vweird.f32 %v541
    %vm625 = vweird.f32 %v618
    %vm626 = vmor %vm624, %vm625
    %v627 = vsel %vm626, %v618, %v623
    %v628 = vrsqrt.pop %v542
    %v629 = vmul.f32 %v628, %v542
    %v630 = vmul.f32 %v629, %v628
    %v631 = vmul.f32 0.5, %v630
    %v632 = vsub.f32 1.5, %v631
    %v633 = vmul.f32 %v628, %v632
    %vm634 = vweird.f32 %v542
    %vm635 = vweird.f32 %v628
    %vm636 = vmor %vm634, %vm635
    %v637 = vsel %vm636, %v628, %v633
    %v638 = vrsqrt.pop %v543
    %v639 = vmul.f32 %v638, %v543
    %v640 = vmul.f32 %v639, %v638
    %v641 = vmul.f32 0.5, %v640
    %v642 = vsub.f32 1.5, %v641
    %v643 = vmul.f32 %v638, %v642
    %vm644 = vweird.f32 %v543
    %vm645 = vweird.f32 %v638
    %vm646 = vmor %vm644, %vm645
    %v647 = vsel %vm646, %v638, %v643
    %v648 = vrsqrt.pop %v544
    %v649 = vmul.f32 %v648, %v544
    %v650 = vmul.f32 %v649, %v648
    %v651 = vmul.f32 0.5, %v650
    %v652 = vsub.f32 1.5, %v651
    %v653 = vmul.f32 %v648, %v652
    %vm654 = vweird.f32 %v544
    %vm655 = vweird.f32 %v648
    %vm656 = vmor %vm654, %vm655
    %v657 = vsel %vm656, %v648, %v653
    %v658 = vrsqrt.pop %v545
    %v659 = vmul.f32 %v658, %v545
    %v660 = vmul.f32 %v659, %v658
    %v661 = vmul.f32 0.5, %v660
    %v662 = vsub.f32 1.5, %v661
    %v663 = vmul.f32 %v658, %v662
    %vm664 = vweird.f32 %v545
    %vm665 = vweird.f32 %v658
    %vm666 = vmor %vm664, %vm665
    %v667 = vsel %vm666, %v658, %v663
    %v668 = vrsqrt.pop %v546
    %v669 = vmul.f32 %v668, %v546
    %v670 = vmul.f32 %v669, %v668
    %v671 = vmul.f32 0.5, %v670
    %v672 = vsub.f32 1.5, %v671
    %v673 = vmul.f32 %v668, %v672
    %vm674 = vweird.f32 %v546
    %vm675 = vweird.f32 %v668
    %vm676 = vmor %vm674, %vm675
    %v677 = vsel %vm676, %v668, %v673
    %v678 = vrsqrt.pop %v547
    %v679 = vmul.f32 %v678, %v547
    %v680 = vmul.f32 %v679, %v678
    %v681 = vmul.f32 0.5, %v680
    %v682 = vsub.f32 1.5, %v681
    %v683 = vmul.f32 %v678, %v682
    %vm684 = vweird.f32 %v547
    %vm685 = vweird.f32 %v678
    %vm686 = vmor %vm684, %vm685
    %v687 = vsel %vm686, %v678, %v683
    %v688 = vrsqrt.pop %v548
    %v689 = vmul.f32 %v688, %v548
    %v690 = vmul.f32 %v689, %v688
    %v691 = vmul.f32 0.5, %v690
    %v692 = vsub.f32 1.5, %v691
    %v693 = vmul.f32 %v688, %v692
    %vm694 = vweird.f32 %v548
    %vm695 = vweird.f32 %v688
    %vm696 = vmor %vm694, %vm695
    %v697 = vsel %vm696, %v688, %v693
    %v698 = vrsqrt.pop %v549
    %v699 = vmul.f32 %v698, %v549
    %v700 = vmul.f32 %v699, %v698
    %v701 = vmul.f32 0.5, %v700
    %v702 = vsub.f32 1.5, %v701
    %v703 = vmul.f32 %v698, %v702
    %vm704 = vweird.f32 %v549
    %vm705 = vweird.f32 %v698
    %vm706 = vmor %vm704, %vm705
    %v707 = vsel %vm706, %v698, %v703
    %v708 = vrsqrt.pop %v550
    %v709 = vmul.f32 %v708, %v550
    %v710 = vmul.f32 %v709, %v708
    %v711 = vmul.f32 0.5, %v710
    %v712 = vsub.f32 1.5, %v711
    %v713 = vmul.f32 %v708, %v712
    %vm714 = vweird.f32 %v550
    %vm715 = vweird.f32 %v708
    %vm716 = vmor %vm714, %vm715
    %v717 = vsel %vm716, %v708, %v713
    %v718 = vrsqrt.pop %v551
    %v719 = vmul.f32 %v718, %v551
    %v720 = vmul.f32 %v719, %v718
    %v721 = vmul.f32 0.5, %v720
    %v722 = vsub.f32 1.5, %v721
    %v723 = vmul.f32 %v718, %v722
    %vm724 = vweird.f32 %v551
    %vm725 = vweird.f32 %v718
    %vm726 = vmor %vm724, %vm725
    %v727 = vsel %vm726, %v718, %v723
    %v728 = vrsqrt.pop %v552
    %v729 = vmul.f32 %v728, %v552
    %v730 = vmul.f32 %v729, %v728
    %v731 = vmul.f32 0.5, %v730
    %v732 = vsub.f32 1.5, %v731
    %v733 = vmul.f32 %v728, %v732
    %vm734 = vweird.f32 %v552
    %vm735 = vweird.f32 %v728
    %vm736 = vmor %vm734, %vm735
    %v737 = vsel %vm736, %v728, %v733
    %v738 = vrsqrt.pop %v553
    %v739 = vmul.f32 %v738, %v553
    %v740 = vmul.f32 %v739, %v738
    %v741 = vmul.f32 0.5, %v740
    %v742 = vsub.f32 1.5, %v741
    %v743 = vmul.f32 %v738, %v742
    %vm744 = vweird.f32 %v553
    %vm745 = vweird.f32 %v738
    %vm746 = vmor %vm744, %vm745
    %v747 = vsel %vm746, %v738, %v743
    %v748 = vrsqrt.pop %v554
    %v749 = vmul.f32 %v748, %v554
    %v750 = vmul.f32 %v749, %v748
    %v751 = vmul.f32 0.5, %v750
    %v752 = vsub.f32 1.5, %v751
    %v753 = vmul.f32 %v748, %v752
    %vm754 = vweird.f32 %v554
    %vm755 = vweird.f32 %v748
    %vm756 = vmor %vm754, %vm755
    %v757 = vsel %vm756, %v748, %v753
    %v758 = vrsqrt.pop %v555
    %v759 = vmul.f32 %v758, %v555
    %v760 = vmul.f32 %v759, %v758
    %v761 = vmul.f32 0.5, %v760
    %v762 = vsub.f32 1.5, %v761
    %v763 = vmul.f32 %v758, %v762
    %vm764 = vweird.f32 %v555
    %vm765 = vweird.f32 %v758
    %vm766 = vmor %vm764, %vm765
    %v767 = vsel %vm766, %v758, %v763
    %v768 = vrsqrt.pop %v556
    %v769 = vmul.f32 %v768, %v556
    %v770 = vmul.f32 %v769, %v768
    %v771 = vmul.f32 0.5, %v770
    %v772 = vsub.f32 1.5, %v771
    %v773 = vmul.f32 %v768, %v772
    %vm774 = vweird.f32 %v556
    %vm775 = vweird.f32 %v768
    %vm776 = vmor %vm774, %vm775
    %v777 = vsel %vm776, %v768, %v773
    %v778 = vrsqrt.pop %v557
    %v779 = vmul.f32 %v778, %v557
    %v780 = vmul.f32 %v779, %v778
    %v781 = vmul.f32 0.5, %v780
    %v782 = vsub.f32 1.5, %v781
    %v783 = vmul.f32 %v778, %v782
    %vm784 = vweird.f32 %v557
    %vm785 = vweird.f32 %v778
    %vm786 = vmor %vm784, %vm785
    %v787 = vsel %vm786, %v778, %v783
    %v788 = vrsqrt.pop %v558
    %v789 = vmul.f32 %v788, %v558
    %v790 = vmul.f32 %v789, %v788
    %v791 = vmul.f32 0.5, %v790
    %v792 = vsub.f32 1.5, %v791
    %v793 = vmul.f32 %v788, %v792
    %vm794 = vweird.f32 %v558
    %vm795 = vweird.f32 %v788
    %vm796 = vmor %vm794, %vm795
    %v797 = vsel %vm796, %v788, %v793
    %v798 = vrsqrt.pop %v559
    %v799 = vmul.f32 %v798, %v559
    %v800 = vmul.f32 %v799, %v798
    %v801 = vmul.f32 0.5, %v800
    %v802 = vsub.f32 1.5, %v801
    %v803 = vmul.f32 %v798, %v802
    %vm804 = vweird.f32 %v559
    %vm805 = vweird.f32 %v798
    %vm806 = vmor %vm804, %vm805
    %v807 = vsel %vm806, %v798, %v803
    %v808 = vrsqrt.pop %v560
    %v809 = vmul.f32 %v808, %v560
    %v810 = vmul.f32 %v809, %v808
    %v811 = vmul.f32 0.5, %v810
    %v812 = vsub.f32 1.5, %v811
    %v813 = vmul.f32 %v808, %v812
    %vm814 = vweird.f32 %v560
    %vm815 = vweird.f32 %v808
    %vm816 = vmor %vm814, %vm815
    %v817 = vsel %vm816, %v808, %v813
    %v818 = vrsqrt.pop %v561
    %v819 = vmul.f32 %v818, %v561
    %v820 = vmul.f32 %v819, %v818
    %v821 = vmul.f32 0.5, %v820
    %v822 = vsub.f32 1.5, %v821
    %v823 = vmul.f32 %v818, %v822
    %vm824 = vweird.f32 %v561
    %vm825 = vweird.f32 %v818
    %vm826 = vmor %vm824, %vm825
    %v827 = vsel %vm826, %v818, %v823
    %v828 = vrsqrt.pop %v562
    %v829 = vmul.f32 %v828, %v562
    %v830 = vmul.f32 %v829, %v828
    %v831 = vmul.f32 0.5, %v830
    %v832 = vsub.f32 1.5, %v831
    %v833 = vmul.f32 %v828, %v832
    %vm834 = vweird.f32 %v562
    %vm835 = vweird.f32 %v828
    %vm836 = vmor %vm834, %vm835
    %v837 = vsel %vm836, %v828, %v833
    %v838 = vrsqrt.pop %v563
    %v839 = vmul.f32 %v838, %v563
    %v840 = vmul.f32 %v839, %v838
    %v841 = vmul.f32 0.5, %v840
    %v842 = vsub.f32 1.5, %v841
    %v843 = vmul.f32 %v838, %v842
    %vm844 = vweird.f32 %v563
    %vm845 = vweird.f32 %v838
    %vm846 = vmor %vm844, %vm845
    %v847 = vsel %vm846, %v838, %v843
    %v848 = vrsqrt.pop %v564
    %v849 = vmul.f32 %v848, %v564
    %v850 = vmul.f32 %v849, %v848
    %v851 = vmul.f32 0.5, %v850
    %v852 = vsub.f32 1.5, %v851
    %v853 = vmul.f32 %v848, %v852
    %vm854 = vweird.f32 %v564
    %vm855 = vweird.f32 %v848
    %vm856 = vmor %vm854, %vm855
    %v857 = vsel %vm856, %v848, %v853
    %v858 = vrsqrt.pop %v565
    %v859 = vmul.f32 %v858, %v565
    %v860 = vmul.f32 %v859, %v858
    %v861 = vmul.f32 0.5, %v860
    %v862 = vsub.f32 1.5, %v861
    %v863 = vmul.f32 %v858, %v862
    %vm864 = vweird.f32 %v565
    %vm865 = vweird.f32 %v858
    %vm866 = vmor %vm864, %vm865
    %v867 = vsel %vm866, %v858, %v863
    %v868 = vrsqrt.pop %v566
    %v869 = vmul.f32 %v868, %v566
    %v870 = vmul.f32 %v869, %v868
    %v871 = vmul.f32 0.5, %v870
    %v872 = vsub.f32 1.5, %v871
    %v873 = vmul.f32 %v868, %v872
    %vm874 = vweird.f32 %v566
    %vm875 = vweird.f32 %v868
    %vm876 = vmor %vm874, %vm875
    %v877 = vsel %vm876, %v868, %v873
    %v878 = vrsqrt.pop %v567
    %v879 = vmul.f32 %v878, %v567
    %v880 = vmul.f32 %v879, %v878
    %v881 = vmul.f32 0.5, %v880
    %v882 = vsub.f32 1.5, %v881
    %v883 = vmul.f32 %v878, %v882
    %vm884 = vweird.f32 %v567
    %vm885 = vweird.f32 %v878
    %vm886 = vmor %vm884, %vm885
    %v887 = vsel %vm886, %v878, %v883
    %v888 = vmul.f32 %v504, %v577
    %v889 = vmul.f32 %v505, %v587
    %v890 = vmul.f32 %v506, %v597
    %v891 = vmul.f32 %v507, %v607
    %v892 = vmul.f32 %v508, %v617
    %v893 = vmul.f32 %v509, %v627
    %v894 = vmul.f32 %v510, %v637
    %v895 = vmul.f32 %v511, %v647
    %v896 = vmul.f32 %v512, %v657
    %v897 = vmul.f32 %v513, %v667
    %v898 = vmul.f32 %v514, %v677
    %v899 = vmul.f32 %v515, %v687
    %v900 = vmul.f32 %v516, %v697
    %v901 = vmul.f32 %v517, %v707
    %v902 = vmul.f32 %v518, %v717
    %v903 = vmul.f32 %v519, %v727
    %v904 = vmul.f32 %v520, %v737
    %v905 = vmul.f32 %v521, %v747
    %v906 = vmul.f32 %v522, %v757
    %v907 = vmul.f32 %v523, %v767
    %v908 = vmul.f32 %v524, %v777
    %v909 = vmul.f32 %v525, %v787
    %v910 = vmul.f32 %v526, %v797
    %v911 = vmul.f32 %v527, %v807
    %v912 = vmul.f32 %v528, %v817
    %v913 = vmul.f32 %v529, %v827
    %v914 = vmul.f32 %v530, %v837
    %v915 = vmul.f32 %v531, %v847
    %v916 = vmul.f32 %v532, %v857
    %v917 = vmul.f32 %v533, %v867
    %v918 = vmul.f32 %v534, %v877
    %v919 = vmul.f32 %v535, %v887
    %v920 = vperm.slane %v39, 0
    %v921 = vmul.f32 %v888, %v920
    %v922 = vmul.f32 %v889, %v920
    %v923 = vmul.f32 %v890, %v920
    %v924 = vmul.f32 %v891, %v920
    %v925 = vmul.f32 %v892, %v920
    %v926 = vmul.f32 %v893, %v920
    %v927 = vmul.f32 %v894, %v920
    %v928 = vmul.f32 %v895, %v920
    %v929 = vmul.f32 %v896, %v920
    %v930 = vmul.f32 %v897, %v920
    %v931 = vmul.f32 %v898, %v920
    %v932 = vmul.f32 %v899, %v920
    %v933 = vmul.f32 %v900, %v920
    %v934 = vmul.f32 %v901, %v920
    %v935 = vmul.f32 %v902, %v920
    %v936 = vmul.f32 %v903, %v920
    %v937 = vmul.f32 %v904, %v920
    %v938 = vmul.f32 %v905, %v920
    %v939 = vmul.f32 %v906, %v920
    %v940 = vmul.f32 %v907, %v920
    %v941 = vmul.f32 %v908, %v920
    %v942 = vmul.f32 %v909, %v920
    %v943 = vmul.f32 %v910, %v920
    %v944 = vmul.f32 %v911, %v920
    %v945 = vmul.f32 %v912, %v920
    %v946 = vmul.f32 %v913, %v920
    %v947 = vmul.f32 %v914, %v920
    %v948 = vmul.f32 %v915, %v920
    %v949 = vmul.f32 %v916, %v920
    %v950 = vmul.f32 %v917, %v920
    %v951 = vmul.f32 %v918, %v920
    %v952 = vmul.f32 %v919, %v920
    %v953 = vperm.slane %v39, 1
    %v954 = vadd.f32 %v921, %v953
    %v955 = vadd.f32 %v922, %v953
    %v956 = vadd.f32 %v923, %v953
    %v957 = vadd.f32 %v924, %v953
    %v958 = vadd.f32 %v925, %v953
    %v959 = vadd.f32 %v926, %v953
    %v960 = vadd.f32 %v927, %v953
    %v961 = vadd.f32 %v928, %v953
    %v962 = vadd.f32 %v929, %v953
    %v963 = vadd.f32 %v930, %v953
    %v964 = vadd.f32 %v931, %v953
    %v965 = vadd.f32 %v932, %v953
    %v966 = vadd.f32 %v933, %v953
    %v967 = vadd.f32 %v934, %v953
    %v968 = vadd.f32 %v935, %v953
    %v969 = vadd.f32 %v936, %v953
    %v970 = vadd.f32 %v937, %v953
    %v971 = vadd.f32 %v938, %v953
    %v972 = vadd.f32 %v939, %v953
    %v973 = vadd.f32 %v940, %v953
    %v974 = vadd.f32 %v941, %v953
    %v975 = vadd.f32 %v942, %v953
    %v976 = vadd.f32 %v943, %v953
    %v977 = vadd.f32 %v944, %v953
    %v978 = vadd.f32 %v945, %v953
    %v979 = vadd.f32 %v946, %v953
    %v980 = vadd.f32 %v947, %v953
    %v981 = vadd.f32 %v948, %v953
    %v982 = vadd.f32 %v949, %v953
    %v983 = vadd.f32 %v950, %v953
    %v984 = vadd.f32 %v951, %v953
    %v985 = vadd.f32 %v952, %v953
    %v986 = vmax.f32 %v954, 0.0
    %v987 = vmax.f32 %v955, 0.0
    %v988 = vmax.f32 %v956, 0.0
    %v989 = vmax.f32 %v957, 0.0
    %v990 = vmax.f32 %v958, 0.0
    %v991 = vmax.f32 %v959, 0.0
    %v992 = vmax.f32 %v960, 0.0
    %v993 = vmax.f32 %v961, 0.0
    %v994 = vmax.f32 %v962, 0.0
    %v995 = vmax.f32 %v963, 0.0
    %v996 = vmax.f32 %v964, 0.0
    %v997 = vmax.f32 %v965, 0.0
    %v998 = vmax.f32 %v966, 0.0
    %v999 = vmax.f32 %v967, 0.0
    %v1000 = vmax.f32 %v968, 0.0
    %v1001 = vmax.f32 %v969, 0.0
    %v1002 = vmax.f32 %v970, 0.0
    %v1003 = vmax.f32 %v971, 0.0
    %v1004 = vmax.f32 %v972, 0.0
    %v1005 = vmax.f32 %v973, 0.0
    %v1006 = vmax.f32 %v974, 0.0
    %v1007 = vmax.f32 %v975, 0.0
    %v1008 = vmax.f32 %v976, 0.0
    %v1009 = vmax.f32 %v977, 0.0
    %v1010 = vmax.f32 %v978, 0.0
    %v1011 = vmax.f32 %v979, 0.0
    %v1012 = vmax.f32 %v980, 0.0
    %v1013 = vmax.f32 %v981, 0.0
    %v1014 = vmax.f32 %v982, 0.0
    %v1015 = vmax.f32 %v983, 0.0
    %v1016 = vmax.f32 %v984, 0.0
    %v1017 = vmax.f32 %v985, 0.0
    %v1018 = vpack.c.bf16 %v987, %v986
    %v1019 = vpack.c.bf16 %v989, %v988
    %v1020 = vpack.c.bf16 %v991, %v990
    %v1021 = vpack.c.bf16 %v993, %v992
    %v1022 = vpack.c.bf16 %v995, %v994
    %v1023 = vpack.c.bf16 %v997, %v996
    %v1024 = vpack.c.bf16 %v999, %v998
    %v1025 = vpack.c.bf16 %v1001, %v1000
    %v1026 = vpack.c.bf16 %v1003, %v1002
    %v1027 = vpack.c.bf16 %v1005, %v1004
    %v1028 = vpack.c.bf16 %v1007, %v1006
    %v1029 = vpack.c.bf16 %v1009, %v1008
    %v1030 = vpack.c.bf16 %v1011, %v1010
    %v1031 = vpack.c.bf16 %v1013, %v1012
    %v1032 = vpack.c.bf16 %v1015, %v1014
    %v1033 = vpack.c.bf16 %v1017, %v1016
    %v1034 = vperm.slane %v39, 2
    %v1051 = vunpack.c.l.b16 %v168
    %v1052 = vunpack.c.l.b16 %v169
    %v1053 = vunpack.c.l.b16 %v170
    %v1054 = vunpack.c.l.b16 %v171
    %v1055 = vunpack.c.l.b16 %v172
    %v1056 = vunpack.c.l.b16 %v173
    %v1057 = vunpack.c.l.b16 %v174
    %v1058 = vunpack.c.l.b16 %v175
    %v1059 = vunpack.c.l.b16 %v176
    %v1060 = vunpack.c.l.b16 %v177
    %v1061 = vunpack.c.l.b16 %v178
    %v1062 = vunpack.c.l.b16 %v179
    %v1063 = vunpack.c.l.b16 %v180
    %v1064 = vunpack.c.l.b16 %v181
    %v1065 = vunpack.c.l.b16 %v182
    %v1066 = vunpack.c.l.b16 %v183
    %v1067 = vpack.c.b16 %v1052, %v1051
    %v1068 = vpack.c.b16 %v1054, %v1053
    %v1069 = vpack.c.b16 %v1056, %v1055
    %v1070 = vpack.c.b16 %v1058, %v1057
    %v1071 = vpack.c.b16 %v1060, %v1059
    %v1072 = vpack.c.b16 %v1062, %v1061
    %v1073 = vpack.c.b16 %v1064, %v1063
    %v1074 = vpack.c.b16 %v1066, %v1065
    %1083 = vmatpush.bf16.msra.mxu0 %v1074
    %1084 = vmatpush.bf16.msra.mxu0 %v1073
    %1085 = vmatpush.bf16.msra.mxu0 %v1072
    %1086 = vmatpush.bf16.msra.mxu0 %v1071
    %1087 = vmatpush.bf16.msra.mxu0 %v1070
    %1088 = vmatpush.bf16.msra.mxu0 %v1069
    %1089 = vmatpush.bf16.msra.mxu0 %v1068
    %1090 = vmatpush.bf16.msra.mxu0 %v1067
    %1091 = vmatmul.bf16.gmra.mxu0 %v1018
    %v1092 = vpop.f32.mrf.mxu0
    %v1093 = vadd.f32 %v1034, %v1092
    %v1094 = vpop.f32.mrf.mxu0
    %v1095 = vadd.f32 %v1034, %v1094
    %1096 = vmatmul.bf16.gmra.mxu0 %v1019
    %v1097 = vpop.f32.mrf.mxu0
    %v1098 = vadd.f32 %v1034, %v1097
    %v1099 = vpop.f32.mrf.mxu0
    %v1100 = vadd.f32 %v1034, %v1099
    %1101 = vmatmul.bf16.gmra.mxu0 %v1020
    %v1102 = vpop.f32.mrf.mxu0
    %v1103 = vadd.f32 %v1034, %v1102
    %v1104 = vpop.f32.mrf.mxu0
    %v1105 = vadd.f32 %v1034, %v1104
    %1106 = vmatmul.bf16.gmra.mxu0 %v1021
    %v1107 = vpop.f32.mrf.mxu0
    %v1108 = vadd.f32 %v1034, %v1107
    %v1109 = vpop.f32.mrf.mxu0
    %v1110 = vadd.f32 %v1034, %v1109
    %1111 = vmatmul.bf16.gmra.mxu0 %v1022
    %v1112 = vpop.f32.mrf.mxu0
    %v1113 = vadd.f32 %v1034, %v1112
    %v1114 = vpop.f32.mrf.mxu0
    %v1115 = vadd.f32 %v1034, %v1114
    %1116 = vmatmul.bf16.gmra.mxu0 %v1023
    %v1117 = vpop.f32.mrf.mxu0
    %v1118 = vadd.f32 %v1034, %v1117
    %v1119 = vpop.f32.mrf.mxu0
    %v1120 = vadd.f32 %v1034, %v1119
    %1121 = vmatmul.bf16.gmra.mxu0 %v1024
    %v1122 = vpop.f32.mrf.mxu0
    %v1123 = vadd.f32 %v1034, %v1122
    %v1124 = vpop.f32.mrf.mxu0
    %v1125 = vadd.f32 %v1034, %v1124
    %1126 = vmatmul.bf16.gmra.mxu0 %v1025
    %v1127 = vpop.f32.mrf.mxu0
    %v1128 = vadd.f32 %v1034, %v1127
    %v1129 = vpop.f32.mrf.mxu0
    %v1130 = vadd.f32 %v1034, %v1129
    %1131 = vmatmul.bf16.gmra.mxu0 %v1026
    %v1132 = vpop.f32.mrf.mxu0
    %v1133 = vadd.f32 %v1034, %v1132
    %v1134 = vpop.f32.mrf.mxu0
    %v1135 = vadd.f32 %v1034, %v1134
    %1136 = vmatmul.bf16.gmra.mxu0 %v1027
    %v1137 = vpop.f32.mrf.mxu0
    %v1138 = vadd.f32 %v1034, %v1137
    %v1139 = vpop.f32.mrf.mxu0
    %v1140 = vadd.f32 %v1034, %v1139
    %1141 = vmatmul.bf16.gmra.mxu0 %v1028
    %v1142 = vpop.f32.mrf.mxu0
    %v1143 = vadd.f32 %v1034, %v1142
    %v1144 = vpop.f32.mrf.mxu0
    %v1145 = vadd.f32 %v1034, %v1144
    %1146 = vmatmul.bf16.gmra.mxu0 %v1029
    %v1147 = vpop.f32.mrf.mxu0
    %v1148 = vadd.f32 %v1034, %v1147
    %v1149 = vpop.f32.mrf.mxu0
    %v1150 = vadd.f32 %v1034, %v1149
    %1151 = vmatmul.bf16.gmra.mxu0 %v1030
    %v1152 = vpop.f32.mrf.mxu0
    %v1153 = vadd.f32 %v1034, %v1152
    %v1154 = vpop.f32.mrf.mxu0
    %v1155 = vadd.f32 %v1034, %v1154
    %1156 = vmatmul.bf16.gmra.mxu0 %v1031
    %v1157 = vpop.f32.mrf.mxu0
    %v1158 = vadd.f32 %v1034, %v1157
    %v1159 = vpop.f32.mrf.mxu0
    %v1160 = vadd.f32 %v1034, %v1159
    %1161 = vmatmul.bf16.gmra.mxu0 %v1032
    %v1162 = vpop.f32.mrf.mxu0
    %v1163 = vadd.f32 %v1034, %v1162
    %v1164 = vpop.f32.mrf.mxu0
    %v1165 = vadd.f32 %v1034, %v1164
    %1166 = vmatmul.bf16.gmra.mxu0 %v1033
    %v1167 = vpop.f32.mrf.mxu0
    %v1168 = vadd.f32 %v1034, %v1167
    %v1169 = vpop.f32.mrf.mxu0
    %v1170 = vadd.f32 %v1034, %v1169
    %1171 = vdwg.mxu0
    %1172 = vadd.xlane.f32.xlu0 %v1093
    %v1173 = vpop.xlane.xlu0 %1172
    %1174 = vadd.xlane.f32.xlu0 %v1095
    %v1175 = vpop.xlane.xlu0 %1174
    %1176 = vadd.xlane.f32.xlu0 %v1098
    %v1177 = vpop.xlane.xlu0 %1176
    %1178 = vadd.xlane.f32.xlu0 %v1100
    %v1179 = vpop.xlane.xlu0 %1178
    %1180 = vadd.xlane.f32.xlu0 %v1103
    %v1181 = vpop.xlane.xlu0 %1180
    %1182 = vadd.xlane.f32.xlu0 %v1105
    %v1183 = vpop.xlane.xlu0 %1182
    %1184 = vadd.xlane.f32.xlu0 %v1108
    %v1185 = vpop.xlane.xlu0 %1184
    %1186 = vadd.xlane.f32.xlu0 %v1110
    %v1187 = vpop.xlane.xlu0 %1186
    %1188 = vadd.xlane.f32.xlu0 %v1113
    %v1189 = vpop.xlane.xlu0 %1188
    %1190 = vadd.xlane.f32.xlu0 %v1115
    %v1191 = vpop.xlane.xlu0 %1190
    %1192 = vadd.xlane.f32.xlu0 %v1118
    %v1193 = vpop.xlane.xlu0 %1192
    %1194 = vadd.xlane.f32.xlu0 %v1120
    %v1195 = vpop.xlane.xlu0 %1194
    %1196 = vadd.xlane.f32.xlu0 %v1123
    %v1197 = vpop.xlane.xlu0 %1196
    %1198 = vadd.xlane.f32.xlu0 %v1125
    %v1199 = vpop.xlane.xlu0 %1198
    %1200 = vadd.xlane.f32.xlu0 %v1128
    %v1201 = vpop.xlane.xlu0 %1200
    %1202 = vadd.xlane.f32.xlu0 %v1130
    %v1203 = vpop.xlane.xlu0 %1202
    %1204 = vadd.xlane.f32.xlu0 %v1133
    %v1205 = vpop.xlane.xlu0 %1204
    %1206 = vadd.xlane.f32.xlu0 %v1135
    %v1207 = vpop.xlane.xlu0 %1206
    %1208 = vadd.xlane.f32.xlu0 %v1138
    %v1209 = vpop.xlane.xlu0 %1208
    %1210 = vadd.xlane.f32.xlu0 %v1140
    %v1211 = vpop.xlane.xlu0 %1210
    %1212 = vadd.xlane.f32.xlu0 %v1143
    %v1213 = vpop.xlane.xlu0 %1212
    %1214 = vadd.xlane.f32.xlu0 %v1145
    %v1215 = vpop.xlane.xlu0 %1214
    %1216 = vadd.xlane.f32.xlu0 %v1148
    %v1217 = vpop.xlane.xlu0 %1216
    %1218 = vadd.xlane.f32.xlu0 %v1150
    %v1219 = vpop.xlane.xlu0 %1218
    %1220 = vadd.xlane.f32.xlu0 %v1153
    %v1221 = vpop.xlane.xlu0 %1220
    %1222 = vadd.xlane.f32.xlu0 %v1155
    %v1223 = vpop.xlane.xlu0 %1222
    %1224 = vadd.xlane.f32.xlu0 %v1158
    %v1225 = vpop.xlane.xlu0 %1224
    %1226 = vadd.xlane.f32.xlu0 %v1160
    %v1227 = vpop.xlane.xlu0 %1226
    %1228 = vadd.xlane.f32.xlu0 %v1163
    %v1229 = vpop.xlane.xlu0 %1228
    %1230 = vadd.xlane.f32.xlu0 %v1165
    %v1231 = vpop.xlane.xlu0 %1230
    %1232 = vadd.xlane.f32.xlu0 %v1168
    %v1233 = vpop.xlane.xlu0 %1232
    %1234 = vadd.xlane.f32.xlu0 %v1170
    %v1235 = vpop.xlane.xlu0 %1234
    %v1236 = vmul.f32 %v1173, 0.01
    %v1237 = vmul.f32 %v1175, 0.01
    %v1238 = vmul.f32 %v1177, 0.01
    %v1239 = vmul.f32 %v1179, 0.01
    %v1240 = vmul.f32 %v1181, 0.01
    %v1241 = vmul.f32 %v1183, 0.01
    %v1242 = vmul.f32 %v1185, 0.01
    %v1243 = vmul.f32 %v1187, 0.01
    %v1244 = vmul.f32 %v1189, 0.01
    %v1245 = vmul.f32 %v1191, 0.01
    %v1246 = vmul.f32 %v1193, 0.01
    %v1247 = vmul.f32 %v1195, 0.01
    %v1248 = vmul.f32 %v1197, 0.01
    %v1249 = vmul.f32 %v1199, 0.01
    %v1250 = vmul.f32 %v1201, 0.01
    %v1251 = vmul.f32 %v1203, 0.01
    %v1252 = vmul.f32 %v1205, 0.01
    %v1253 = vmul.f32 %v1207, 0.01
    %v1254 = vmul.f32 %v1209, 0.01
    %v1255 = vmul.f32 %v1211, 0.01
    %v1256 = vmul.f32 %v1213, 0.01
    %v1257 = vmul.f32 %v1215, 0.01
    %v1258 = vmul.f32 %v1217, 0.01
    %v1259 = vmul.f32 %v1219, 0.01
    %v1260 = vmul.f32 %v1221, 0.01
    %v1261 = vmul.f32 %v1223, 0.01
    %v1262 = vmul.f32 %v1225, 0.01
    %v1263 = vmul.f32 %v1227, 0.01
    %v1264 = vmul.f32 %v1229, 0.01
    %v1265 = vmul.f32 %v1231, 0.01
    %v1266 = vmul.f32 %v1233, 0.01
    %v1267 = vmul.f32 %v1235, 0.01
    %v1268 = vmul.f32 %v1093, %v1093
    %v1269 = vmul.f32 %v1095, %v1095
    %v1270 = vmul.f32 %v1098, %v1098
    %v1271 = vmul.f32 %v1100, %v1100
    %v1272 = vmul.f32 %v1103, %v1103
    %v1273 = vmul.f32 %v1105, %v1105
    %v1274 = vmul.f32 %v1108, %v1108
    %v1275 = vmul.f32 %v1110, %v1110
    %v1276 = vmul.f32 %v1113, %v1113
    %v1277 = vmul.f32 %v1115, %v1115
    %v1278 = vmul.f32 %v1118, %v1118
    %v1279 = vmul.f32 %v1120, %v1120
    %v1280 = vmul.f32 %v1123, %v1123
    %v1281 = vmul.f32 %v1125, %v1125
    %v1282 = vmul.f32 %v1128, %v1128
    %v1283 = vmul.f32 %v1130, %v1130
    %v1284 = vmul.f32 %v1133, %v1133
    %v1285 = vmul.f32 %v1135, %v1135
    %v1286 = vmul.f32 %v1138, %v1138
    %v1287 = vmul.f32 %v1140, %v1140
    %v1288 = vmul.f32 %v1143, %v1143
    %v1289 = vmul.f32 %v1145, %v1145
    %v1290 = vmul.f32 %v1148, %v1148
    %v1291 = vmul.f32 %v1150, %v1150
    %v1292 = vmul.f32 %v1153, %v1153
    %v1293 = vmul.f32 %v1155, %v1155
    %v1294 = vmul.f32 %v1158, %v1158
    %v1295 = vmul.f32 %v1160, %v1160
    %v1296 = vmul.f32 %v1163, %v1163
    %v1297 = vmul.f32 %v1165, %v1165
    %v1298 = vmul.f32 %v1168, %v1168
    %v1299 = vmul.f32 %v1170, %v1170
    %1300 = vadd.xlane.f32.xlu0 %v1268
    %v1301 = vpop.xlane.xlu0 %1300
    %1302 = vadd.xlane.f32.xlu0 %v1269
    %v1303 = vpop.xlane.xlu0 %1302
    %1304 = vadd.xlane.f32.xlu0 %v1270
    %v1305 = vpop.xlane.xlu0 %1304
    %1306 = vadd.xlane.f32.xlu0 %v1271
    %v1307 = vpop.xlane.xlu0 %1306
    %1308 = vadd.xlane.f32.xlu0 %v1272
    %v1309 = vpop.xlane.xlu0 %1308
    %1310 = vadd.xlane.f32.xlu0 %v1273
    %v1311 = vpop.xlane.xlu0 %1310
    %1312 = vadd.xlane.f32.xlu0 %v1274
    %v1313 = vpop.xlane.xlu0 %1312
    %1314 = vadd.xlane.f32.xlu0 %v1275
    %v1315 = vpop.xlane.xlu0 %1314
    %1316 = vadd.xlane.f32.xlu0 %v1276
    %v1317 = vpop.xlane.xlu0 %1316
    %1318 = vadd.xlane.f32.xlu0 %v1277
    %v1319 = vpop.xlane.xlu0 %1318
    %1320 = vadd.xlane.f32.xlu0 %v1278
    %v1321 = vpop.xlane.xlu0 %1320
    %1322 = vadd.xlane.f32.xlu0 %v1279
    %v1323 = vpop.xlane.xlu0 %1322
    %1324 = vadd.xlane.f32.xlu0 %v1280
    %v1325 = vpop.xlane.xlu0 %1324
    %1326 = vadd.xlane.f32.xlu0 %v1281
    %v1327 = vpop.xlane.xlu0 %1326
    %1328 = vadd.xlane.f32.xlu0 %v1282
    %v1329 = vpop.xlane.xlu0 %1328
    %1330 = vadd.xlane.f32.xlu0 %v1283
    %v1331 = vpop.xlane.xlu0 %1330
    %1332 = vadd.xlane.f32.xlu0 %v1284
    %v1333 = vpop.xlane.xlu0 %1332
    %1334 = vadd.xlane.f32.xlu0 %v1285
    %v1335 = vpop.xlane.xlu0 %1334
    %1336 = vadd.xlane.f32.xlu0 %v1286
    %v1337 = vpop.xlane.xlu0 %1336
    %1338 = vadd.xlane.f32.xlu0 %v1287
    %v1339 = vpop.xlane.xlu0 %1338
    %1340 = vadd.xlane.f32.xlu0 %v1288
    %v1341 = vpop.xlane.xlu0 %1340
    %1342 = vadd.xlane.f32.xlu0 %v1289
    %v1343 = vpop.xlane.xlu0 %1342
    %1344 = vadd.xlane.f32.xlu0 %v1290
    %v1345 = vpop.xlane.xlu0 %1344
    %1346 = vadd.xlane.f32.xlu0 %v1291
    %v1347 = vpop.xlane.xlu0 %1346
    %1348 = vadd.xlane.f32.xlu0 %v1292
    %v1349 = vpop.xlane.xlu0 %1348
    %1350 = vadd.xlane.f32.xlu0 %v1293
    %v1351 = vpop.xlane.xlu0 %1350
    %1352 = vadd.xlane.f32.xlu0 %v1294
    %v1353 = vpop.xlane.xlu0 %1352
    %1354 = vadd.xlane.f32.xlu0 %v1295
    %v1355 = vpop.xlane.xlu0 %1354
    %1356 = vadd.xlane.f32.xlu0 %v1296
    %v1357 = vpop.xlane.xlu0 %1356
    %1358 = vadd.xlane.f32.xlu0 %v1297
    %v1359 = vpop.xlane.xlu0 %1358
    %1360 = vadd.xlane.f32.xlu0 %v1298
    %v1361 = vpop.xlane.xlu0 %1360
    %1362 = vadd.xlane.f32.xlu0 %v1299
    %v1363 = vpop.xlane.xlu0 %1362
    %v1364 = vmul.f32 %v1301, 0.01
    %v1365 = vmul.f32 %v1303, 0.01
    %v1366 = vmul.f32 %v1305, 0.01
    %v1367 = vmul.f32 %v1307, 0.01
    %v1368 = vmul.f32 %v1309, 0.01
    %v1369 = vmul.f32 %v1311, 0.01
    %v1370 = vmul.f32 %v1313, 0.01
    %v1371 = vmul.f32 %v1315, 0.01
    %v1372 = vmul.f32 %v1317, 0.01
    %v1373 = vmul.f32 %v1319, 0.01
    %v1374 = vmul.f32 %v1321, 0.01
    %v1375 = vmul.f32 %v1323, 0.01
    %v1376 = vmul.f32 %v1325, 0.01
    %v1377 = vmul.f32 %v1327, 0.01
    %v1378 = vmul.f32 %v1329, 0.01
    %v1379 = vmul.f32 %v1331, 0.01
    %v1380 = vmul.f32 %v1333, 0.01
    %v1381 = vmul.f32 %v1335, 0.01
    %v1382 = vmul.f32 %v1337, 0.01
    %v1383 = vmul.f32 %v1339, 0.01
    %v1384 = vmul.f32 %v1341, 0.01
    %v1385 = vmul.f32 %v1343, 0.01
    %v1386 = vmul.f32 %v1345, 0.01
    %v1387 = vmul.f32 %v1347, 0.01
    %v1388 = vmul.f32 %v1349, 0.01
    %v1389 = vmul.f32 %v1351, 0.01
    %v1390 = vmul.f32 %v1353, 0.01
    %v1391 = vmul.f32 %v1355, 0.01
    %v1392 = vmul.f32 %v1357, 0.01
    %v1393 = vmul.f32 %v1359, 0.01
    %v1394 = vmul.f32 %v1361, 0.01
    %v1395 = vmul.f32 %v1363, 0.01
    %v1396 = vmul.f32 %v1236, %v1236
    %v1397 = vmul.f32 %v1237, %v1237
    %v1398 = vmul.f32 %v1238, %v1238
    %v1399 = vmul.f32 %v1239, %v1239
    %v1400 = vmul.f32 %v1240, %v1240
    %v1401 = vmul.f32 %v1241, %v1241
    %v1402 = vmul.f32 %v1242, %v1242
    %v1403 = vmul.f32 %v1243, %v1243
    %v1404 = vmul.f32 %v1244, %v1244
    %v1405 = vmul.f32 %v1245, %v1245
    %v1406 = vmul.f32 %v1246, %v1246
    %v1407 = vmul.f32 %v1247, %v1247
    %v1408 = vmul.f32 %v1248, %v1248
    %v1409 = vmul.f32 %v1249, %v1249
    %v1410 = vmul.f32 %v1250, %v1250
    %v1411 = vmul.f32 %v1251, %v1251
    %v1412 = vmul.f32 %v1252, %v1252
    %v1413 = vmul.f32 %v1253, %v1253
    %v1414 = vmul.f32 %v1254, %v1254
    %v1415 = vmul.f32 %v1255, %v1255
    %v1416 = vmul.f32 %v1256, %v1256
    %v1417 = vmul.f32 %v1257, %v1257
    %v1418 = vmul.f32 %v1258, %v1258
    %v1419 = vmul.f32 %v1259, %v1259
    %v1420 = vmul.f32 %v1260, %v1260
    %v1421 = vmul.f32 %v1261, %v1261
    %v1422 = vmul.f32 %v1262, %v1262
    %v1423 = vmul.f32 %v1263, %v1263
    %v1424 = vmul.f32 %v1264, %v1264
    %v1425 = vmul.f32 %v1265, %v1265
    %v1426 = vmul.f32 %v1266, %v1266
    %v1427 = vmul.f32 %v1267, %v1267
    %v1428 = vsub.f32 %v1364, %v1396
    %v1429 = vsub.f32 %v1365, %v1397
    %v1430 = vsub.f32 %v1366, %v1398
    %v1431 = vsub.f32 %v1367, %v1399
    %v1432 = vsub.f32 %v1368, %v1400
    %v1433 = vsub.f32 %v1369, %v1401
    %v1434 = vsub.f32 %v1370, %v1402
    %v1435 = vsub.f32 %v1371, %v1403
    %v1436 = vsub.f32 %v1372, %v1404
    %v1437 = vsub.f32 %v1373, %v1405
    %v1438 = vsub.f32 %v1374, %v1406
    %v1439 = vsub.f32 %v1375, %v1407
    %v1440 = vsub.f32 %v1376, %v1408
    %v1441 = vsub.f32 %v1377, %v1409
    %v1442 = vsub.f32 %v1378, %v1410
    %v1443 = vsub.f32 %v1379, %v1411
    %v1444 = vsub.f32 %v1380, %v1412
    %v1445 = vsub.f32 %v1381, %v1413
    %v1446 = vsub.f32 %v1382, %v1414
    %v1447 = vsub.f32 %v1383, %v1415
    %v1448 = vsub.f32 %v1384, %v1416
    %v1449 = vsub.f32 %v1385, %v1417
    %v1450 = vsub.f32 %v1386, %v1418
    %v1451 = vsub.f32 %v1387, %v1419
    %v1452 = vsub.f32 %v1388, %v1420
    %v1453 = vsub.f32 %v1389, %v1421
    %v1454 = vsub.f32 %v1390, %v1422
    %v1455 = vsub.f32 %v1391, %v1423
    %v1456 = vsub.f32 %v1392, %v1424
    %v1457 = vsub.f32 %v1393, %v1425
    %v1458 = vsub.f32 %v1394, %v1426
    %v1459 = vsub.f32 %v1395, %v1427
    %v1460 = vmax.f32 %v1428, 0.0
    %v1461 = vmax.f32 %v1429, 0.0
    %v1462 = vmax.f32 %v1430, 0.0
    %v1463 = vmax.f32 %v1431, 0.0
    %v1464 = vmax.f32 %v1432, 0.0
    %v1465 = vmax.f32 %v1433, 0.0
    %v1466 = vmax.f32 %v1434, 0.0
    %v1467 = vmax.f32 %v1435, 0.0
    %v1468 = vmax.f32 %v1436, 0.0
    %v1469 = vmax.f32 %v1437, 0.0
    %v1470 = vmax.f32 %v1438, 0.0
    %v1471 = vmax.f32 %v1439, 0.0
    %v1472 = vmax.f32 %v1440, 0.0
    %v1473 = vmax.f32 %v1441, 0.0
    %v1474 = vmax.f32 %v1442, 0.0
    %v1475 = vmax.f32 %v1443, 0.0
    %v1476 = vmax.f32 %v1444, 0.0
    %v1477 = vmax.f32 %v1445, 0.0
    %v1478 = vmax.f32 %v1446, 0.0
    %v1479 = vmax.f32 %v1447, 0.0
    %v1480 = vmax.f32 %v1448, 0.0
    %v1481 = vmax.f32 %v1449, 0.0
    %v1482 = vmax.f32 %v1450, 0.0
    %v1483 = vmax.f32 %v1451, 0.0
    %v1484 = vmax.f32 %v1452, 0.0
    %v1485 = vmax.f32 %v1453, 0.0
    %v1486 = vmax.f32 %v1454, 0.0
    %v1487 = vmax.f32 %v1455, 0.0
    %v1488 = vmax.f32 %v1456, 0.0
    %v1489 = vmax.f32 %v1457, 0.0
    %v1490 = vmax.f32 %v1458, 0.0
    %v1491 = vmax.f32 %v1459, 0.0
    %v1492 = vsub.f32 %v1093, %v1236
    %v1493 = vsub.f32 %v1095, %v1237
    %v1494 = vsub.f32 %v1098, %v1238
    %v1495 = vsub.f32 %v1100, %v1239
    %v1496 = vsub.f32 %v1103, %v1240
    %v1497 = vsub.f32 %v1105, %v1241
    %v1498 = vsub.f32 %v1108, %v1242
    %v1499 = vsub.f32 %v1110, %v1243
    %v1500 = vsub.f32 %v1113, %v1244
    %v1501 = vsub.f32 %v1115, %v1245
    %v1502 = vsub.f32 %v1118, %v1246
    %v1503 = vsub.f32 %v1120, %v1247
    %v1504 = vsub.f32 %v1123, %v1248
    %v1505 = vsub.f32 %v1125, %v1249
    %v1506 = vsub.f32 %v1128, %v1250
    %v1507 = vsub.f32 %v1130, %v1251
    %v1508 = vsub.f32 %v1133, %v1252
    %v1509 = vsub.f32 %v1135, %v1253
    %v1510 = vsub.f32 %v1138, %v1254
    %v1511 = vsub.f32 %v1140, %v1255
    %v1512 = vsub.f32 %v1143, %v1256
    %v1513 = vsub.f32 %v1145, %v1257
    %v1514 = vsub.f32 %v1148, %v1258
    %v1515 = vsub.f32 %v1150, %v1259
    %v1516 = vsub.f32 %v1153, %v1260
    %v1517 = vsub.f32 %v1155, %v1261
    %v1518 = vsub.f32 %v1158, %v1262
    %v1519 = vsub.f32 %v1160, %v1263
    %v1520 = vsub.f32 %v1163, %v1264
    %v1521 = vsub.f32 %v1165, %v1265
    %v1522 = vsub.f32 %v1168, %v1266
    %v1523 = vsub.f32 %v1170, %v1267
    %v1524 = vadd.f32 %v1460, 1e-05
    %v1525 = vadd.f32 %v1461, 1e-05
    %v1526 = vadd.f32 %v1462, 1e-05
    %v1527 = vadd.f32 %v1463, 1e-05
    %v1528 = vadd.f32 %v1464, 1e-05
    %v1529 = vadd.f32 %v1465, 1e-05
    %v1530 = vadd.f32 %v1466, 1e-05
    %v1531 = vadd.f32 %v1467, 1e-05
    %v1532 = vadd.f32 %v1468, 1e-05
    %v1533 = vadd.f32 %v1469, 1e-05
    %v1534 = vadd.f32 %v1470, 1e-05
    %v1535 = vadd.f32 %v1471, 1e-05
    %v1536 = vadd.f32 %v1472, 1e-05
    %v1537 = vadd.f32 %v1473, 1e-05
    %v1538 = vadd.f32 %v1474, 1e-05
    %v1539 = vadd.f32 %v1475, 1e-05
    %v1540 = vadd.f32 %v1476, 1e-05
    %v1541 = vadd.f32 %v1477, 1e-05
    %v1542 = vadd.f32 %v1478, 1e-05
    %v1543 = vadd.f32 %v1479, 1e-05
    %v1544 = vadd.f32 %v1480, 1e-05
    %v1545 = vadd.f32 %v1481, 1e-05
    %v1546 = vadd.f32 %v1482, 1e-05
    %v1547 = vadd.f32 %v1483, 1e-05
    %v1548 = vadd.f32 %v1484, 1e-05
    %v1549 = vadd.f32 %v1485, 1e-05
    %v1550 = vadd.f32 %v1486, 1e-05
    %v1551 = vadd.f32 %v1487, 1e-05
    %v1552 = vadd.f32 %v1488, 1e-05
    %v1553 = vadd.f32 %v1489, 1e-05
    %v1554 = vadd.f32 %v1490, 1e-05
    %v1555 = vadd.f32 %v1491, 1e-05
    %v1556 = vrsqrt.pop %v1524
    %v1557 = vmul.f32 %v1556, %v1524
    %v1558 = vmul.f32 %v1557, %v1556
    %v1559 = vmul.f32 0.5, %v1558
    %v1560 = vsub.f32 1.5, %v1559
    %v1561 = vmul.f32 %v1556, %v1560
    %vm1562 = vweird.f32 %v1524
    %vm1563 = vweird.f32 %v1556
    %vm1564 = vmor %vm1562, %vm1563
    %v1565 = vsel %vm1564, %v1556, %v1561
    %v1566 = vrsqrt.pop %v1525
    %v1567 = vmul.f32 %v1566, %v1525
    %v1568 = vmul.f32 %v1567, %v1566
    %v1569 = vmul.f32 0.5, %v1568
    %v1570 = vsub.f32 1.5, %v1569
    %v1571 = vmul.f32 %v1566, %v1570
    %vm1572 = vweird.f32 %v1525
    %vm1573 = vweird.f32 %v1566
    %vm1574 = vmor %vm1572, %vm1573
    %v1575 = vsel %vm1574, %v1566, %v1571
    %v1576 = vrsqrt.pop %v1526
    %v1577 = vmul.f32 %v1576, %v1526
    %v1578 = vmul.f32 %v1577, %v1576
    %v1579 = vmul.f32 0.5, %v1578
    %v1580 = vsub.f32 1.5, %v1579
    %v1581 = vmul.f32 %v1576, %v1580
    %vm1582 = vweird.f32 %v1526
    %vm1583 = vweird.f32 %v1576
    %vm1584 = vmor %vm1582, %vm1583
    %v1585 = vsel %vm1584, %v1576, %v1581
    %v1586 = vrsqrt.pop %v1527
    %v1587 = vmul.f32 %v1586, %v1527
    %v1588 = vmul.f32 %v1587, %v1586
    %v1589 = vmul.f32 0.5, %v1588
    %v1590 = vsub.f32 1.5, %v1589
    %v1591 = vmul.f32 %v1586, %v1590
    %vm1592 = vweird.f32 %v1527
    %vm1593 = vweird.f32 %v1586
    %vm1594 = vmor %vm1592, %vm1593
    %v1595 = vsel %vm1594, %v1586, %v1591
    %v1596 = vrsqrt.pop %v1528
    %v1597 = vmul.f32 %v1596, %v1528
    %v1598 = vmul.f32 %v1597, %v1596
    %v1599 = vmul.f32 0.5, %v1598
    %v1600 = vsub.f32 1.5, %v1599
    %v1601 = vmul.f32 %v1596, %v1600
    %vm1602 = vweird.f32 %v1528
    %vm1603 = vweird.f32 %v1596
    %vm1604 = vmor %vm1602, %vm1603
    %v1605 = vsel %vm1604, %v1596, %v1601
    %v1606 = vrsqrt.pop %v1529
    %v1607 = vmul.f32 %v1606, %v1529
    %v1608 = vmul.f32 %v1607, %v1606
    %v1609 = vmul.f32 0.5, %v1608
    %v1610 = vsub.f32 1.5, %v1609
    %v1611 = vmul.f32 %v1606, %v1610
    %vm1612 = vweird.f32 %v1529
    %vm1613 = vweird.f32 %v1606
    %vm1614 = vmor %vm1612, %vm1613
    %v1615 = vsel %vm1614, %v1606, %v1611
    %v1616 = vrsqrt.pop %v1530
    %v1617 = vmul.f32 %v1616, %v1530
    %v1618 = vmul.f32 %v1617, %v1616
    %v1619 = vmul.f32 0.5, %v1618
    %v1620 = vsub.f32 1.5, %v1619
    %v1621 = vmul.f32 %v1616, %v1620
    %vm1622 = vweird.f32 %v1530
    %vm1623 = vweird.f32 %v1616
    %vm1624 = vmor %vm1622, %vm1623
    %v1625 = vsel %vm1624, %v1616, %v1621
    %v1626 = vrsqrt.pop %v1531
    %v1627 = vmul.f32 %v1626, %v1531
    %v1628 = vmul.f32 %v1627, %v1626
    %v1629 = vmul.f32 0.5, %v1628
    %v1630 = vsub.f32 1.5, %v1629
    %v1631 = vmul.f32 %v1626, %v1630
    %vm1632 = vweird.f32 %v1531
    %vm1633 = vweird.f32 %v1626
    %vm1634 = vmor %vm1632, %vm1633
    %v1635 = vsel %vm1634, %v1626, %v1631
    %v1636 = vrsqrt.pop %v1532
    %v1637 = vmul.f32 %v1636, %v1532
    %v1638 = vmul.f32 %v1637, %v1636
    %v1639 = vmul.f32 0.5, %v1638
    %v1640 = vsub.f32 1.5, %v1639
    %v1641 = vmul.f32 %v1636, %v1640
    %vm1642 = vweird.f32 %v1532
    %vm1643 = vweird.f32 %v1636
    %vm1644 = vmor %vm1642, %vm1643
    %v1645 = vsel %vm1644, %v1636, %v1641
    %v1646 = vrsqrt.pop %v1533
    %v1647 = vmul.f32 %v1646, %v1533
    %v1648 = vmul.f32 %v1647, %v1646
    %v1649 = vmul.f32 0.5, %v1648
    %v1650 = vsub.f32 1.5, %v1649
    %v1651 = vmul.f32 %v1646, %v1650
    %vm1652 = vweird.f32 %v1533
    %vm1653 = vweird.f32 %v1646
    %vm1654 = vmor %vm1652, %vm1653
    %v1655 = vsel %vm1654, %v1646, %v1651
    %v1656 = vrsqrt.pop %v1534
    %v1657 = vmul.f32 %v1656, %v1534
    %v1658 = vmul.f32 %v1657, %v1656
    %v1659 = vmul.f32 0.5, %v1658
    %v1660 = vsub.f32 1.5, %v1659
    %v1661 = vmul.f32 %v1656, %v1660
    %vm1662 = vweird.f32 %v1534
    %vm1663 = vweird.f32 %v1656
    %vm1664 = vmor %vm1662, %vm1663
    %v1665 = vsel %vm1664, %v1656, %v1661
    %v1666 = vrsqrt.pop %v1535
    %v1667 = vmul.f32 %v1666, %v1535
    %v1668 = vmul.f32 %v1667, %v1666
    %v1669 = vmul.f32 0.5, %v1668
    %v1670 = vsub.f32 1.5, %v1669
    %v1671 = vmul.f32 %v1666, %v1670
    %vm1672 = vweird.f32 %v1535
    %vm1673 = vweird.f32 %v1666
    %vm1674 = vmor %vm1672, %vm1673
    %v1675 = vsel %vm1674, %v1666, %v1671
    %v1676 = vrsqrt.pop %v1536
    %v1677 = vmul.f32 %v1676, %v1536
    %v1678 = vmul.f32 %v1677, %v1676
    %v1679 = vmul.f32 0.5, %v1678
    %v1680 = vsub.f32 1.5, %v1679
    %v1681 = vmul.f32 %v1676, %v1680
    %vm1682 = vweird.f32 %v1536
    %vm1683 = vweird.f32 %v1676
    %vm1684 = vmor %vm1682, %vm1683
    %v1685 = vsel %vm1684, %v1676, %v1681
    %v1686 = vrsqrt.pop %v1537
    %v1687 = vmul.f32 %v1686, %v1537
    %v1688 = vmul.f32 %v1687, %v1686
    %v1689 = vmul.f32 0.5, %v1688
    %v1690 = vsub.f32 1.5, %v1689
    %v1691 = vmul.f32 %v1686, %v1690
    %vm1692 = vweird.f32 %v1537
    %vm1693 = vweird.f32 %v1686
    %vm1694 = vmor %vm1692, %vm1693
    %v1695 = vsel %vm1694, %v1686, %v1691
    %v1696 = vrsqrt.pop %v1538
    %v1697 = vmul.f32 %v1696, %v1538
    %v1698 = vmul.f32 %v1697, %v1696
    %v1699 = vmul.f32 0.5, %v1698
    %v1700 = vsub.f32 1.5, %v1699
    %v1701 = vmul.f32 %v1696, %v1700
    %vm1702 = vweird.f32 %v1538
    %vm1703 = vweird.f32 %v1696
    %vm1704 = vmor %vm1702, %vm1703
    %v1705 = vsel %vm1704, %v1696, %v1701
    %v1706 = vrsqrt.pop %v1539
    %v1707 = vmul.f32 %v1706, %v1539
    %v1708 = vmul.f32 %v1707, %v1706
    %v1709 = vmul.f32 0.5, %v1708
    %v1710 = vsub.f32 1.5, %v1709
    %v1711 = vmul.f32 %v1706, %v1710
    %vm1712 = vweird.f32 %v1539
    %vm1713 = vweird.f32 %v1706
    %vm1714 = vmor %vm1712, %vm1713
    %v1715 = vsel %vm1714, %v1706, %v1711
    %v1716 = vrsqrt.pop %v1540
    %v1717 = vmul.f32 %v1716, %v1540
    %v1718 = vmul.f32 %v1717, %v1716
    %v1719 = vmul.f32 0.5, %v1718
    %v1720 = vsub.f32 1.5, %v1719
    %v1721 = vmul.f32 %v1716, %v1720
    %vm1722 = vweird.f32 %v1540
    %vm1723 = vweird.f32 %v1716
    %vm1724 = vmor %vm1722, %vm1723
    %v1725 = vsel %vm1724, %v1716, %v1721
    %v1726 = vrsqrt.pop %v1541
    %v1727 = vmul.f32 %v1726, %v1541
    %v1728 = vmul.f32 %v1727, %v1726
    %v1729 = vmul.f32 0.5, %v1728
    %v1730 = vsub.f32 1.5, %v1729
    %v1731 = vmul.f32 %v1726, %v1730
    %vm1732 = vweird.f32 %v1541
    %vm1733 = vweird.f32 %v1726
    %vm1734 = vmor %vm1732, %vm1733
    %v1735 = vsel %vm1734, %v1726, %v1731
    %v1736 = vrsqrt.pop %v1542
    %v1737 = vmul.f32 %v1736, %v1542
    %v1738 = vmul.f32 %v1737, %v1736
    %v1739 = vmul.f32 0.5, %v1738
    %v1740 = vsub.f32 1.5, %v1739
    %v1741 = vmul.f32 %v1736, %v1740
    %vm1742 = vweird.f32 %v1542
    %vm1743 = vweird.f32 %v1736
    %vm1744 = vmor %vm1742, %vm1743
    %v1745 = vsel %vm1744, %v1736, %v1741
    %v1746 = vrsqrt.pop %v1543
    %v1747 = vmul.f32 %v1746, %v1543
    %v1748 = vmul.f32 %v1747, %v1746
    %v1749 = vmul.f32 0.5, %v1748
    %v1750 = vsub.f32 1.5, %v1749
    %v1751 = vmul.f32 %v1746, %v1750
    %vm1752 = vweird.f32 %v1543
    %vm1753 = vweird.f32 %v1746
    %vm1754 = vmor %vm1752, %vm1753
    %v1755 = vsel %vm1754, %v1746, %v1751
    %v1756 = vrsqrt.pop %v1544
    %v1757 = vmul.f32 %v1756, %v1544
    %v1758 = vmul.f32 %v1757, %v1756
    %v1759 = vmul.f32 0.5, %v1758
    %v1760 = vsub.f32 1.5, %v1759
    %v1761 = vmul.f32 %v1756, %v1760
    %vm1762 = vweird.f32 %v1544
    %vm1763 = vweird.f32 %v1756
    %vm1764 = vmor %vm1762, %vm1763
    %v1765 = vsel %vm1764, %v1756, %v1761
    %v1766 = vrsqrt.pop %v1545
    %v1767 = vmul.f32 %v1766, %v1545
    %v1768 = vmul.f32 %v1767, %v1766
    %v1769 = vmul.f32 0.5, %v1768
    %v1770 = vsub.f32 1.5, %v1769
    %v1771 = vmul.f32 %v1766, %v1770
    %vm1772 = vweird.f32 %v1545
    %vm1773 = vweird.f32 %v1766
    %vm1774 = vmor %vm1772, %vm1773
    %v1775 = vsel %vm1774, %v1766, %v1771
    %v1776 = vrsqrt.pop %v1546
    %v1777 = vmul.f32 %v1776, %v1546
    %v1778 = vmul.f32 %v1777, %v1776
    %v1779 = vmul.f32 0.5, %v1778
    %v1780 = vsub.f32 1.5, %v1779
    %v1781 = vmul.f32 %v1776, %v1780
    %vm1782 = vweird.f32 %v1546
    %vm1783 = vweird.f32 %v1776
    %vm1784 = vmor %vm1782, %vm1783
    %v1785 = vsel %vm1784, %v1776, %v1781
    %v1786 = vrsqrt.pop %v1547
    %v1787 = vmul.f32 %v1786, %v1547
    %v1788 = vmul.f32 %v1787, %v1786
    %v1789 = vmul.f32 0.5, %v1788
    %v1790 = vsub.f32 1.5, %v1789
    %v1791 = vmul.f32 %v1786, %v1790
    %vm1792 = vweird.f32 %v1547
    %vm1793 = vweird.f32 %v1786
    %vm1794 = vmor %vm1792, %vm1793
    %v1795 = vsel %vm1794, %v1786, %v1791
    %v1796 = vrsqrt.pop %v1548
    %v1797 = vmul.f32 %v1796, %v1548
    %v1798 = vmul.f32 %v1797, %v1796
    %v1799 = vmul.f32 0.5, %v1798
    %v1800 = vsub.f32 1.5, %v1799
    %v1801 = vmul.f32 %v1796, %v1800
    %vm1802 = vweird.f32 %v1548
    %vm1803 = vweird.f32 %v1796
    %vm1804 = vmor %vm1802, %vm1803
    %v1805 = vsel %vm1804, %v1796, %v1801
    %v1806 = vrsqrt.pop %v1549
    %v1807 = vmul.f32 %v1806, %v1549
    %v1808 = vmul.f32 %v1807, %v1806
    %v1809 = vmul.f32 0.5, %v1808
    %v1810 = vsub.f32 1.5, %v1809
    %v1811 = vmul.f32 %v1806, %v1810
    %vm1812 = vweird.f32 %v1549
    %vm1813 = vweird.f32 %v1806
    %vm1814 = vmor %vm1812, %vm1813
    %v1815 = vsel %vm1814, %v1806, %v1811
    %v1816 = vrsqrt.pop %v1550
    %v1817 = vmul.f32 %v1816, %v1550
    %v1818 = vmul.f32 %v1817, %v1816
    %v1819 = vmul.f32 0.5, %v1818
    %v1820 = vsub.f32 1.5, %v1819
    %v1821 = vmul.f32 %v1816, %v1820
    %vm1822 = vweird.f32 %v1550
    %vm1823 = vweird.f32 %v1816
    %vm1824 = vmor %vm1822, %vm1823
    %v1825 = vsel %vm1824, %v1816, %v1821
    %v1826 = vrsqrt.pop %v1551
    %v1827 = vmul.f32 %v1826, %v1551
    %v1828 = vmul.f32 %v1827, %v1826
    %v1829 = vmul.f32 0.5, %v1828
    %v1830 = vsub.f32 1.5, %v1829
    %v1831 = vmul.f32 %v1826, %v1830
    %vm1832 = vweird.f32 %v1551
    %vm1833 = vweird.f32 %v1826
    %vm1834 = vmor %vm1832, %vm1833
    %v1835 = vsel %vm1834, %v1826, %v1831
    %v1836 = vrsqrt.pop %v1552
    %v1837 = vmul.f32 %v1836, %v1552
    %v1838 = vmul.f32 %v1837, %v1836
    %v1839 = vmul.f32 0.5, %v1838
    %v1840 = vsub.f32 1.5, %v1839
    %v1841 = vmul.f32 %v1836, %v1840
    %vm1842 = vweird.f32 %v1552
    %vm1843 = vweird.f32 %v1836
    %vm1844 = vmor %vm1842, %vm1843
    %v1845 = vsel %vm1844, %v1836, %v1841
    %v1846 = vrsqrt.pop %v1553
    %v1847 = vmul.f32 %v1846, %v1553
    %v1848 = vmul.f32 %v1847, %v1846
    %v1849 = vmul.f32 0.5, %v1848
    %v1850 = vsub.f32 1.5, %v1849
    %v1851 = vmul.f32 %v1846, %v1850
    %vm1852 = vweird.f32 %v1553
    %vm1853 = vweird.f32 %v1846
    %vm1854 = vmor %vm1852, %vm1853
    %v1855 = vsel %vm1854, %v1846, %v1851
    %v1856 = vrsqrt.pop %v1554
    %v1857 = vmul.f32 %v1856, %v1554
    %v1858 = vmul.f32 %v1857, %v1856
    %v1859 = vmul.f32 0.5, %v1858
    %v1860 = vsub.f32 1.5, %v1859
    %v1861 = vmul.f32 %v1856, %v1860
    %vm1862 = vweird.f32 %v1554
    %vm1863 = vweird.f32 %v1856
    %vm1864 = vmor %vm1862, %vm1863
    %v1865 = vsel %vm1864, %v1856, %v1861
    %v1866 = vrsqrt.pop %v1555
    %v1867 = vmul.f32 %v1866, %v1555
    %v1868 = vmul.f32 %v1867, %v1866
    %v1869 = vmul.f32 0.5, %v1868
    %v1870 = vsub.f32 1.5, %v1869
    %v1871 = vmul.f32 %v1866, %v1870
    %vm1872 = vweird.f32 %v1555
    %vm1873 = vweird.f32 %v1866
    %vm1874 = vmor %vm1872, %vm1873
    %v1875 = vsel %vm1874, %v1866, %v1871
    %v1876 = vmul.f32 %v1492, %v1565
    %v1877 = vmul.f32 %v1493, %v1575
    %v1878 = vmul.f32 %v1494, %v1585
    %v1879 = vmul.f32 %v1495, %v1595
    %v1880 = vmul.f32 %v1496, %v1605
    %v1881 = vmul.f32 %v1497, %v1615
    %v1882 = vmul.f32 %v1498, %v1625
    %v1883 = vmul.f32 %v1499, %v1635
    %v1884 = vmul.f32 %v1500, %v1645
    %v1885 = vmul.f32 %v1501, %v1655
    %v1886 = vmul.f32 %v1502, %v1665
    %v1887 = vmul.f32 %v1503, %v1675
    %v1888 = vmul.f32 %v1504, %v1685
    %v1889 = vmul.f32 %v1505, %v1695
    %v1890 = vmul.f32 %v1506, %v1705
    %v1891 = vmul.f32 %v1507, %v1715
    %v1892 = vmul.f32 %v1508, %v1725
    %v1893 = vmul.f32 %v1509, %v1735
    %v1894 = vmul.f32 %v1510, %v1745
    %v1895 = vmul.f32 %v1511, %v1755
    %v1896 = vmul.f32 %v1512, %v1765
    %v1897 = vmul.f32 %v1513, %v1775
    %v1898 = vmul.f32 %v1514, %v1785
    %v1899 = vmul.f32 %v1515, %v1795
    %v1900 = vmul.f32 %v1516, %v1805
    %v1901 = vmul.f32 %v1517, %v1815
    %v1902 = vmul.f32 %v1518, %v1825
    %v1903 = vmul.f32 %v1519, %v1835
    %v1904 = vmul.f32 %v1520, %v1845
    %v1905 = vmul.f32 %v1521, %v1855
    %v1906 = vmul.f32 %v1522, %v1865
    %v1907 = vmul.f32 %v1523, %v1875
    %v1908 = vperm.slane %v39, 3
    %v1909 = vmul.f32 %v1876, %v1908
    %v1910 = vmul.f32 %v1877, %v1908
    %v1911 = vmul.f32 %v1878, %v1908
    %v1912 = vmul.f32 %v1879, %v1908
    %v1913 = vmul.f32 %v1880, %v1908
    %v1914 = vmul.f32 %v1881, %v1908
    %v1915 = vmul.f32 %v1882, %v1908
    %v1916 = vmul.f32 %v1883, %v1908
    %v1917 = vmul.f32 %v1884, %v1908
    %v1918 = vmul.f32 %v1885, %v1908
    %v1919 = vmul.f32 %v1886, %v1908
    %v1920 = vmul.f32 %v1887, %v1908
    %v1921 = vmul.f32 %v1888, %v1908
    %v1922 = vmul.f32 %v1889, %v1908
    %v1923 = vmul.f32 %v1890, %v1908
    %v1924 = vmul.f32 %v1891, %v1908
    %v1925 = vmul.f32 %v1892, %v1908
    %v1926 = vmul.f32 %v1893, %v1908
    %v1927 = vmul.f32 %v1894, %v1908
    %v1928 = vmul.f32 %v1895, %v1908
    %v1929 = vmul.f32 %v1896, %v1908
    %v1930 = vmul.f32 %v1897, %v1908
    %v1931 = vmul.f32 %v1898, %v1908
    %v1932 = vmul.f32 %v1899, %v1908
    %v1933 = vmul.f32 %v1900, %v1908
    %v1934 = vmul.f32 %v1901, %v1908
    %v1935 = vmul.f32 %v1902, %v1908
    %v1936 = vmul.f32 %v1903, %v1908
    %v1937 = vmul.f32 %v1904, %v1908
    %v1938 = vmul.f32 %v1905, %v1908
    %v1939 = vmul.f32 %v1906, %v1908
    %v1940 = vmul.f32 %v1907, %v1908
    %v1941 = vperm.slane %v39, 4
    %v1942 = vadd.f32 %v1909, %v1941
    %v1943 = vadd.f32 %v1910, %v1941
    %v1944 = vadd.f32 %v1911, %v1941
    %v1945 = vadd.f32 %v1912, %v1941
    %v1946 = vadd.f32 %v1913, %v1941
    %v1947 = vadd.f32 %v1914, %v1941
    %v1948 = vadd.f32 %v1915, %v1941
    %v1949 = vadd.f32 %v1916, %v1941
    %v1950 = vadd.f32 %v1917, %v1941
    %v1951 = vadd.f32 %v1918, %v1941
    %v1952 = vadd.f32 %v1919, %v1941
    %v1953 = vadd.f32 %v1920, %v1941
    %v1954 = vadd.f32 %v1921, %v1941
    %v1955 = vadd.f32 %v1922, %v1941
    %v1956 = vadd.f32 %v1923, %v1941
    %v1957 = vadd.f32 %v1924, %v1941
    %v1958 = vadd.f32 %v1925, %v1941
    %v1959 = vadd.f32 %v1926, %v1941
    %v1960 = vadd.f32 %v1927, %v1941
    %v1961 = vadd.f32 %v1928, %v1941
    %v1962 = vadd.f32 %v1929, %v1941
    %v1963 = vadd.f32 %v1930, %v1941
    %v1964 = vadd.f32 %v1931, %v1941
    %v1965 = vadd.f32 %v1932, %v1941
    %v1966 = vadd.f32 %v1933, %v1941
    %v1967 = vadd.f32 %v1934, %v1941
    %v1968 = vadd.f32 %v1935, %v1941
    %v1969 = vadd.f32 %v1936, %v1941
    %v1970 = vadd.f32 %v1937, %v1941
    %v1971 = vadd.f32 %v1938, %v1941
    %v1972 = vadd.f32 %v1939, %v1941
    %v1973 = vadd.f32 %v1940, %v1941
    %v1974 = vmax.f32 %v1942, 0.0
    %v1975 = vmax.f32 %v1943, 0.0
    %v1976 = vmax.f32 %v1944, 0.0
    %v1977 = vmax.f32 %v1945, 0.0
    %v1978 = vmax.f32 %v1946, 0.0
    %v1979 = vmax.f32 %v1947, 0.0
    %v1980 = vmax.f32 %v1948, 0.0
    %v1981 = vmax.f32 %v1949, 0.0
    %v1982 = vmax.f32 %v1950, 0.0
    %v1983 = vmax.f32 %v1951, 0.0
    %v1984 = vmax.f32 %v1952, 0.0
    %v1985 = vmax.f32 %v1953, 0.0
    %v1986 = vmax.f32 %v1954, 0.0
    %v1987 = vmax.f32 %v1955, 0.0
    %v1988 = vmax.f32 %v1956, 0.0
    %v1989 = vmax.f32 %v1957, 0.0
    %v1990 = vmax.f32 %v1958, 0.0
    %v1991 = vmax.f32 %v1959, 0.0
    %v1992 = vmax.f32 %v1960, 0.0
    %v1993 = vmax.f32 %v1961, 0.0
    %v1994 = vmax.f32 %v1962, 0.0
    %v1995 = vmax.f32 %v1963, 0.0
    %v1996 = vmax.f32 %v1964, 0.0
    %v1997 = vmax.f32 %v1965, 0.0
    %v1998 = vmax.f32 %v1966, 0.0
    %v1999 = vmax.f32 %v1967, 0.0
    %v2000 = vmax.f32 %v1968, 0.0
    %v2001 = vmax.f32 %v1969, 0.0
    %v2002 = vmax.f32 %v1970, 0.0
    %v2003 = vmax.f32 %v1971, 0.0
    %v2004 = vmax.f32 %v1972, 0.0
    %v2005 = vmax.f32 %v1973, 0.0
    %v2006 = vpack.c.bf16 %v1975, %v1974
    %v2007 = vpack.c.bf16 %v1977, %v1976
    %v2008 = vpack.c.bf16 %v1979, %v1978
    %v2009 = vpack.c.bf16 %v1981, %v1980
    %v2010 = vpack.c.bf16 %v1983, %v1982
    %v2011 = vpack.c.bf16 %v1985, %v1984
    %v2012 = vpack.c.bf16 %v1987, %v1986
    %v2013 = vpack.c.bf16 %v1989, %v1988
    %v2014 = vpack.c.bf16 %v1991, %v1990
    %v2015 = vpack.c.bf16 %v1993, %v1992
    %v2016 = vpack.c.bf16 %v1995, %v1994
    %v2017 = vpack.c.bf16 %v1997, %v1996
    %v2018 = vpack.c.bf16 %v1999, %v1998
    %v2019 = vpack.c.bf16 %v2001, %v2000
    %v2020 = vpack.c.bf16 %v2003, %v2002
    %v2021 = vpack.c.bf16 %v2005, %v2004
    %v2022 = vld [vmem:[%s7] sm:$0xf]
    %v2023 = vld [vmem:[%s7 + $0x4] sm:$0xf]
    %v2024 = vld [vmem:[%s7 + $0x8] sm:$0xf]
    %v2025 = vld [vmem:[%s7 + $0xc] sm:$0xf]
    %v2026 = vld [vmem:[%s7 + $0x10] sm:$0xf]
    %v2027 = vld [vmem:[%s7 + $0x14] sm:$0xf]
    %v2028 = vld [vmem:[%s7 + $0x18] sm:$0xf]
    %v2029 = vld [vmem:[%s7 + $0x1c] sm:$0xf]
    %v2030 = vld [vmem:[%s7 + $0x20] sm:$0xf]
    %v2031 = vld [vmem:[%s7 + $0x24] sm:$0xf]
    %v2032 = vld [vmem:[%s7 + $0x28] sm:$0xf]
    %v2033 = vld [vmem:[%s7 + $0x2c] sm:$0xf]
    %v2034 = vld [vmem:[%s7 + $0x30] sm:$0xf]
    %v2035 = vld [vmem:[%s7 + $0x34] sm:$0xf]
    %v2036 = vld [vmem:[%s7 + $0x38] sm:$0xf]
    %v2037 = vld [vmem:[%s7 + $0x3c] sm:$0xf]
    %v2038 = vperm.slane %v39, 5
    %v2055 = vunpack.c.l.b16 %v2022
    %v2056 = vunpack.c.l.b16 %v2023
    %v2057 = vunpack.c.l.b16 %v2024
    %v2058 = vunpack.c.l.b16 %v2025
    %v2059 = vunpack.c.l.b16 %v2026
    %v2060 = vunpack.c.l.b16 %v2027
    %v2061 = vunpack.c.l.b16 %v2028
    %v2062 = vunpack.c.l.b16 %v2029
    %v2063 = vunpack.c.l.b16 %v2030
    %v2064 = vunpack.c.l.b16 %v2031
    %v2065 = vunpack.c.l.b16 %v2032
    %v2066 = vunpack.c.l.b16 %v2033
    %v2067 = vunpack.c.l.b16 %v2034
    %v2068 = vunpack.c.l.b16 %v2035
    %v2069 = vunpack.c.l.b16 %v2036
    %v2070 = vunpack.c.l.b16 %v2037
    %v2071 = vpack.c.b16 %v2056, %v2055
    %v2072 = vpack.c.b16 %v2058, %v2057
    %v2073 = vpack.c.b16 %v2060, %v2059
    %v2074 = vpack.c.b16 %v2062, %v2061
    %v2075 = vpack.c.b16 %v2064, %v2063
    %v2076 = vpack.c.b16 %v2066, %v2065
    %v2077 = vpack.c.b16 %v2068, %v2067
    %v2078 = vpack.c.b16 %v2070, %v2069
    %2087 = vmatpush.bf16.msra.mxu0 %v2078
    %2088 = vmatpush.bf16.msra.mxu0 %v2077
    %2089 = vmatpush.bf16.msra.mxu0 %v2076
    %2090 = vmatpush.bf16.msra.mxu0 %v2075
    %2091 = vmatpush.bf16.msra.mxu0 %v2074
    %2092 = vmatpush.bf16.msra.mxu0 %v2073
    %2093 = vmatpush.bf16.msra.mxu0 %v2072
    %2094 = vmatpush.bf16.msra.mxu0 %v2071
    %2095 = vmatmul.bf16.gmra.mxu0 %v2006
    %v2096 = vpop.f32.mrf.mxu0
    %v2097 = vadd.f32 %v2038, %v2096
    %v2098 = vpop.f32.mrf.mxu0
    %v2099 = vadd.f32 %v2038, %v2098
    %2100 = vmatmul.bf16.gmra.mxu0 %v2007
    %v2101 = vpop.f32.mrf.mxu0
    %v2102 = vadd.f32 %v2038, %v2101
    %v2103 = vpop.f32.mrf.mxu0
    %v2104 = vadd.f32 %v2038, %v2103
    %2105 = vmatmul.bf16.gmra.mxu0 %v2008
    %v2106 = vpop.f32.mrf.mxu0
    %v2107 = vadd.f32 %v2038, %v2106
    %v2108 = vpop.f32.mrf.mxu0
    %v2109 = vadd.f32 %v2038, %v2108
    %2110 = vmatmul.bf16.gmra.mxu0 %v2009
    %v2111 = vpop.f32.mrf.mxu0
    %v2112 = vadd.f32 %v2038, %v2111
    %v2113 = vpop.f32.mrf.mxu0
    %v2114 = vadd.f32 %v2038, %v2113
    %2115 = vmatmul.bf16.gmra.mxu0 %v2010
    %v2116 = vpop.f32.mrf.mxu0
    %v2117 = vadd.f32 %v2038, %v2116
    %v2118 = vpop.f32.mrf.mxu0
    %v2119 = vadd.f32 %v2038, %v2118
    %2120 = vmatmul.bf16.gmra.mxu0 %v2011
    %v2121 = vpop.f32.mrf.mxu0
    %v2122 = vadd.f32 %v2038, %v2121
    %v2123 = vpop.f32.mrf.mxu0
    %v2124 = vadd.f32 %v2038, %v2123
    %2125 = vmatmul.bf16.gmra.mxu0 %v2012
    %v2126 = vpop.f32.mrf.mxu0
    %v2127 = vadd.f32 %v2038, %v2126
    %v2128 = vpop.f32.mrf.mxu0
    %v2129 = vadd.f32 %v2038, %v2128
    %2130 = vmatmul.bf16.gmra.mxu0 %v2013
    %v2131 = vpop.f32.mrf.mxu0
    %v2132 = vadd.f32 %v2038, %v2131
    %v2133 = vpop.f32.mrf.mxu0
    %v2134 = vadd.f32 %v2038, %v2133
    %2135 = vmatmul.bf16.gmra.mxu0 %v2014
    %v2136 = vpop.f32.mrf.mxu0
    %v2137 = vadd.f32 %v2038, %v2136
    %v2138 = vpop.f32.mrf.mxu0
    %v2139 = vadd.f32 %v2038, %v2138
    %2140 = vmatmul.bf16.gmra.mxu0 %v2015
    %v2141 = vpop.f32.mrf.mxu0
    %v2142 = vadd.f32 %v2038, %v2141
    %v2143 = vpop.f32.mrf.mxu0
    %v2144 = vadd.f32 %v2038, %v2143
    %2145 = vmatmul.bf16.gmra.mxu0 %v2016
    %v2146 = vpop.f32.mrf.mxu0
    %v2147 = vadd.f32 %v2038, %v2146
    %v2148 = vpop.f32.mrf.mxu0
    %v2149 = vadd.f32 %v2038, %v2148
    %2150 = vmatmul.bf16.gmra.mxu0 %v2017
    %v2151 = vpop.f32.mrf.mxu0
    %v2152 = vadd.f32 %v2038, %v2151
    %v2153 = vpop.f32.mrf.mxu0
    %v2154 = vadd.f32 %v2038, %v2153
    %2155 = vmatmul.bf16.gmra.mxu0 %v2018
    %v2156 = vpop.f32.mrf.mxu0
    %v2157 = vadd.f32 %v2038, %v2156
    %v2158 = vpop.f32.mrf.mxu0
    %v2159 = vadd.f32 %v2038, %v2158
    %2160 = vmatmul.bf16.gmra.mxu0 %v2019
    %v2161 = vpop.f32.mrf.mxu0
    %v2162 = vadd.f32 %v2038, %v2161
    %v2163 = vpop.f32.mrf.mxu0
    %v2164 = vadd.f32 %v2038, %v2163
    %2165 = vmatmul.bf16.gmra.mxu0 %v2020
    %v2166 = vpop.f32.mrf.mxu0
    %v2167 = vadd.f32 %v2038, %v2166
    %v2168 = vpop.f32.mrf.mxu0
    %v2169 = vadd.f32 %v2038, %v2168
    %2170 = vmatmul.bf16.gmra.mxu0 %v2021
    %v2171 = vpop.f32.mrf.mxu0
    %v2172 = vadd.f32 %v2038, %v2171
    %v2173 = vpop.f32.mrf.mxu0
    %v2174 = vadd.f32 %v2038, %v2173
    %2175 = vdwg.mxu0
    %v2176 = vld [vmem:[%s8] sm:$0xf]
    %v2177 = vld [vmem:[%s8 + $0x4] sm:$0xf]
    %v2178 = vld [vmem:[%s8 + $0x8] sm:$0xf]
    %v2179 = vld [vmem:[%s8 + $0xc] sm:$0xf]
    %v2180 = vld [vmem:[%s8 + $0x10] sm:$0xf]
    %v2181 = vld [vmem:[%s8 + $0x14] sm:$0xf]
    %v2182 = vld [vmem:[%s8 + $0x18] sm:$0xf]
    %v2183 = vld [vmem:[%s8 + $0x1c] sm:$0xf]
    %v2184 = vld [vmem:[%s8 + $0x20] sm:$0xf]
    %v2185 = vld [vmem:[%s8 + $0x24] sm:$0xf]
    %v2186 = vld [vmem:[%s8 + $0x28] sm:$0xf]
    %v2187 = vld [vmem:[%s8 + $0x2c] sm:$0xf]
    %v2188 = vld [vmem:[%s8 + $0x30] sm:$0xf]
    %v2189 = vld [vmem:[%s8 + $0x34] sm:$0xf]
    %v2190 = vld [vmem:[%s8 + $0x38] sm:$0xf]
    %v2191 = vld [vmem:[%s8 + $0x3c] sm:$0xf]
    %v2208 = vunpack.c.l.b16 %v2176
    %v2209 = vunpack.c.l.b16 %v2177
    %v2210 = vunpack.c.l.b16 %v2178
    %v2211 = vunpack.c.l.b16 %v2179
    %v2212 = vunpack.c.l.b16 %v2180
    %v2213 = vunpack.c.l.b16 %v2181
    %v2214 = vunpack.c.l.b16 %v2182
    %v2215 = vunpack.c.l.b16 %v2183
    %v2216 = vunpack.c.l.b16 %v2184
    %v2217 = vunpack.c.l.b16 %v2185
    %v2218 = vunpack.c.l.b16 %v2186
    %v2219 = vunpack.c.l.b16 %v2187
    %v2220 = vunpack.c.l.b16 %v2188
    %v2221 = vunpack.c.l.b16 %v2189
    %v2222 = vunpack.c.l.b16 %v2190
    %v2223 = vunpack.c.l.b16 %v2191
    %v2224 = vpack.c.b16 %v2209, %v2208
    %v2225 = vpack.c.b16 %v2211, %v2210
    %v2226 = vpack.c.b16 %v2213, %v2212
    %v2227 = vpack.c.b16 %v2215, %v2214
    %v2228 = vpack.c.b16 %v2217, %v2216
    %v2229 = vpack.c.b16 %v2219, %v2218
    %v2230 = vpack.c.b16 %v2221, %v2220
    %v2231 = vpack.c.b16 %v2223, %v2222
    %2240 = vmatpush.bf16.msra.mxu0 %v2231
    %2241 = vmatpush.bf16.msra.mxu0 %v2230
    %2242 = vmatpush.bf16.msra.mxu0 %v2229
    %2243 = vmatpush.bf16.msra.mxu0 %v2228
    %2244 = vmatpush.bf16.msra.mxu0 %v2227
    %2245 = vmatpush.bf16.msra.mxu0 %v2226
    %2246 = vmatpush.bf16.msra.mxu0 %v2225
    %2247 = vmatpush.bf16.msra.mxu0 %v2224
    %2248 = vmatmul.bf16.gmra.mxu0 %v2006
    %v2249 = vpop.f32.mrf.mxu0
    %v2250 = vadd.f32 0.0, %v2249
    %v2251 = vpop.f32.mrf.mxu0
    %v2252 = vadd.f32 0.0, %v2251
    %2253 = vmatmul.bf16.gmra.mxu0 %v2007
    %v2254 = vpop.f32.mrf.mxu0
    %v2255 = vadd.f32 0.0, %v2254
    %v2256 = vpop.f32.mrf.mxu0
    %v2257 = vadd.f32 0.0, %v2256
    %2258 = vmatmul.bf16.gmra.mxu0 %v2008
    %v2259 = vpop.f32.mrf.mxu0
    %v2260 = vadd.f32 0.0, %v2259
    %v2261 = vpop.f32.mrf.mxu0
    %v2262 = vadd.f32 0.0, %v2261
    %2263 = vmatmul.bf16.gmra.mxu0 %v2009
    %v2264 = vpop.f32.mrf.mxu0
    %v2265 = vadd.f32 0.0, %v2264
    %v2266 = vpop.f32.mrf.mxu0
    %v2267 = vadd.f32 0.0, %v2266
    %2268 = vmatmul.bf16.gmra.mxu0 %v2010
    %v2269 = vpop.f32.mrf.mxu0
    %v2270 = vadd.f32 0.0, %v2269
    %v2271 = vpop.f32.mrf.mxu0
    %v2272 = vadd.f32 0.0, %v2271
    %2273 = vmatmul.bf16.gmra.mxu0 %v2011
    %v2274 = vpop.f32.mrf.mxu0
    %v2275 = vadd.f32 0.0, %v2274
    %v2276 = vpop.f32.mrf.mxu0
    %v2277 = vadd.f32 0.0, %v2276
    %2278 = vmatmul.bf16.gmra.mxu0 %v2012
    %v2279 = vpop.f32.mrf.mxu0
    %v2280 = vadd.f32 0.0, %v2279
    %v2281 = vpop.f32.mrf.mxu0
    %v2282 = vadd.f32 0.0, %v2281
    %2283 = vmatmul.bf16.gmra.mxu0 %v2013
    %v2284 = vpop.f32.mrf.mxu0
    %v2285 = vadd.f32 0.0, %v2284
    %v2286 = vpop.f32.mrf.mxu0
    %v2287 = vadd.f32 0.0, %v2286
    %2288 = vmatmul.bf16.gmra.mxu0 %v2014
    %v2289 = vpop.f32.mrf.mxu0
    %v2290 = vadd.f32 0.0, %v2289
    %v2291 = vpop.f32.mrf.mxu0
    %v2292 = vadd.f32 0.0, %v2291
    %2293 = vmatmul.bf16.gmra.mxu0 %v2015
    %v2294 = vpop.f32.mrf.mxu0
    %v2295 = vadd.f32 0.0, %v2294
    %v2296 = vpop.f32.mrf.mxu0
    %v2297 = vadd.f32 0.0, %v2296
    %2298 = vmatmul.bf16.gmra.mxu0 %v2016
    %v2299 = vpop.f32.mrf.mxu0
    %v2300 = vadd.f32 0.0, %v2299
    %v2301 = vpop.f32.mrf.mxu0
    %v2302 = vadd.f32 0.0, %v2301
    %2303 = vmatmul.bf16.gmra.mxu0 %v2017
    %v2304 = vpop.f32.mrf.mxu0
    %v2305 = vadd.f32 0.0, %v2304
    %v2306 = vpop.f32.mrf.mxu0
    %v2307 = vadd.f32 0.0, %v2306
    %2308 = vmatmul.bf16.gmra.mxu0 %v2018
    %v2309 = vpop.f32.mrf.mxu0
    %v2310 = vadd.f32 0.0, %v2309
    %v2311 = vpop.f32.mrf.mxu0
    %v2312 = vadd.f32 0.0, %v2311
    %2313 = vmatmul.bf16.gmra.mxu0 %v2019
    %v2314 = vpop.f32.mrf.mxu0
    %v2315 = vadd.f32 0.0, %v2314
    %v2316 = vpop.f32.mrf.mxu0
    %v2317 = vadd.f32 0.0, %v2316
    %2318 = vmatmul.bf16.gmra.mxu0 %v2020
    %v2319 = vpop.f32.mrf.mxu0
    %v2320 = vadd.f32 0.0, %v2319
    %v2321 = vpop.f32.mrf.mxu0
    %v2322 = vadd.f32 0.0, %v2321
    %2323 = vmatmul.bf16.gmra.mxu0 %v2021
    %v2324 = vpop.f32.mrf.mxu0
    %v2325 = vadd.f32 0.0, %v2324
    %v2326 = vpop.f32.mrf.mxu0
    %v2327 = vadd.f32 0.0, %v2326
    %2328 = vdwg.mxu0
    %v2329 = vpack.c.bf16 %v2252, %v2250
    %v2330 = vpack.c.bf16 %v2257, %v2255
    %v2331 = vpack.c.bf16 %v2262, %v2260
    %v2332 = vpack.c.bf16 %v2267, %v2265
    %v2333 = vpack.c.bf16 %v2272, %v2270
    %v2334 = vpack.c.bf16 %v2277, %v2275
    %v2335 = vpack.c.bf16 %v2282, %v2280
    %v2336 = vpack.c.bf16 %v2287, %v2285
    %v2337 = vpack.c.bf16 %v2292, %v2290
    %v2338 = vpack.c.bf16 %v2297, %v2295
    %v2339 = vpack.c.bf16 %v2302, %v2300
    %v2340 = vpack.c.bf16 %v2307, %v2305
    %v2341 = vpack.c.bf16 %v2312, %v2310
    %v2342 = vpack.c.bf16 %v2317, %v2315
    %v2343 = vpack.c.bf16 %v2322, %v2320
    %v2344 = vpack.c.bf16 %v2327, %v2325
    %v2377 = vunpack.c.l.b16 %v40
    %v2378 = vunpack.c.h.b16 %v40
    %v2379 = vunpack.c.l.b16 %v41
    %v2380 = vunpack.c.h.b16 %v41
    %v2381 = vunpack.c.l.b16 %v42
    %v2382 = vunpack.c.h.b16 %v42
    %v2383 = vunpack.c.l.b16 %v43
    %v2384 = vunpack.c.h.b16 %v43
    %v2385 = vunpack.c.l.b16 %v44
    %v2386 = vunpack.c.h.b16 %v44
    %v2387 = vunpack.c.l.b16 %v45
    %v2388 = vunpack.c.h.b16 %v45
    %v2389 = vunpack.c.l.b16 %v46
    %v2390 = vunpack.c.h.b16 %v46
    %v2391 = vunpack.c.l.b16 %v47
    %v2392 = vunpack.c.h.b16 %v47
    %v2393 = vunpack.c.l.b16 %v48
    %v2394 = vunpack.c.h.b16 %v48
    %v2395 = vunpack.c.l.b16 %v49
    %v2396 = vunpack.c.h.b16 %v49
    %v2397 = vunpack.c.l.b16 %v50
    %v2398 = vunpack.c.h.b16 %v50
    %v2399 = vunpack.c.l.b16 %v51
    %v2400 = vunpack.c.h.b16 %v51
    %v2401 = vunpack.c.l.b16 %v52
    %v2402 = vunpack.c.h.b16 %v52
    %v2403 = vunpack.c.l.b16 %v53
    %v2404 = vunpack.c.h.b16 %v53
    %v2405 = vunpack.c.l.b16 %v54
    %v2406 = vunpack.c.h.b16 %v54
    %v2407 = vunpack.c.l.b16 %v55
    %v2408 = vunpack.c.h.b16 %v55
    %v2409 = vunpack.c.l.b16 %v56
    %v2410 = vunpack.c.h.b16 %v56
    %v2411 = vunpack.c.l.b16 %v57
    %v2412 = vunpack.c.h.b16 %v57
    %v2413 = vunpack.c.l.b16 %v58
    %v2414 = vunpack.c.h.b16 %v58
    %v2415 = vunpack.c.l.b16 %v59
    %v2416 = vunpack.c.h.b16 %v59
    %v2417 = vunpack.c.l.b16 %v60
    %v2418 = vunpack.c.h.b16 %v60
    %v2419 = vunpack.c.l.b16 %v61
    %v2420 = vunpack.c.h.b16 %v61
    %v2421 = vunpack.c.l.b16 %v62
    %v2422 = vunpack.c.h.b16 %v62
    %v2423 = vunpack.c.l.b16 %v63
    %v2424 = vunpack.c.h.b16 %v63
    %v2425 = vunpack.c.l.b16 %v64
    %v2426 = vunpack.c.h.b16 %v64
    %v2427 = vunpack.c.l.b16 %v65
    %v2428 = vunpack.c.h.b16 %v65
    %v2429 = vunpack.c.l.b16 %v66
    %v2430 = vunpack.c.h.b16 %v66
    %v2431 = vunpack.c.l.b16 %v67
    %v2432 = vunpack.c.h.b16 %v67
    %v2433 = vunpack.c.l.b16 %v68
    %v2434 = vunpack.c.h.b16 %v68
    %v2435 = vunpack.c.l.b16 %v69
    %v2436 = vunpack.c.h.b16 %v69
    %v2437 = vunpack.c.l.b16 %v70
    %v2438 = vunpack.c.h.b16 %v70
    %v2439 = vunpack.c.l.b16 %v71
    %v2440 = vunpack.c.h.b16 %v71
    %v2441 = vpack.c.b16 %v2379, %v2377
    %v2442 = vpack.c.b16 %v2380, %v2378
    %v2443 = vpack.c.b16 %v2383, %v2381
    %v2444 = vpack.c.b16 %v2384, %v2382
    %v2445 = vpack.c.b16 %v2387, %v2385
    %v2446 = vpack.c.b16 %v2388, %v2386
    %v2447 = vpack.c.b16 %v2391, %v2389
    %v2448 = vpack.c.b16 %v2392, %v2390
    %v2449 = vpack.c.b16 %v2395, %v2393
    %v2450 = vpack.c.b16 %v2396, %v2394
    %v2451 = vpack.c.b16 %v2399, %v2397
    %v2452 = vpack.c.b16 %v2400, %v2398
    %v2453 = vpack.c.b16 %v2403, %v2401
    %v2454 = vpack.c.b16 %v2404, %v2402
    %v2455 = vpack.c.b16 %v2407, %v2405
    %v2456 = vpack.c.b16 %v2408, %v2406
    %v2457 = vpack.c.b16 %v2411, %v2409
    %v2458 = vpack.c.b16 %v2412, %v2410
    %v2459 = vpack.c.b16 %v2415, %v2413
    %v2460 = vpack.c.b16 %v2416, %v2414
    %v2461 = vpack.c.b16 %v2419, %v2417
    %v2462 = vpack.c.b16 %v2420, %v2418
    %v2463 = vpack.c.b16 %v2423, %v2421
    %v2464 = vpack.c.b16 %v2424, %v2422
    %v2465 = vpack.c.b16 %v2427, %v2425
    %v2466 = vpack.c.b16 %v2428, %v2426
    %v2467 = vpack.c.b16 %v2431, %v2429
    %v2468 = vpack.c.b16 %v2432, %v2430
    %v2469 = vpack.c.b16 %v2435, %v2433
    %v2470 = vpack.c.b16 %v2436, %v2434
    %v2471 = vpack.c.b16 %v2439, %v2437
    %v2472 = vpack.c.b16 %v2440, %v2438
    %2505 = vmatpush.bf16.msra.mxu0 %v2336
    %2506 = vmatpush.bf16.msra.mxu0 %v2335
    %2507 = vmatpush.bf16.msra.mxu0 %v2334
    %2508 = vmatpush.bf16.msra.mxu0 %v2333
    %2509 = vmatpush.bf16.msra.mxu0 %v2332
    %2510 = vmatpush.bf16.msra.mxu0 %v2331
    %2511 = vmatpush.bf16.msra.mxu0 %v2330
    %2512 = vmatpush.bf16.msra.mxu0 %v2329
    %2513 = vmatmul.bf16.gmra.mxu0 %v2441
    %v2514 = vpop.f32.mrf.mxu0
    %v2515 = vadd.f32 0.0, %v2514
    %v2516 = vpop.f32.mrf.mxu0
    %v2517 = vadd.f32 0.0, %v2516
    %2518 = vmatmul.bf16.gmra.mxu0 %v2443
    %v2519 = vpop.f32.mrf.mxu0
    %v2520 = vadd.f32 0.0, %v2519
    %v2521 = vpop.f32.mrf.mxu0
    %v2522 = vadd.f32 0.0, %v2521
    %2523 = vmatmul.bf16.gmra.mxu0 %v2445
    %v2524 = vpop.f32.mrf.mxu0
    %v2525 = vadd.f32 0.0, %v2524
    %v2526 = vpop.f32.mrf.mxu0
    %v2527 = vadd.f32 0.0, %v2526
    %2528 = vmatmul.bf16.gmra.mxu0 %v2447
    %v2529 = vpop.f32.mrf.mxu0
    %v2530 = vadd.f32 0.0, %v2529
    %v2531 = vpop.f32.mrf.mxu0
    %v2532 = vadd.f32 0.0, %v2531
    %2533 = vmatmul.bf16.gmra.mxu0 %v2449
    %v2534 = vpop.f32.mrf.mxu0
    %v2535 = vadd.f32 0.0, %v2534
    %v2536 = vpop.f32.mrf.mxu0
    %v2537 = vadd.f32 0.0, %v2536
    %2538 = vmatmul.bf16.gmra.mxu0 %v2451
    %v2539 = vpop.f32.mrf.mxu0
    %v2540 = vadd.f32 0.0, %v2539
    %v2541 = vpop.f32.mrf.mxu0
    %v2542 = vadd.f32 0.0, %v2541
    %2543 = vmatmul.bf16.gmra.mxu0 %v2453
    %v2544 = vpop.f32.mrf.mxu0
    %v2545 = vadd.f32 0.0, %v2544
    %v2546 = vpop.f32.mrf.mxu0
    %v2547 = vadd.f32 0.0, %v2546
    %2548 = vmatmul.bf16.gmra.mxu0 %v2455
    %v2549 = vpop.f32.mrf.mxu0
    %v2550 = vadd.f32 0.0, %v2549
    %v2551 = vpop.f32.mrf.mxu0
    %v2552 = vadd.f32 0.0, %v2551
    %2553 = vmatmul.bf16.gmra.mxu0 %v2457
    %v2554 = vpop.f32.mrf.mxu0
    %v2555 = vadd.f32 0.0, %v2554
    %v2556 = vpop.f32.mrf.mxu0
    %v2557 = vadd.f32 0.0, %v2556
    %2558 = vmatmul.bf16.gmra.mxu0 %v2459
    %v2559 = vpop.f32.mrf.mxu0
    %v2560 = vadd.f32 0.0, %v2559
    %v2561 = vpop.f32.mrf.mxu0
    %v2562 = vadd.f32 0.0, %v2561
    %2563 = vmatmul.bf16.gmra.mxu0 %v2461
    %v2564 = vpop.f32.mrf.mxu0
    %v2565 = vadd.f32 0.0, %v2564
    %v2566 = vpop.f32.mrf.mxu0
    %v2567 = vadd.f32 0.0, %v2566
    %2568 = vmatmul.bf16.gmra.mxu0 %v2463
    %v2569 = vpop.f32.mrf.mxu0
    %v2570 = vadd.f32 0.0, %v2569
    %v2571 = vpop.f32.mrf.mxu0
    %v2572 = vadd.f32 0.0, %v2571
    %2573 = vmatmul.bf16.gmra.mxu0 %v2465
    %v2574 = vpop.f32.mrf.mxu0
    %v2575 = vadd.f32 0.0, %v2574
    %v2576 = vpop.f32.mrf.mxu0
    %v2577 = vadd.f32 0.0, %v2576
    %2578 = vmatmul.bf16.gmra.mxu0 %v2467
    %v2579 = vpop.f32.mrf.mxu0
    %v2580 = vadd.f32 0.0, %v2579
    %v2581 = vpop.f32.mrf.mxu0
    %v2582 = vadd.f32 0.0, %v2581
    %2583 = vmatmul.bf16.gmra.mxu0 %v2469
    %v2584 = vpop.f32.mrf.mxu0
    %v2585 = vadd.f32 0.0, %v2584
    %v2586 = vpop.f32.mrf.mxu0
    %v2587 = vadd.f32 0.0, %v2586
    %2588 = vmatmul.bf16.gmra.mxu0 %v2471
    %v2589 = vpop.f32.mrf.mxu0
    %v2590 = vadd.f32 0.0, %v2589
    %v2591 = vpop.f32.mrf.mxu0
    %v2592 = vadd.f32 0.0, %v2591
    %2593 = vdwg.mxu0
    %2594 = vmatpush.bf16.msra.mxu0 %v2344
    %2595 = vmatpush.bf16.msra.mxu0 %v2343
    %2596 = vmatpush.bf16.msra.mxu0 %v2342
    %2597 = vmatpush.bf16.msra.mxu0 %v2341
    %2598 = vmatpush.bf16.msra.mxu0 %v2340
    %2599 = vmatpush.bf16.msra.mxu0 %v2339
    %2600 = vmatpush.bf16.msra.mxu0 %v2338
    %2601 = vmatpush.bf16.msra.mxu0 %v2337
    %2602 = vmatmul.bf16.gmra.mxu0 %v2442
    %v2603 = vpop.f32.mrf.mxu0
    %v2604 = vadd.f32 %v2515, %v2603
    %v2605 = vpop.f32.mrf.mxu0
    %v2606 = vadd.f32 %v2517, %v2605
    %2607 = vmatmul.bf16.gmra.mxu0 %v2444
    %v2608 = vpop.f32.mrf.mxu0
    %v2609 = vadd.f32 %v2520, %v2608
    %v2610 = vpop.f32.mrf.mxu0
    %v2611 = vadd.f32 %v2522, %v2610
    %2612 = vmatmul.bf16.gmra.mxu0 %v2446
    %v2613 = vpop.f32.mrf.mxu0
    %v2614 = vadd.f32 %v2525, %v2613
    %v2615 = vpop.f32.mrf.mxu0
    %v2616 = vadd.f32 %v2527, %v2615
    %2617 = vmatmul.bf16.gmra.mxu0 %v2448
    %v2618 = vpop.f32.mrf.mxu0
    %v2619 = vadd.f32 %v2530, %v2618
    %v2620 = vpop.f32.mrf.mxu0
    %v2621 = vadd.f32 %v2532, %v2620
    %2622 = vmatmul.bf16.gmra.mxu0 %v2450
    %v2623 = vpop.f32.mrf.mxu0
    %v2624 = vadd.f32 %v2535, %v2623
    %v2625 = vpop.f32.mrf.mxu0
    %v2626 = vadd.f32 %v2537, %v2625
    %2627 = vmatmul.bf16.gmra.mxu0 %v2452
    %v2628 = vpop.f32.mrf.mxu0
    %v2629 = vadd.f32 %v2540, %v2628
    %v2630 = vpop.f32.mrf.mxu0
    %v2631 = vadd.f32 %v2542, %v2630
    %2632 = vmatmul.bf16.gmra.mxu0 %v2454
    %v2633 = vpop.f32.mrf.mxu0
    %v2634 = vadd.f32 %v2545, %v2633
    %v2635 = vpop.f32.mrf.mxu0
    %v2636 = vadd.f32 %v2547, %v2635
    %2637 = vmatmul.bf16.gmra.mxu0 %v2456
    %v2638 = vpop.f32.mrf.mxu0
    %v2639 = vadd.f32 %v2550, %v2638
    %v2640 = vpop.f32.mrf.mxu0
    %v2641 = vadd.f32 %v2552, %v2640
    %2642 = vmatmul.bf16.gmra.mxu0 %v2458
    %v2643 = vpop.f32.mrf.mxu0
    %v2644 = vadd.f32 %v2555, %v2643
    %v2645 = vpop.f32.mrf.mxu0
    %v2646 = vadd.f32 %v2557, %v2645
    %2647 = vmatmul.bf16.gmra.mxu0 %v2460
    %v2648 = vpop.f32.mrf.mxu0
    %v2649 = vadd.f32 %v2560, %v2648
    %v2650 = vpop.f32.mrf.mxu0
    %v2651 = vadd.f32 %v2562, %v2650
    %2652 = vmatmul.bf16.gmra.mxu0 %v2462
    %v2653 = vpop.f32.mrf.mxu0
    %v2654 = vadd.f32 %v2565, %v2653
    %v2655 = vpop.f32.mrf.mxu0
    %v2656 = vadd.f32 %v2567, %v2655
    %2657 = vmatmul.bf16.gmra.mxu0 %v2464
    %v2658 = vpop.f32.mrf.mxu0
    %v2659 = vadd.f32 %v2570, %v2658
    %v2660 = vpop.f32.mrf.mxu0
    %v2661 = vadd.f32 %v2572, %v2660
    %2662 = vmatmul.bf16.gmra.mxu0 %v2466
    %v2663 = vpop.f32.mrf.mxu0
    %v2664 = vadd.f32 %v2575, %v2663
    %v2665 = vpop.f32.mrf.mxu0
    %v2666 = vadd.f32 %v2577, %v2665
    %2667 = vmatmul.bf16.gmra.mxu0 %v2468
    %v2668 = vpop.f32.mrf.mxu0
    %v2669 = vadd.f32 %v2580, %v2668
    %v2670 = vpop.f32.mrf.mxu0
    %v2671 = vadd.f32 %v2582, %v2670
    %2672 = vmatmul.bf16.gmra.mxu0 %v2470
    %v2673 = vpop.f32.mrf.mxu0
    %v2674 = vadd.f32 %v2585, %v2673
    %v2675 = vpop.f32.mrf.mxu0
    %v2676 = vadd.f32 %v2587, %v2675
    %2677 = vmatmul.bf16.gmra.mxu0 %v2472
    %v2678 = vpop.f32.mrf.mxu0
    %v2679 = vadd.f32 %v2590, %v2678
    %v2680 = vpop.f32.mrf.mxu0
    %v2681 = vadd.f32 %v2592, %v2680
    %2682 = vdwg.mxu0
    %2684 = vset.pattern.permute.xlu0 0
    %2685 = vperm.xlu0 %2684, %v72
    %v2686 = vpop.permute.xlu0 %2685
    %2689 = vset.pattern.permute.xlu0 0
    %2690 = vperm.xlu0 %2689, %v73
    %v2691 = vpop.permute.xlu0 %2690
    %2694 = vset.pattern.permute.xlu0 0
    %2695 = vperm.xlu0 %2694, %v74
    %v2696 = vpop.permute.xlu0 %2695
    %2699 = vset.pattern.permute.xlu0 0
    %2700 = vperm.xlu0 %2699, %v75
    %v2701 = vpop.permute.xlu0 %2700
    %2704 = vset.pattern.permute.xlu0 0
    %2705 = vperm.xlu0 %2704, %v76
    %v2706 = vpop.permute.xlu0 %2705
    %2709 = vset.pattern.permute.xlu0 0
    %2710 = vperm.xlu0 %2709, %v77
    %v2711 = vpop.permute.xlu0 %2710
    %2714 = vset.pattern.permute.xlu0 0
    %2715 = vperm.xlu0 %2714, %v78
    %v2716 = vpop.permute.xlu0 %2715
    %2719 = vset.pattern.permute.xlu0 0
    %2720 = vperm.xlu0 %2719, %v79
    %v2721 = vpop.permute.xlu0 %2720
    %2724 = vset.pattern.permute.xlu0 0
    %2725 = vperm.xlu0 %2724, %v80
    %v2726 = vpop.permute.xlu0 %2725
    %2729 = vset.pattern.permute.xlu0 0
    %2730 = vperm.xlu0 %2729, %v81
    %v2731 = vpop.permute.xlu0 %2730
    %2734 = vset.pattern.permute.xlu0 0
    %2735 = vperm.xlu0 %2734, %v82
    %v2736 = vpop.permute.xlu0 %2735
    %2739 = vset.pattern.permute.xlu0 0
    %2740 = vperm.xlu0 %2739, %v83
    %v2741 = vpop.permute.xlu0 %2740
    %2744 = vset.pattern.permute.xlu0 0
    %2745 = vperm.xlu0 %2744, %v84
    %v2746 = vpop.permute.xlu0 %2745
    %2749 = vset.pattern.permute.xlu0 0
    %2750 = vperm.xlu0 %2749, %v85
    %v2751 = vpop.permute.xlu0 %2750
    %2754 = vset.pattern.permute.xlu0 0
    %2755 = vperm.xlu0 %2754, %v86
    %v2756 = vpop.permute.xlu0 %2755
    %2759 = vset.pattern.permute.xlu0 0
    %2760 = vperm.xlu0 %2759, %v87
    %v2761 = vpop.permute.xlu0 %2760
    %2764 = vset.pattern.permute.xlu0 0
    %2765 = vperm.xlu0 %2764, %v88
    %v2766 = vpop.permute.xlu0 %2765
    %2769 = vset.pattern.permute.xlu0 0
    %2770 = vperm.xlu0 %2769, %v89
    %v2771 = vpop.permute.xlu0 %2770
    %2774 = vset.pattern.permute.xlu0 0
    %2775 = vperm.xlu0 %2774, %v90
    %v2776 = vpop.permute.xlu0 %2775
    %2779 = vset.pattern.permute.xlu0 0
    %2780 = vperm.xlu0 %2779, %v91
    %v2781 = vpop.permute.xlu0 %2780
    %2784 = vset.pattern.permute.xlu0 0
    %2785 = vperm.xlu0 %2784, %v92
    %v2786 = vpop.permute.xlu0 %2785
    %2789 = vset.pattern.permute.xlu0 0
    %2790 = vperm.xlu0 %2789, %v93
    %v2791 = vpop.permute.xlu0 %2790
    %2794 = vset.pattern.permute.xlu0 0
    %2795 = vperm.xlu0 %2794, %v94
    %v2796 = vpop.permute.xlu0 %2795
    %2799 = vset.pattern.permute.xlu0 0
    %2800 = vperm.xlu0 %2799, %v95
    %v2801 = vpop.permute.xlu0 %2800
    %2804 = vset.pattern.permute.xlu0 0
    %2805 = vperm.xlu0 %2804, %v96
    %v2806 = vpop.permute.xlu0 %2805
    %2809 = vset.pattern.permute.xlu0 0
    %2810 = vperm.xlu0 %2809, %v97
    %v2811 = vpop.permute.xlu0 %2810
    %2814 = vset.pattern.permute.xlu0 0
    %2815 = vperm.xlu0 %2814, %v98
    %v2816 = vpop.permute.xlu0 %2815
    %2819 = vset.pattern.permute.xlu0 0
    %2820 = vperm.xlu0 %2819, %v99
    %v2821 = vpop.permute.xlu0 %2820
    %2824 = vset.pattern.permute.xlu0 0
    %2825 = vperm.xlu0 %2824, %v100
    %v2826 = vpop.permute.xlu0 %2825
    %2829 = vset.pattern.permute.xlu0 0
    %2830 = vperm.xlu0 %2829, %v101
    %v2831 = vpop.permute.xlu0 %2830
    %2834 = vset.pattern.permute.xlu0 0
    %2835 = vperm.xlu0 %2834, %v102
    %v2836 = vpop.permute.xlu0 %2835
    %2839 = vset.pattern.permute.xlu0 0
    %2840 = vperm.xlu0 %2839, %v103
    %v2841 = vpop.permute.xlu0 %2840
    %v2843 = vmul.f32 %v2686, %v2604
    %v2844 = vmul.f32 %v2691, %v2606
    %v2845 = vmul.f32 %v2696, %v2609
    %v2846 = vmul.f32 %v2701, %v2611
    %v2847 = vmul.f32 %v2706, %v2614
    %v2848 = vmul.f32 %v2711, %v2616
    %v2849 = vmul.f32 %v2716, %v2619
    %v2850 = vmul.f32 %v2721, %v2621
    %v2851 = vmul.f32 %v2726, %v2624
    %v2852 = vmul.f32 %v2731, %v2626
    %v2853 = vmul.f32 %v2736, %v2629
    %v2854 = vmul.f32 %v2741, %v2631
    %v2855 = vmul.f32 %v2746, %v2634
    %v2856 = vmul.f32 %v2751, %v2636
    %v2857 = vmul.f32 %v2756, %v2639
    %v2858 = vmul.f32 %v2761, %v2641
    %v2859 = vmul.f32 %v2766, %v2644
    %v2860 = vmul.f32 %v2771, %v2646
    %v2861 = vmul.f32 %v2776, %v2649
    %v2862 = vmul.f32 %v2781, %v2651
    %v2863 = vmul.f32 %v2786, %v2654
    %v2864 = vmul.f32 %v2791, %v2656
    %v2865 = vmul.f32 %v2796, %v2659
    %v2866 = vmul.f32 %v2801, %v2661
    %v2867 = vmul.f32 %v2806, %v2664
    %v2868 = vmul.f32 %v2811, %v2666
    %v2869 = vmul.f32 %v2816, %v2669
    %v2870 = vmul.f32 %v2821, %v2671
    %v2871 = vmul.f32 %v2826, %v2674
    %v2872 = vmul.f32 %v2831, %v2676
    %v2873 = vmul.f32 %v2836, %v2679
    %v2874 = vmul.f32 %v2841, %v2681
    %v2875 = vadd.f32 %v2097, %v2843
    %v2876 = vadd.f32 %v2099, %v2844
    %v2877 = vadd.f32 %v2102, %v2845
    %v2878 = vadd.f32 %v2104, %v2846
    %v2879 = vadd.f32 %v2107, %v2847
    %v2880 = vadd.f32 %v2109, %v2848
    %v2881 = vadd.f32 %v2112, %v2849
    %v2882 = vadd.f32 %v2114, %v2850
    %v2883 = vadd.f32 %v2117, %v2851
    %v2884 = vadd.f32 %v2119, %v2852
    %v2885 = vadd.f32 %v2122, %v2853
    %v2886 = vadd.f32 %v2124, %v2854
    %v2887 = vadd.f32 %v2127, %v2855
    %v2888 = vadd.f32 %v2129, %v2856
    %v2889 = vadd.f32 %v2132, %v2857
    %v2890 = vadd.f32 %v2134, %v2858
    %v2891 = vadd.f32 %v2137, %v2859
    %v2892 = vadd.f32 %v2139, %v2860
    %v2893 = vadd.f32 %v2142, %v2861
    %v2894 = vadd.f32 %v2144, %v2862
    %v2895 = vadd.f32 %v2147, %v2863
    %v2896 = vadd.f32 %v2149, %v2864
    %v2897 = vadd.f32 %v2152, %v2865
    %v2898 = vadd.f32 %v2154, %v2866
    %v2899 = vadd.f32 %v2157, %v2867
    %v2900 = vadd.f32 %v2159, %v2868
    %v2901 = vadd.f32 %v2162, %v2869
    %v2902 = vadd.f32 %v2164, %v2870
    %v2903 = vadd.f32 %v2167, %v2871
    %v2904 = vadd.f32 %v2169, %v2872
    %v2905 = vadd.f32 %v2172, %v2873
    %v2906 = vadd.f32 %v2174, %v2874
    %v2907 = vmax.f32 %v2875, 0.0
    %v2908 = vmax.f32 %v2876, 0.0
    %v2909 = vmax.f32 %v2877, 0.0
    %v2910 = vmax.f32 %v2878, 0.0
    %v2911 = vmax.f32 %v2879, 0.0
    %v2912 = vmax.f32 %v2880, 0.0
    %v2913 = vmax.f32 %v2881, 0.0
    %v2914 = vmax.f32 %v2882, 0.0
    %v2915 = vmax.f32 %v2883, 0.0
    %v2916 = vmax.f32 %v2884, 0.0
    %v2917 = vmax.f32 %v2885, 0.0
    %v2918 = vmax.f32 %v2886, 0.0
    %v2919 = vmax.f32 %v2887, 0.0
    %v2920 = vmax.f32 %v2888, 0.0
    %v2921 = vmax.f32 %v2889, 0.0
    %v2922 = vmax.f32 %v2890, 0.0
    %v2923 = vmax.f32 %v2891, 0.0
    %v2924 = vmax.f32 %v2892, 0.0
    %v2925 = vmax.f32 %v2893, 0.0
    %v2926 = vmax.f32 %v2894, 0.0
    %v2927 = vmax.f32 %v2895, 0.0
    %v2928 = vmax.f32 %v2896, 0.0
    %v2929 = vmax.f32 %v2897, 0.0
    %v2930 = vmax.f32 %v2898, 0.0
    %v2931 = vmax.f32 %v2899, 0.0
    %v2932 = vmax.f32 %v2900, 0.0
    %v2933 = vmax.f32 %v2901, 0.0
    %v2934 = vmax.f32 %v2902, 0.0
    %v2935 = vmax.f32 %v2903, 0.0
    %v2936 = vmax.f32 %v2904, 0.0
    %v2937 = vmax.f32 %v2905, 0.0
    %v2938 = vmax.f32 %v2906, 0.0
    %v2939 = vpack.c.bf16 %v2908, %v2907
    %v2940 = vpack.c.bf16 %v2910, %v2909
    %v2941 = vpack.c.bf16 %v2912, %v2911
    %v2942 = vpack.c.bf16 %v2914, %v2913
    %v2943 = vpack.c.bf16 %v2916, %v2915
    %v2944 = vpack.c.bf16 %v2918, %v2917
    %v2945 = vpack.c.bf16 %v2920, %v2919
    %v2946 = vpack.c.bf16 %v2922, %v2921
    %v2947 = vpack.c.bf16 %v2924, %v2923
    %v2948 = vpack.c.bf16 %v2926, %v2925
    %v2949 = vpack.c.bf16 %v2928, %v2927
    %v2950 = vpack.c.bf16 %v2930, %v2929
    %v2951 = vpack.c.bf16 %v2932, %v2931
    %v2952 = vpack.c.bf16 %v2934, %v2933
    %v2953 = vpack.c.bf16 %v2936, %v2935
    %v2954 = vpack.c.bf16 %v2938, %v2937
    %v2955 = vld [vmem:[%s9] sm:$0xf]
    %v2956 = vld [vmem:[%s9 + $0x4] sm:$0xf]
    %v2957 = vld [vmem:[%s9 + $0x8] sm:$0xf]
    %v2958 = vld [vmem:[%s9 + $0xc] sm:$0xf]
    %v2959 = vld [vmem:[%s9 + $0x10] sm:$0xf]
    %v2960 = vld [vmem:[%s9 + $0x14] sm:$0xf]
    %v2961 = vld [vmem:[%s9 + $0x18] sm:$0xf]
    %v2962 = vld [vmem:[%s9 + $0x1c] sm:$0xf]
    %v2963 = vld [vmem:[%s9 + $0x20] sm:$0xf]
    %v2964 = vld [vmem:[%s9 + $0x24] sm:$0xf]
    %v2965 = vld [vmem:[%s9 + $0x28] sm:$0xf]
    %v2966 = vld [vmem:[%s9 + $0x2c] sm:$0xf]
    %v2967 = vld [vmem:[%s9 + $0x30] sm:$0xf]
    %v2968 = vld [vmem:[%s9 + $0x34] sm:$0xf]
    %v2969 = vld [vmem:[%s9 + $0x38] sm:$0xf]
    %v2970 = vld [vmem:[%s9 + $0x3c] sm:$0xf]
    %v2987 = vunpack.c.l.b16 %v2955
    %v2988 = vunpack.c.l.b16 %v2956
    %v2989 = vunpack.c.l.b16 %v2957
    %v2990 = vunpack.c.l.b16 %v2958
    %v2991 = vunpack.c.l.b16 %v2959
    %v2992 = vunpack.c.l.b16 %v2960
    %v2993 = vunpack.c.l.b16 %v2961
    %v2994 = vunpack.c.l.b16 %v2962
    %v2995 = vunpack.c.l.b16 %v2963
    %v2996 = vunpack.c.l.b16 %v2964
    %v2997 = vunpack.c.l.b16 %v2965
    %v2998 = vunpack.c.l.b16 %v2966
    %v2999 = vunpack.c.l.b16 %v2967
    %v3000 = vunpack.c.l.b16 %v2968
    %v3001 = vunpack.c.l.b16 %v2969
    %v3002 = vunpack.c.l.b16 %v2970
    %v3003 = vpack.c.b16 %v2988, %v2987
    %v3004 = vpack.c.b16 %v2990, %v2989
    %v3005 = vpack.c.b16 %v2992, %v2991
    %v3006 = vpack.c.b16 %v2994, %v2993
    %v3007 = vpack.c.b16 %v2996, %v2995
    %v3008 = vpack.c.b16 %v2998, %v2997
    %v3009 = vpack.c.b16 %v3000, %v2999
    %v3010 = vpack.c.b16 %v3002, %v3001
    %3019 = vmatpush.bf16.msra.mxu0 %v3010
    %3020 = vmatpush.bf16.msra.mxu0 %v3009
    %3021 = vmatpush.bf16.msra.mxu0 %v3008
    %3022 = vmatpush.bf16.msra.mxu0 %v3007
    %3023 = vmatpush.bf16.msra.mxu0 %v3006
    %3024 = vmatpush.bf16.msra.mxu0 %v3005
    %3025 = vmatpush.bf16.msra.mxu0 %v3004
    %3026 = vmatpush.bf16.msra.mxu0 %v3003
    %3027 = vmatmul.bf16.gmra.mxu0 %v2939
    %v3028 = vpop.f32.mrf.mxu0
    %v3029 = vadd.f32 0.0, %v3028
    %v3030 = vpop.f32.mrf.mxu0
    %v3031 = vadd.f32 0.0, %v3030
    %3032 = vmatmul.bf16.gmra.mxu0 %v2940
    %v3033 = vpop.f32.mrf.mxu0
    %v3034 = vadd.f32 0.0, %v3033
    %v3035 = vpop.f32.mrf.mxu0
    %v3036 = vadd.f32 0.0, %v3035
    %3037 = vmatmul.bf16.gmra.mxu0 %v2941
    %v3038 = vpop.f32.mrf.mxu0
    %v3039 = vadd.f32 0.0, %v3038
    %v3040 = vpop.f32.mrf.mxu0
    %v3041 = vadd.f32 0.0, %v3040
    %3042 = vmatmul.bf16.gmra.mxu0 %v2942
    %v3043 = vpop.f32.mrf.mxu0
    %v3044 = vadd.f32 0.0, %v3043
    %v3045 = vpop.f32.mrf.mxu0
    %v3046 = vadd.f32 0.0, %v3045
    %3047 = vmatmul.bf16.gmra.mxu0 %v2943
    %v3048 = vpop.f32.mrf.mxu0
    %v3049 = vadd.f32 0.0, %v3048
    %v3050 = vpop.f32.mrf.mxu0
    %v3051 = vadd.f32 0.0, %v3050
    %3052 = vmatmul.bf16.gmra.mxu0 %v2944
    %v3053 = vpop.f32.mrf.mxu0
    %v3054 = vadd.f32 0.0, %v3053
    %v3055 = vpop.f32.mrf.mxu0
    %v3056 = vadd.f32 0.0, %v3055
    %3057 = vmatmul.bf16.gmra.mxu0 %v2945
    %v3058 = vpop.f32.mrf.mxu0
    %v3059 = vadd.f32 0.0, %v3058
    %v3060 = vpop.f32.mrf.mxu0
    %v3061 = vadd.f32 0.0, %v3060
    %3062 = vmatmul.bf16.gmra.mxu0 %v2946
    %v3063 = vpop.f32.mrf.mxu0
    %v3064 = vadd.f32 0.0, %v3063
    %v3065 = vpop.f32.mrf.mxu0
    %v3066 = vadd.f32 0.0, %v3065
    %3067 = vmatmul.bf16.gmra.mxu0 %v2947
    %v3068 = vpop.f32.mrf.mxu0
    %v3069 = vadd.f32 0.0, %v3068
    %v3070 = vpop.f32.mrf.mxu0
    %v3071 = vadd.f32 0.0, %v3070
    %3072 = vmatmul.bf16.gmra.mxu0 %v2948
    %v3073 = vpop.f32.mrf.mxu0
    %v3074 = vadd.f32 0.0, %v3073
    %v3075 = vpop.f32.mrf.mxu0
    %v3076 = vadd.f32 0.0, %v3075
    %3077 = vmatmul.bf16.gmra.mxu0 %v2949
    %v3078 = vpop.f32.mrf.mxu0
    %v3079 = vadd.f32 0.0, %v3078
    %v3080 = vpop.f32.mrf.mxu0
    %v3081 = vadd.f32 0.0, %v3080
    %3082 = vmatmul.bf16.gmra.mxu0 %v2950
    %v3083 = vpop.f32.mrf.mxu0
    %v3084 = vadd.f32 0.0, %v3083
    %v3085 = vpop.f32.mrf.mxu0
    %v3086 = vadd.f32 0.0, %v3085
    %3087 = vmatmul.bf16.gmra.mxu0 %v2951
    %v3088 = vpop.f32.mrf.mxu0
    %v3089 = vadd.f32 0.0, %v3088
    %v3090 = vpop.f32.mrf.mxu0
    %v3091 = vadd.f32 0.0, %v3090
    %3092 = vmatmul.bf16.gmra.mxu0 %v2952
    %v3093 = vpop.f32.mrf.mxu0
    %v3094 = vadd.f32 0.0, %v3093
    %v3095 = vpop.f32.mrf.mxu0
    %v3096 = vadd.f32 0.0, %v3095
    %3097 = vmatmul.bf16.gmra.mxu0 %v2953
    %v3098 = vpop.f32.mrf.mxu0
    %v3099 = vadd.f32 0.0, %v3098
    %v3100 = vpop.f32.mrf.mxu0
    %v3101 = vadd.f32 0.0, %v3100
    %3102 = vmatmul.bf16.gmra.mxu0 %v2954
    %v3103 = vpop.f32.mrf.mxu0
    %v3104 = vadd.f32 0.0, %v3103
    %v3105 = vpop.f32.mrf.mxu0
    %v3106 = vadd.f32 0.0, %v3105
    %3107 = vdwg.mxu0
    %3109 = vset.pattern.permute.xlu0 0
    %3110 = vperm.xlu0 %3109, %v104
    %v3111 = vpop.permute.xlu0 %3110
    %3114 = vset.pattern.permute.xlu0 0
    %3115 = vperm.xlu0 %3114, %v105
    %v3116 = vpop.permute.xlu0 %3115
    %3119 = vset.pattern.permute.xlu0 0
    %3120 = vperm.xlu0 %3119, %v106
    %v3121 = vpop.permute.xlu0 %3120
    %3124 = vset.pattern.permute.xlu0 0
    %3125 = vperm.xlu0 %3124, %v107
    %v3126 = vpop.permute.xlu0 %3125
    %3129 = vset.pattern.permute.xlu0 0
    %3130 = vperm.xlu0 %3129, %v108
    %v3131 = vpop.permute.xlu0 %3130
    %3134 = vset.pattern.permute.xlu0 0
    %3135 = vperm.xlu0 %3134, %v109
    %v3136 = vpop.permute.xlu0 %3135
    %3139 = vset.pattern.permute.xlu0 0
    %3140 = vperm.xlu0 %3139, %v110
    %v3141 = vpop.permute.xlu0 %3140
    %3144 = vset.pattern.permute.xlu0 0
    %3145 = vperm.xlu0 %3144, %v111
    %v3146 = vpop.permute.xlu0 %3145
    %3149 = vset.pattern.permute.xlu0 0
    %3150 = vperm.xlu0 %3149, %v112
    %v3151 = vpop.permute.xlu0 %3150
    %3154 = vset.pattern.permute.xlu0 0
    %3155 = vperm.xlu0 %3154, %v113
    %v3156 = vpop.permute.xlu0 %3155
    %3159 = vset.pattern.permute.xlu0 0
    %3160 = vperm.xlu0 %3159, %v114
    %v3161 = vpop.permute.xlu0 %3160
    %3164 = vset.pattern.permute.xlu0 0
    %3165 = vperm.xlu0 %3164, %v115
    %v3166 = vpop.permute.xlu0 %3165
    %3169 = vset.pattern.permute.xlu0 0
    %3170 = vperm.xlu0 %3169, %v116
    %v3171 = vpop.permute.xlu0 %3170
    %3174 = vset.pattern.permute.xlu0 0
    %3175 = vperm.xlu0 %3174, %v117
    %v3176 = vpop.permute.xlu0 %3175
    %3179 = vset.pattern.permute.xlu0 0
    %3180 = vperm.xlu0 %3179, %v118
    %v3181 = vpop.permute.xlu0 %3180
    %3184 = vset.pattern.permute.xlu0 0
    %3185 = vperm.xlu0 %3184, %v119
    %v3186 = vpop.permute.xlu0 %3185
    %3189 = vset.pattern.permute.xlu0 0
    %3190 = vperm.xlu0 %3189, %v120
    %v3191 = vpop.permute.xlu0 %3190
    %3194 = vset.pattern.permute.xlu0 0
    %3195 = vperm.xlu0 %3194, %v121
    %v3196 = vpop.permute.xlu0 %3195
    %3199 = vset.pattern.permute.xlu0 0
    %3200 = vperm.xlu0 %3199, %v122
    %v3201 = vpop.permute.xlu0 %3200
    %3204 = vset.pattern.permute.xlu0 0
    %3205 = vperm.xlu0 %3204, %v123
    %v3206 = vpop.permute.xlu0 %3205
    %3209 = vset.pattern.permute.xlu0 0
    %3210 = vperm.xlu0 %3209, %v124
    %v3211 = vpop.permute.xlu0 %3210
    %3214 = vset.pattern.permute.xlu0 0
    %3215 = vperm.xlu0 %3214, %v125
    %v3216 = vpop.permute.xlu0 %3215
    %3219 = vset.pattern.permute.xlu0 0
    %3220 = vperm.xlu0 %3219, %v126
    %v3221 = vpop.permute.xlu0 %3220
    %3224 = vset.pattern.permute.xlu0 0
    %3225 = vperm.xlu0 %3224, %v127
    %v3226 = vpop.permute.xlu0 %3225
    %3229 = vset.pattern.permute.xlu0 0
    %3230 = vperm.xlu0 %3229, %v128
    %v3231 = vpop.permute.xlu0 %3230
    %3234 = vset.pattern.permute.xlu0 0
    %3235 = vperm.xlu0 %3234, %v129
    %v3236 = vpop.permute.xlu0 %3235
    %3239 = vset.pattern.permute.xlu0 0
    %3240 = vperm.xlu0 %3239, %v130
    %v3241 = vpop.permute.xlu0 %3240
    %3244 = vset.pattern.permute.xlu0 0
    %3245 = vperm.xlu0 %3244, %v131
    %v3246 = vpop.permute.xlu0 %3245
    %3249 = vset.pattern.permute.xlu0 0
    %3250 = vperm.xlu0 %3249, %v132
    %v3251 = vpop.permute.xlu0 %3250
    %3254 = vset.pattern.permute.xlu0 0
    %3255 = vperm.xlu0 %3254, %v133
    %v3256 = vpop.permute.xlu0 %3255
    %3259 = vset.pattern.permute.xlu0 0
    %3260 = vperm.xlu0 %3259, %v134
    %v3261 = vpop.permute.xlu0 %3260
    %3264 = vset.pattern.permute.xlu0 0
    %3265 = vperm.xlu0 %3264, %v135
    %v3266 = vpop.permute.xlu0 %3265
    %v3268 = vmul.f32 %v3111, %v3029
    %v3269 = vmul.f32 %v3116, %v3031
    %v3270 = vmul.f32 %v3121, %v3034
    %v3271 = vmul.f32 %v3126, %v3036
    %v3272 = vmul.f32 %v3131, %v3039
    %v3273 = vmul.f32 %v3136, %v3041
    %v3274 = vmul.f32 %v3141, %v3044
    %v3275 = vmul.f32 %v3146, %v3046
    %v3276 = vmul.f32 %v3151, %v3049
    %v3277 = vmul.f32 %v3156, %v3051
    %v3278 = vmul.f32 %v3161, %v3054
    %v3279 = vmul.f32 %v3166, %v3056
    %v3280 = vmul.f32 %v3171, %v3059
    %v3281 = vmul.f32 %v3176, %v3061
    %v3282 = vmul.f32 %v3181, %v3064
    %v3283 = vmul.f32 %v3186, %v3066
    %v3284 = vmul.f32 %v3191, %v3069
    %v3285 = vmul.f32 %v3196, %v3071
    %v3286 = vmul.f32 %v3201, %v3074
    %v3287 = vmul.f32 %v3206, %v3076
    %v3288 = vmul.f32 %v3211, %v3079
    %v3289 = vmul.f32 %v3216, %v3081
    %v3290 = vmul.f32 %v3221, %v3084
    %v3291 = vmul.f32 %v3226, %v3086
    %v3292 = vmul.f32 %v3231, %v3089
    %v3293 = vmul.f32 %v3236, %v3091
    %v3294 = vmul.f32 %v3241, %v3094
    %v3295 = vmul.f32 %v3246, %v3096
    %v3296 = vmul.f32 %v3251, %v3099
    %v3297 = vmul.f32 %v3256, %v3101
    %v3298 = vmul.f32 %v3261, %v3104
    %v3299 = vmul.f32 %v3266, %v3106
    %v3300 = vpack.c.bf16 %v3269, %v3268
    %v3301 = vpack.c.bf16 %v3271, %v3270
    %v3302 = vpack.c.bf16 %v3273, %v3272
    %v3303 = vpack.c.bf16 %v3275, %v3274
    %v3304 = vpack.c.bf16 %v3277, %v3276
    %v3305 = vpack.c.bf16 %v3279, %v3278
    %v3306 = vpack.c.bf16 %v3281, %v3280
    %v3307 = vpack.c.bf16 %v3283, %v3282
    %v3308 = vpack.c.bf16 %v3285, %v3284
    %v3309 = vpack.c.bf16 %v3287, %v3286
    %v3310 = vpack.c.bf16 %v3289, %v3288
    %v3311 = vpack.c.bf16 %v3291, %v3290
    %v3312 = vpack.c.bf16 %v3293, %v3292
    %v3313 = vpack.c.bf16 %v3295, %v3294
    %v3314 = vpack.c.bf16 %v3297, %v3296
    %v3315 = vpack.c.bf16 %v3299, %v3298
    %3316 = vmatpush.bf16.msra.mxu0 %v3307
    %3317 = vmatpush.bf16.msra.mxu0 %v3306
    %3318 = vmatpush.bf16.msra.mxu0 %v3305
    %3319 = vmatpush.bf16.msra.mxu0 %v3304
    %3320 = vmatpush.bf16.msra.mxu0 %v3303
    %3321 = vmatpush.bf16.msra.mxu0 %v3302
    %3322 = vmatpush.bf16.msra.mxu0 %v3301
    %3323 = vmatpush.bf16.msra.mxu0 %v3300
    %3324 = vmatmul.bf16.gmra.mxu0 %v2441
    %v3325 = vpop.f32.mrf.mxu0
    %v3326 = vadd.f32 %v3268, %v3325
    %v3327 = vpop.f32.mrf.mxu0
    %v3328 = vadd.f32 %v3269, %v3327
    %3329 = vmatmul.bf16.gmra.mxu0 %v2443
    %v3330 = vpop.f32.mrf.mxu0
    %v3331 = vadd.f32 %v3270, %v3330
    %v3332 = vpop.f32.mrf.mxu0
    %v3333 = vadd.f32 %v3271, %v3332
    %3334 = vmatmul.bf16.gmra.mxu0 %v2445
    %v3335 = vpop.f32.mrf.mxu0
    %v3336 = vadd.f32 %v3272, %v3335
    %v3337 = vpop.f32.mrf.mxu0
    %v3338 = vadd.f32 %v3273, %v3337
    %3339 = vmatmul.bf16.gmra.mxu0 %v2447
    %v3340 = vpop.f32.mrf.mxu0
    %v3341 = vadd.f32 %v3274, %v3340
    %v3342 = vpop.f32.mrf.mxu0
    %v3343 = vadd.f32 %v3275, %v3342
    %3344 = vmatmul.bf16.gmra.mxu0 %v2449
    %v3345 = vpop.f32.mrf.mxu0
    %v3346 = vadd.f32 %v3276, %v3345
    %v3347 = vpop.f32.mrf.mxu0
    %v3348 = vadd.f32 %v3277, %v3347
    %3349 = vmatmul.bf16.gmra.mxu0 %v2451
    %v3350 = vpop.f32.mrf.mxu0
    %v3351 = vadd.f32 %v3278, %v3350
    %v3352 = vpop.f32.mrf.mxu0
    %v3353 = vadd.f32 %v3279, %v3352
    %3354 = vmatmul.bf16.gmra.mxu0 %v2453
    %v3355 = vpop.f32.mrf.mxu0
    %v3356 = vadd.f32 %v3280, %v3355
    %v3357 = vpop.f32.mrf.mxu0
    %v3358 = vadd.f32 %v3281, %v3357
    %3359 = vmatmul.bf16.gmra.mxu0 %v2455
    %v3360 = vpop.f32.mrf.mxu0
    %v3361 = vadd.f32 %v3282, %v3360
    %v3362 = vpop.f32.mrf.mxu0
    %v3363 = vadd.f32 %v3283, %v3362
    %3364 = vmatmul.bf16.gmra.mxu0 %v2457
    %v3365 = vpop.f32.mrf.mxu0
    %v3366 = vadd.f32 %v3284, %v3365
    %v3367 = vpop.f32.mrf.mxu0
    %v3368 = vadd.f32 %v3285, %v3367
    %3369 = vmatmul.bf16.gmra.mxu0 %v2459
    %v3370 = vpop.f32.mrf.mxu0
    %v3371 = vadd.f32 %v3286, %v3370
    %v3372 = vpop.f32.mrf.mxu0
    %v3373 = vadd.f32 %v3287, %v3372
    %3374 = vmatmul.bf16.gmra.mxu0 %v2461
    %v3375 = vpop.f32.mrf.mxu0
    %v3376 = vadd.f32 %v3288, %v3375
    %v3377 = vpop.f32.mrf.mxu0
    %v3378 = vadd.f32 %v3289, %v3377
    %3379 = vmatmul.bf16.gmra.mxu0 %v2463
    %v3380 = vpop.f32.mrf.mxu0
    %v3381 = vadd.f32 %v3290, %v3380
    %v3382 = vpop.f32.mrf.mxu0
    %v3383 = vadd.f32 %v3291, %v3382
    %3384 = vmatmul.bf16.gmra.mxu0 %v2465
    %v3385 = vpop.f32.mrf.mxu0
    %v3386 = vadd.f32 %v3292, %v3385
    %v3387 = vpop.f32.mrf.mxu0
    %v3388 = vadd.f32 %v3293, %v3387
    %3389 = vmatmul.bf16.gmra.mxu0 %v2467
    %v3390 = vpop.f32.mrf.mxu0
    %v3391 = vadd.f32 %v3294, %v3390
    %v3392 = vpop.f32.mrf.mxu0
    %v3393 = vadd.f32 %v3295, %v3392
    %3394 = vmatmul.bf16.gmra.mxu0 %v2469
    %v3395 = vpop.f32.mrf.mxu0
    %v3396 = vadd.f32 %v3296, %v3395
    %v3397 = vpop.f32.mrf.mxu0
    %v3398 = vadd.f32 %v3297, %v3397
    %3399 = vmatmul.bf16.gmra.mxu0 %v2471
    %v3400 = vpop.f32.mrf.mxu0
    %v3401 = vadd.f32 %v3298, %v3400
    %v3402 = vpop.f32.mrf.mxu0
    %v3403 = vadd.f32 %v3299, %v3402
    %3404 = vdwg.mxu0
    %3405 = vmatpush.bf16.msra.mxu0 %v3315
    %3406 = vmatpush.bf16.msra.mxu0 %v3314
    %3407 = vmatpush.bf16.msra.mxu0 %v3313
    %3408 = vmatpush.bf16.msra.mxu0 %v3312
    %3409 = vmatpush.bf16.msra.mxu0 %v3311
    %3410 = vmatpush.bf16.msra.mxu0 %v3310
    %3411 = vmatpush.bf16.msra.mxu0 %v3309
    %3412 = vmatpush.bf16.msra.mxu0 %v3308
    %3413 = vmatmul.bf16.gmra.mxu0 %v2442
    %v3414 = vpop.f32.mrf.mxu0
    %v3415 = vadd.f32 %v3326, %v3414
    %v3416 = vpop.f32.mrf.mxu0
    %v3417 = vadd.f32 %v3328, %v3416
    %3418 = vmatmul.bf16.gmra.mxu0 %v2444
    %v3419 = vpop.f32.mrf.mxu0
    %v3420 = vadd.f32 %v3331, %v3419
    %v3421 = vpop.f32.mrf.mxu0
    %v3422 = vadd.f32 %v3333, %v3421
    %3423 = vmatmul.bf16.gmra.mxu0 %v2446
    %v3424 = vpop.f32.mrf.mxu0
    %v3425 = vadd.f32 %v3336, %v3424
    %v3426 = vpop.f32.mrf.mxu0
    %v3427 = vadd.f32 %v3338, %v3426
    %3428 = vmatmul.bf16.gmra.mxu0 %v2448
    %v3429 = vpop.f32.mrf.mxu0
    %v3430 = vadd.f32 %v3341, %v3429
    %v3431 = vpop.f32.mrf.mxu0
    %v3432 = vadd.f32 %v3343, %v3431
    %3433 = vmatmul.bf16.gmra.mxu0 %v2450
    %v3434 = vpop.f32.mrf.mxu0
    %v3435 = vadd.f32 %v3346, %v3434
    %v3436 = vpop.f32.mrf.mxu0
    %v3437 = vadd.f32 %v3348, %v3436
    %3438 = vmatmul.bf16.gmra.mxu0 %v2452
    %v3439 = vpop.f32.mrf.mxu0
    %v3440 = vadd.f32 %v3351, %v3439
    %v3441 = vpop.f32.mrf.mxu0
    %v3442 = vadd.f32 %v3353, %v3441
    %3443 = vmatmul.bf16.gmra.mxu0 %v2454
    %v3444 = vpop.f32.mrf.mxu0
    %v3445 = vadd.f32 %v3356, %v3444
    %v3446 = vpop.f32.mrf.mxu0
    %v3447 = vadd.f32 %v3358, %v3446
    %3448 = vmatmul.bf16.gmra.mxu0 %v2456
    %v3449 = vpop.f32.mrf.mxu0
    %v3450 = vadd.f32 %v3361, %v3449
    %v3451 = vpop.f32.mrf.mxu0
    %v3452 = vadd.f32 %v3363, %v3451
    %3453 = vmatmul.bf16.gmra.mxu0 %v2458
    %v3454 = vpop.f32.mrf.mxu0
    %v3455 = vadd.f32 %v3366, %v3454
    %v3456 = vpop.f32.mrf.mxu0
    %v3457 = vadd.f32 %v3368, %v3456
    %3458 = vmatmul.bf16.gmra.mxu0 %v2460
    %v3459 = vpop.f32.mrf.mxu0
    %v3460 = vadd.f32 %v3371, %v3459
    %v3461 = vpop.f32.mrf.mxu0
    %v3462 = vadd.f32 %v3373, %v3461
    %3463 = vmatmul.bf16.gmra.mxu0 %v2462
    %v3464 = vpop.f32.mrf.mxu0
    %v3465 = vadd.f32 %v3376, %v3464
    %v3466 = vpop.f32.mrf.mxu0
    %v3467 = vadd.f32 %v3378, %v3466
    %3468 = vmatmul.bf16.gmra.mxu0 %v2464
    %v3469 = vpop.f32.mrf.mxu0
    %v3470 = vadd.f32 %v3381, %v3469
    %v3471 = vpop.f32.mrf.mxu0
    %v3472 = vadd.f32 %v3383, %v3471
    %3473 = vmatmul.bf16.gmra.mxu0 %v2466
    %v3474 = vpop.f32.mrf.mxu0
    %v3475 = vadd.f32 %v3386, %v3474
    %v3476 = vpop.f32.mrf.mxu0
    %v3477 = vadd.f32 %v3388, %v3476
    %3478 = vmatmul.bf16.gmra.mxu0 %v2468
    %v3479 = vpop.f32.mrf.mxu0
    %v3480 = vadd.f32 %v3391, %v3479
    %v3481 = vpop.f32.mrf.mxu0
    %v3482 = vadd.f32 %v3393, %v3481
    %3483 = vmatmul.bf16.gmra.mxu0 %v2470
    %v3484 = vpop.f32.mrf.mxu0
    %v3485 = vadd.f32 %v3396, %v3484
    %v3486 = vpop.f32.mrf.mxu0
    %v3487 = vadd.f32 %v3398, %v3486
    %3488 = vmatmul.bf16.gmra.mxu0 %v2472
    %v3489 = vpop.f32.mrf.mxu0
    %v3490 = vadd.f32 %v3401, %v3489
    %v3491 = vpop.f32.mrf.mxu0
    %v3492 = vadd.f32 %v3403, %v3491
    %3493 = vdwg.mxu0
    %v3494 = vmul.f32 %v3111, %v3415
    %v3495 = vmul.f32 %v3116, %v3417
    %v3496 = vmul.f32 %v3121, %v3420
    %v3497 = vmul.f32 %v3126, %v3422
    %v3498 = vmul.f32 %v3131, %v3425
    %v3499 = vmul.f32 %v3136, %v3427
    %v3500 = vmul.f32 %v3141, %v3430
    %v3501 = vmul.f32 %v3146, %v3432
    %v3502 = vmul.f32 %v3151, %v3435
    %v3503 = vmul.f32 %v3156, %v3437
    %v3504 = vmul.f32 %v3161, %v3440
    %v3505 = vmul.f32 %v3166, %v3442
    %v3506 = vmul.f32 %v3171, %v3445
    %v3507 = vmul.f32 %v3176, %v3447
    %v3508 = vmul.f32 %v3181, %v3450
    %v3509 = vmul.f32 %v3186, %v3452
    %v3510 = vmul.f32 %v3191, %v3455
    %v3511 = vmul.f32 %v3196, %v3457
    %v3512 = vmul.f32 %v3201, %v3460
    %v3513 = vmul.f32 %v3206, %v3462
    %v3514 = vmul.f32 %v3211, %v3465
    %v3515 = vmul.f32 %v3216, %v3467
    %v3516 = vmul.f32 %v3221, %v3470
    %v3517 = vmul.f32 %v3226, %v3472
    %v3518 = vmul.f32 %v3231, %v3475
    %v3519 = vmul.f32 %v3236, %v3477
    %v3520 = vmul.f32 %v3241, %v3480
    %v3521 = vmul.f32 %v3246, %v3482
    %v3522 = vmul.f32 %v3251, %v3485
    %v3523 = vmul.f32 %v3256, %v3487
    %v3524 = vmul.f32 %v3261, %v3490
    %v3525 = vmul.f32 %v3266, %v3492
    %v3526 = vperm.slane %v39, 6
    %v3527 = vadd.f32 %v3494, %v3526
    %v3528 = vadd.f32 %v3495, %v3526
    %v3529 = vadd.f32 %v3496, %v3526
    %v3530 = vadd.f32 %v3497, %v3526
    %v3531 = vadd.f32 %v3498, %v3526
    %v3532 = vadd.f32 %v3499, %v3526
    %v3533 = vadd.f32 %v3500, %v3526
    %v3534 = vadd.f32 %v3501, %v3526
    %v3535 = vadd.f32 %v3502, %v3526
    %v3536 = vadd.f32 %v3503, %v3526
    %v3537 = vadd.f32 %v3504, %v3526
    %v3538 = vadd.f32 %v3505, %v3526
    %v3539 = vadd.f32 %v3506, %v3526
    %v3540 = vadd.f32 %v3507, %v3526
    %v3541 = vadd.f32 %v3508, %v3526
    %v3542 = vadd.f32 %v3509, %v3526
    %v3543 = vadd.f32 %v3510, %v3526
    %v3544 = vadd.f32 %v3511, %v3526
    %v3545 = vadd.f32 %v3512, %v3526
    %v3546 = vadd.f32 %v3513, %v3526
    %v3547 = vadd.f32 %v3514, %v3526
    %v3548 = vadd.f32 %v3515, %v3526
    %v3549 = vadd.f32 %v3516, %v3526
    %v3550 = vadd.f32 %v3517, %v3526
    %v3551 = vadd.f32 %v3518, %v3526
    %v3552 = vadd.f32 %v3519, %v3526
    %v3553 = vadd.f32 %v3520, %v3526
    %v3554 = vadd.f32 %v3521, %v3526
    %v3555 = vadd.f32 %v3522, %v3526
    %v3556 = vadd.f32 %v3523, %v3526
    %v3557 = vadd.f32 %v3524, %v3526
    %v3558 = vadd.f32 %v3525, %v3526
    %v3559 = vmax.f32 %v3527, 0.0
    %v3560 = vmax.f32 %v3528, 0.0
    %v3561 = vmax.f32 %v3529, 0.0
    %v3562 = vmax.f32 %v3530, 0.0
    %v3563 = vmax.f32 %v3531, 0.0
    %v3564 = vmax.f32 %v3532, 0.0
    %v3565 = vmax.f32 %v3533, 0.0
    %v3566 = vmax.f32 %v3534, 0.0
    %v3567 = vmax.f32 %v3535, 0.0
    %v3568 = vmax.f32 %v3536, 0.0
    %v3569 = vmax.f32 %v3537, 0.0
    %v3570 = vmax.f32 %v3538, 0.0
    %v3571 = vmax.f32 %v3539, 0.0
    %v3572 = vmax.f32 %v3540, 0.0
    %v3573 = vmax.f32 %v3541, 0.0
    %v3574 = vmax.f32 %v3542, 0.0
    %v3575 = vmax.f32 %v3543, 0.0
    %v3576 = vmax.f32 %v3544, 0.0
    %v3577 = vmax.f32 %v3545, 0.0
    %v3578 = vmax.f32 %v3546, 0.0
    %v3579 = vmax.f32 %v3547, 0.0
    %v3580 = vmax.f32 %v3548, 0.0
    %v3581 = vmax.f32 %v3549, 0.0
    %v3582 = vmax.f32 %v3550, 0.0
    %v3583 = vmax.f32 %v3551, 0.0
    %v3584 = vmax.f32 %v3552, 0.0
    %v3585 = vmax.f32 %v3553, 0.0
    %v3586 = vmax.f32 %v3554, 0.0
    %v3587 = vmax.f32 %v3555, 0.0
    %v3588 = vmax.f32 %v3556, 0.0
    %v3589 = vmax.f32 %v3557, 0.0
    %v3590 = vmax.f32 %v3558, 0.0
    %v3591 = vpack.c.bf16 %v3560, %v3559
    %v3592 = vpack.c.bf16 %v3562, %v3561
    %v3593 = vpack.c.bf16 %v3564, %v3563
    %v3594 = vpack.c.bf16 %v3566, %v3565
    %v3595 = vpack.c.bf16 %v3568, %v3567
    %v3596 = vpack.c.bf16 %v3570, %v3569
    %v3597 = vpack.c.bf16 %v3572, %v3571
    %v3598 = vpack.c.bf16 %v3574, %v3573
    %v3599 = vpack.c.bf16 %v3576, %v3575
    %v3600 = vpack.c.bf16 %v3578, %v3577
    %v3601 = vpack.c.bf16 %v3580, %v3579
    %v3602 = vpack.c.bf16 %v3582, %v3581
    %v3603 = vpack.c.bf16 %v3584, %v3583
    %v3604 = vpack.c.bf16 %v3586, %v3585
    %v3605 = vpack.c.bf16 %v3588, %v3587
    %v3606 = vpack.c.bf16 %v3590, %v3589
    %v3607 = vld [vmem:[%s10] sm:$0xf]
    %v3608 = vld [vmem:[%s10 + $0x4] sm:$0xf]
    %v3609 = vld [vmem:[%s10 + $0x8] sm:$0xf]
    %v3610 = vld [vmem:[%s10 + $0xc] sm:$0xf]
    %v3611 = vld [vmem:[%s10 + $0x10] sm:$0xf]
    %v3612 = vld [vmem:[%s10 + $0x14] sm:$0xf]
    %v3613 = vld [vmem:[%s10 + $0x18] sm:$0xf]
    %v3614 = vld [vmem:[%s10 + $0x1c] sm:$0xf]
    %v3615 = vld [vmem:[%s10 + $0x20] sm:$0xf]
    %v3616 = vld [vmem:[%s10 + $0x24] sm:$0xf]
    %v3617 = vld [vmem:[%s10 + $0x28] sm:$0xf]
    %v3618 = vld [vmem:[%s10 + $0x2c] sm:$0xf]
    %v3619 = vld [vmem:[%s10 + $0x30] sm:$0xf]
    %v3620 = vld [vmem:[%s10 + $0x34] sm:$0xf]
    %v3621 = vld [vmem:[%s10 + $0x38] sm:$0xf]
    %v3622 = vld [vmem:[%s10 + $0x3c] sm:$0xf]
    %v3639 = vunpack.c.l.b16 %v3607
    %v3640 = vunpack.c.l.b16 %v3608
    %v3641 = vunpack.c.l.b16 %v3609
    %v3642 = vunpack.c.l.b16 %v3610
    %v3643 = vunpack.c.l.b16 %v3611
    %v3644 = vunpack.c.l.b16 %v3612
    %v3645 = vunpack.c.l.b16 %v3613
    %v3646 = vunpack.c.l.b16 %v3614
    %v3647 = vunpack.c.l.b16 %v3615
    %v3648 = vunpack.c.l.b16 %v3616
    %v3649 = vunpack.c.l.b16 %v3617
    %v3650 = vunpack.c.l.b16 %v3618
    %v3651 = vunpack.c.l.b16 %v3619
    %v3652 = vunpack.c.l.b16 %v3620
    %v3653 = vunpack.c.l.b16 %v3621
    %v3654 = vunpack.c.l.b16 %v3622
    %v3655 = vpack.c.b16 %v3640, %v3639
    %v3656 = vpack.c.b16 %v3642, %v3641
    %v3657 = vpack.c.b16 %v3644, %v3643
    %v3658 = vpack.c.b16 %v3646, %v3645
    %v3659 = vpack.c.b16 %v3648, %v3647
    %v3660 = vpack.c.b16 %v3650, %v3649
    %v3661 = vpack.c.b16 %v3652, %v3651
    %v3662 = vpack.c.b16 %v3654, %v3653
    %3671 = vmatpush.bf16.msra.mxu0 %v3662
    %3672 = vmatpush.bf16.msra.mxu0 %v3661
    %3673 = vmatpush.bf16.msra.mxu0 %v3660
    %3674 = vmatpush.bf16.msra.mxu0 %v3659
    %3675 = vmatpush.bf16.msra.mxu0 %v3658
    %3676 = vmatpush.bf16.msra.mxu0 %v3657
    %3677 = vmatpush.bf16.msra.mxu0 %v3656
    %3678 = vmatpush.bf16.msra.mxu0 %v3655
    %3679 = vmatmul.bf16.gmra.mxu0 %v3591
    %v3680 = vpop.f32.mrf.mxu0
    %v3681 = vadd.f32 0.0, %v3680
    %v3682 = vpop.f32.mrf.mxu0
    %v3683 = vadd.f32 0.0, %v3682
    %3684 = vmatmul.bf16.gmra.mxu0 %v3592
    %v3685 = vpop.f32.mrf.mxu0
    %v3686 = vadd.f32 0.0, %v3685
    %v3687 = vpop.f32.mrf.mxu0
    %v3688 = vadd.f32 0.0, %v3687
    %3689 = vmatmul.bf16.gmra.mxu0 %v3593
    %v3690 = vpop.f32.mrf.mxu0
    %v3691 = vadd.f32 0.0, %v3690
    %v3692 = vpop.f32.mrf.mxu0
    %v3693 = vadd.f32 0.0, %v3692
    %3694 = vmatmul.bf16.gmra.mxu0 %v3594
    %v3695 = vpop.f32.mrf.mxu0
    %v3696 = vadd.f32 0.0, %v3695
    %v3697 = vpop.f32.mrf.mxu0
    %v3698 = vadd.f32 0.0, %v3697
    %3699 = vmatmul.bf16.gmra.mxu0 %v3595
    %v3700 = vpop.f32.mrf.mxu0
    %v3701 = vadd.f32 0.0, %v3700
    %v3702 = vpop.f32.mrf.mxu0
    %v3703 = vadd.f32 0.0, %v3702
    %3704 = vmatmul.bf16.gmra.mxu0 %v3596
    %v3705 = vpop.f32.mrf.mxu0
    %v3706 = vadd.f32 0.0, %v3705
    %v3707 = vpop.f32.mrf.mxu0
    %v3708 = vadd.f32 0.0, %v3707
    %3709 = vmatmul.bf16.gmra.mxu0 %v3597
    %v3710 = vpop.f32.mrf.mxu0
    %v3711 = vadd.f32 0.0, %v3710
    %v3712 = vpop.f32.mrf.mxu0
    %v3713 = vadd.f32 0.0, %v3712
    %3714 = vmatmul.bf16.gmra.mxu0 %v3598
    %v3715 = vpop.f32.mrf.mxu0
    %v3716 = vadd.f32 0.0, %v3715
    %v3717 = vpop.f32.mrf.mxu0
    %v3718 = vadd.f32 0.0, %v3717
    %3719 = vmatmul.bf16.gmra.mxu0 %v3599
    %v3720 = vpop.f32.mrf.mxu0
    %v3721 = vadd.f32 0.0, %v3720
    %v3722 = vpop.f32.mrf.mxu0
    %v3723 = vadd.f32 0.0, %v3722
    %3724 = vmatmul.bf16.gmra.mxu0 %v3600
    %v3725 = vpop.f32.mrf.mxu0
    %v3726 = vadd.f32 0.0, %v3725
    %v3727 = vpop.f32.mrf.mxu0
    %v3728 = vadd.f32 0.0, %v3727
    %3729 = vmatmul.bf16.gmra.mxu0 %v3601
    %v3730 = vpop.f32.mrf.mxu0
    %v3731 = vadd.f32 0.0, %v3730
    %v3732 = vpop.f32.mrf.mxu0
    %v3733 = vadd.f32 0.0, %v3732
    %3734 = vmatmul.bf16.gmra.mxu0 %v3602
    %v3735 = vpop.f32.mrf.mxu0
    %v3736 = vadd.f32 0.0, %v3735
    %v3737 = vpop.f32.mrf.mxu0
    %v3738 = vadd.f32 0.0, %v3737
    %3739 = vmatmul.bf16.gmra.mxu0 %v3603
    %v3740 = vpop.f32.mrf.mxu0
    %v3741 = vadd.f32 0.0, %v3740
    %v3742 = vpop.f32.mrf.mxu0
    %v3743 = vadd.f32 0.0, %v3742
    %3744 = vmatmul.bf16.gmra.mxu0 %v3604
    %v3745 = vpop.f32.mrf.mxu0
    %v3746 = vadd.f32 0.0, %v3745
    %v3747 = vpop.f32.mrf.mxu0
    %v3748 = vadd.f32 0.0, %v3747
    %3749 = vmatmul.bf16.gmra.mxu0 %v3605
    %v3750 = vpop.f32.mrf.mxu0
    %v3751 = vadd.f32 0.0, %v3750
    %v3752 = vpop.f32.mrf.mxu0
    %v3753 = vadd.f32 0.0, %v3752
    %3754 = vmatmul.bf16.gmra.mxu0 %v3606
    %v3755 = vpop.f32.mrf.mxu0
    %v3756 = vadd.f32 0.0, %v3755
    %v3757 = vpop.f32.mrf.mxu0
    %v3758 = vadd.f32 0.0, %v3757
    %3759 = vdwg.mxu0
    %v3760 = vld [vmem:[%s3] sm:$0xf]
    %v3761 = vpack.c.bf16 %v3683, %v3681
    %v3762 = vpack.c.bf16 %v3688, %v3686
    %v3763 = vpack.c.bf16 %v3693, %v3691
    %v3764 = vpack.c.bf16 %v3698, %v3696
    %v3765 = vpack.c.bf16 %v3703, %v3701
    %v3766 = vpack.c.bf16 %v3708, %v3706
    %v3767 = vpack.c.bf16 %v3713, %v3711
    %v3768 = vpack.c.bf16 %v3718, %v3716
    %v3769 = vpack.c.bf16 %v3723, %v3721
    %v3770 = vpack.c.bf16 %v3728, %v3726
    %v3771 = vpack.c.bf16 %v3733, %v3731
    %v3772 = vpack.c.bf16 %v3738, %v3736
    %v3773 = vpack.c.bf16 %v3743, %v3741
    %v3774 = vpack.c.bf16 %v3748, %v3746
    %v3775 = vpack.c.bf16 %v3753, %v3751
    %v3776 = vpack.c.bf16 %v3758, %v3756
    %v3777 = vperm.slane %v39, 7
    %3779 = vst [vmem:[#allocation1] ss:$4 sm:$0xff] %v3760
    %v3780 = vld.sshfl [vmem:[#allocation1] sm:$0xff pattern:$0x73625140]
    %v3781 = vld.sshfl [vmem:[#allocation1 + $0x8] sm:$0xff pattern:$0x73625140]
    %3784 = vmatpush.bf16.msra.mxu0 %v3768
    %3785 = vmatpush.bf16.msra.mxu0 %v3767
    %3786 = vmatpush.bf16.msra.mxu0 %v3766
    %3787 = vmatpush.bf16.msra.mxu0 %v3765
    %3788 = vmatpush.bf16.msra.mxu0 %v3764
    %3789 = vmatpush.bf16.msra.mxu0 %v3763
    %3790 = vmatpush.bf16.msra.mxu0 %v3762
    %3791 = vmatpush.bf16.msra.mxu0 %v3761
    %3792 = vmatmul.bf16.gmra.mxu0 %v3780
    %v3793 = vpop.f32.mrf.mxu0
    %v3794 = vadd.f32 %v3777, %v3793
    %v3795 = vpop.f32.mrf.mxu0
    %3796 = vdwg.mxu0
    %3797 = vmatpush.bf16.msra.mxu0 %v3776
    %3798 = vmatpush.bf16.msra.mxu0 %v3775
    %3799 = vmatpush.bf16.msra.mxu0 %v3774
    %3800 = vmatpush.bf16.msra.mxu0 %v3773
    %3801 = vmatpush.bf16.msra.mxu0 %v3772
    %3802 = vmatpush.bf16.msra.mxu0 %v3771
    %3803 = vmatpush.bf16.msra.mxu0 %v3770
    %3804 = vmatpush.bf16.msra.mxu0 %v3769
    %3805 = vmatmul.bf16.gmra.mxu0 %v3781
    %v3806 = vpop.f32.mrf.mxu0
    %v3807 = vadd.f32 %v3794, %v3806
    %v3808 = vpop.f32.mrf.mxu0
    %3809 = vdwg.mxu0
    %v3810 = vlaneseq
    %v3811 = vand.u32 %v3810, 127
    %vm3812 = vcmp.lt.s32.totalorder %v3811, 3
    %v3813 = vsel %vm3812, %v3807, -1e+30
    %vm3814 = vcmask 1043456
    %v3815 = vsel %vm3814, %v3813, -inf
    %3816 = vmax.xlane.f32.xlu0 %v3815
    %v3817 = vpop.xlane.xlu0 %3816
    %v3818 = vsub.f32 %v3813, %v3817
    %v3819 = vmul.f32 %v3818, 1.442695
    %v3820 = vpow.pop %v3819
    %v3821 = vsel %vm3814, %v3820, 0.0
    %3822 = vadd.xlane.f32.xlu0 %v3821
    %v3823 = vpop.xlane.xlu0 %3822
    %v3824 = vrcp.pop %v3823
    %v3825 = vmul.f32 %v3820, %v3824
    %3826 = vst [vmem:[#allocation2] sm:$0xf] %v3825
    // Predicated region
    $region46: #{gcn_forward.1} parent=1 // pred_check
      _
    $region47: #{gcn_forward.1} parent=1 // pred_check_branch
      %3828 = sbr.rel (0) target = $region49
    $region48: #{gcn_forward.1} parent=1 // pred_region
      %3830 = vsyncadd [#allocation3], 0
      %s3832 = sshll.u32 [#allocation2], 4
      %s3833 = int_to_ptr.vmem [resolvable:$true] %s3832
      %s3834 = sshll.u32 %s11, 4
      %s3835 = int_to_ptr.hbm [resolvable:$true] %s3834
      %3837 = dma.vmem_to_hbm [thread:$0]  %s3833, 64, %s3835, [#allocation3]
    $region49: #{gcn_forward.1} parent=1 // pred_fallthru
      _
    // Predicated region
    $region50: #{gcn_forward.1} parent=1 // pred_check
      _
    $region51: #{gcn_forward.1} parent=1 // pred_check_branch
      %3839 = sbr.rel (0) target = $region53
    $region52: #{gcn_forward.1} parent=1 // pred_region
      %3841 = dma.done [#allocation3], 64
    $region53: #{gcn_forward.1} parent=1 // pred_fallthru
      _
    %3842 = vsyncpa [#allocation3], 1

</llo_original>
